<compile_context>
chip_gen: v7x
topology: tpu7x:2x2x1
jax: 0.10.0
libtpu: 0.0.40
codegen_flags: <defaults>
</compile_context>

<pallas_src>
import math
import functools

import jax
import jax.numpy as jnp
from jax.experimental import pallas as pl
from jax.experimental.pallas import tpu as pltpu


# ----------------------------- in-kernel math helpers -----------------------------

_GELU_C = math.sqrt(2.0 / math.pi)


def _gelu(x):
    # tanh-approximate GELU (native EUP tanh); ~1e-3 max abs deviation from erf GELU,
    # consistent with the bf16 matmul precision budget.
    return 0.5 * x * (1.0 + jnp.tanh(_GELU_C * (x + 0.044715 * x * x * x)))


def _layernorm(x, g, b, eps=1e-5):
    mu = jnp.mean(x, axis=-1, keepdims=True)
    var = jnp.mean((x - mu) ** 2, axis=-1, keepdims=True)
    return (x - mu) * jax.lax.rsqrt(var + eps) * g + b


def _sigmoid(x):
    return 1.0 / (1.0 + jnp.exp(-x))


def _bf16(x):
    return x.astype(jnp.bfloat16)


# ----------------------------------- kernels --------------------------------------

def _fusion_kernel(comb_ref, pe_ref, w_ref, b_ref, g_ref, beta_ref, o_ref):
    # genre fusion: Linear(D + D/4 -> D) + GELU + LayerNorm, then + positional encoding.
    TB, S, Din = comb_ref.shape
    D = w_ref.shape[1]
    c2 = comb_ref[...].reshape(TB * S, Din)
    z = _gelu(jnp.dot(_bf16(c2), w_ref[...],
                      preferred_element_type=jnp.float32) + b_ref[...])
    z = _layernorm(z, g_ref[...], beta_ref[...]).reshape(TB, S, D)
    o_ref[...] = z + pe_ref[...]                       # pe block is (1,S,D), broadcast over TB


def _block_kernel(H, dk,
                  x_ref, pad_ref,
                  wqkv_ref, wo_ref, bo_ref, g1_ref, be1_ref,
                  w1_ref, b1_ref, w2_ref, b2_ref, g2_ref, be2_ref,
                  o_ref):
    # One full transformer block for TB sequences:
    #   fused QKV matmul -> per-head attention (TB-batched einsums, mask built
    #   in-kernel) -> per-head W_o accumulation -> add+LN -> FFN -> add+LN.
    TB, S, D = x_ref.shape
    x2 = x_ref[...].reshape(TB * S, D)                                  # (R, D) f32

    # 1/sqrt(dk) is folded into the Q columns of wqkv at init time.
    qkv = jnp.dot(_bf16(x2), wqkv_ref[...],
                  preferred_element_type=jnp.float32)                   # (R, 3D) f32

    # causal + key-padding mask shared across heads: (TB, S, S)
    row = jax.lax.broadcasted_iota(jnp.int32, (S, S), 0)
    col = jax.lax.broadcasted_iota(jnp.int32, (S, S), 1)
    keymask = (row >= col)[None, :, :] & (pad_ref[...] > 0.5)

    wo = wo_ref[...]                                                    # (D, D) bf16
    attn = jnp.zeros((TB * S, D), jnp.float32)
    for h in range(H):                                  # H small & static -> unrolled
        qh = _bf16(qkv[:, h * dk:(h + 1) * dk]).reshape(TB, S, dk)
        kh = _bf16(qkv[:, D + h * dk:D + (h + 1) * dk]).reshape(TB, S, dk)
        vh = _bf16(qkv[:, 2 * D + h * dk:2 * D + (h + 1) * dk]).reshape(TB, S, dk)
        s = jnp.einsum('bqd,bkd->bqk', qh, kh,
                       preferred_element_type=jnp.float32)              # (TB,S,S)
        s = jnp.where(keymask, s, -1e9)                 # masked_fill(mask==0, -1e9)
        mx = jnp.max(s, axis=-1, keepdims=True)
        e = jnp.exp(s - mx)
        p = e * pl.reciprocal(jnp.sum(e, axis=-1, keepdims=True), approx=True)
        ah = jnp.einsum('bqk,bkd->bqd', _bf16(p), vh,
                        preferred_element_type=jnp.float32)             # (TB,S,dk)
        # per-head output projection slice == concat(heads) @ W_o, without the concat
        attn = attn + jnp.dot(_bf16(ah.reshape(TB * S, dk)),
                              wo[h * dk:(h + 1) * dk, :],
                              preferred_element_type=jnp.float32)

    h1 = _layernorm(x2 + attn + bo_ref[...], g1_ref[...], be1_ref[...])
    ff1 = _gelu(jnp.dot(_bf16(h1), w1_ref[...],
                        preferred_element_type=jnp.float32) + b1_ref[...])
    ff = jnp.dot(_bf16(ff1), w2_ref[...],
                 preferred_element_type=jnp.float32) + b2_ref[...]
    o_ref[...] = _layernorm(h1 + ff, g2_ref[...], be2_ref[...]).reshape(TB, S, D)


def _final_heads_kernel(x_ref, g_ref, b_ref,
                        hw1_ref, hb1_ref, hw2_ref, hb2_ref,
                        y_ref, slab_ref):
    # final LayerNorm + fused rating/preference/content heads.
    # Slab layout (lane-dense, width Hp = multiple of 128):
    #   [0] rating (sigmoid*5 applied in-kernel), [1:3] preference, [3:3+D] content.
    y = _layernorm(x_ref[...], g_ref[...], b_ref[...])
    y_ref[...] = y
    h = _gelu(jnp.dot(_bf16(y), hw1_ref[...],
                      preferred_element_type=jnp.float32) + hb1_ref[...])
    slab = jnp.dot(_bf16(h), hw2_ref[...],
                   preferred_element_type=jnp.float32) + hb2_ref[...]
    lane = jax.lax.broadcasted_iota(jnp.int32, slab.shape, 1)
    slab_ref[...] = jnp.where(lane == 0, _sigmoid(slab) * 5.0, slab)


def _vocab_kernel(x_ref, w_ref, b_ref, o_ref):
    o_ref[...] = jnp.dot(_bf16(x_ref[...]), w_ref[...],
                         preferred_element_type=jnp.float32) + b_ref[...]


# --------------------------------- tiling helpers ----------------------------------

def _full_spec(a):
    nd = a.ndim
    return pl.BlockSpec(a.shape, lambda *args, _nd=nd: (0,) * _nd)


def _pick_batch_tile(B, S, target_rows=256):
    # TB sequences per grid step; prefer >=2 grid steps (v7x: two TensorCores),
    # then the smallest TB giving >= target_rows MXU rows per step.
    divs = [t for t in range(1, B + 1) if B % t == 0]
    cands = [t for t in divs if B // t >= 2] or divs
    good = [t for t in cands if t * S >= target_rows]
    return min(good) if good else max(cands)


def _pick_row_tile(M, target=512):
    # largest divisor of M that is a multiple of 8 and <= target; fall back to M.
    best = None
    for t in range(8, min(M, target) + 1, 8):
        if M % t == 0:
            best = t
    if best is None:
        return M
    if best == M and M >= 16 and (M // 2) % 8 == 0:
        best = M // 2                                   # keep >=2 grid steps
    return best


def _vmem_limit(nbytes):
    # per-step operand footprint, double-buffered, + slack; clamped to sane range.
    return int(min(128 << 20, max(32 << 20, 2 * nbytes + (4 << 20))))


def _arr_bytes(args):
    return sum(int(a.size) * jnp.dtype(a.dtype).itemsize for a in args)


# --------------------------------- kernel wrappers ---------------------------------

def genre_fusion_pe(comb, pe_s, params):
    B, S, Din = comb.shape
    D = pe_s.shape[-1]
    TB = _pick_batch_tile(B, S, target_rows=512)
    weight_args = (params['gf_w'], params['gf_b'], params['gf_ln_g'], params['gf_ln_b'])
    nbytes = 2 * TB * S * max(Din, D) * 4 + _arr_bytes(weight_args) + int(pe_s.size) * 4
    return pl.pallas_call(
        _fusion_kernel,
        grid=(B // TB,),
        in_specs=[pl.BlockSpec((TB, S, Din), lambda b: (b, 0, 0)),
                  pl.BlockSpec((1, S, D), lambda b: (0, 0, 0))]
                 + [_full_spec(w) for w in weight_args],
        out_specs=pl.BlockSpec((TB, S, D), lambda b: (b, 0, 0)),
        out_shape=jax.ShapeDtypeStruct((B, S, D), jnp.float32),
        compiler_params=pltpu.CompilerParams(
            dimension_semantics=("parallel",),
            vmem_limit_bytes=_vmem_limit(nbytes)),
    )(comb, pe_s, *weight_args)


def transformer_block(x, padf, layer, *, num_heads):
    B, S, D = x.shape
    dk = D // num_heads
    TB = _pick_batch_tile(B, S, target_rows=256)
    kern = functools.partial(_block_kernel, num_heads, dk)
    weight_args = (layer['wqkv'], layer['wo'], layer['bo'],
                   layer['attn_ln_g'], layer['attn_ln_b'],
                   layer['w1'], layer['b1'], layer['w2'], layer['b2'],
                   layer['ffn_ln_g'], layer['ffn_ln_b'])
    nbytes = 2 * TB * S * D * 4 + TB * S * 4 + _arr_bytes(weight_args)
    return pl.pallas_call(
        kern,
        grid=(B // TB,),
        in_specs=[pl.BlockSpec((TB, S, D), lambda b: (b, 0, 0)),
                  pl.BlockSpec((TB, 1, S), lambda b: (b, 0, 0))]
                 + [_full_spec(w) for w in weight_args],
        out_specs=pl.BlockSpec((TB, S, D), lambda b: (b, 0, 0)),
        out_shape=jax.ShapeDtypeStruct((B, S, D), jnp.float32),
        compiler_params=pltpu.CompilerParams(
            dimension_semantics=("parallel",),
            vmem_limit_bytes=_vmem_limit(nbytes)),
    )(x, padf, *weight_args)


def final_heads(x2d, params):
    M, D = x2d.shape
    tm = _pick_row_tile(M, target=512)
    Hp = params['head_w2'].shape[1]
    weight_args = (params['final_ln_g'], params['final_ln_b'],
                   params['head_w1'], params['head_b1'],
                   params['head_w2'], params['head_b2'])
    nbytes = 2 * tm * D * 4 + tm * Hp * 4 + _arr_bytes(weight_args)
    return pl.pallas_call(
        _final_heads_kernel,
        grid=(M // tm,),
        in_specs=[pl.BlockSpec((tm, D), lambda i: (i, 0))]
                 + [_full_spec(w) for w in weight_args],
        out_specs=[pl.BlockSpec((tm, D), lambda i: (i, 0)),
                   pl.BlockSpec((tm, Hp), lambda i: (i, 0))],
        out_shape=(jax.ShapeDtypeStruct((M, D), jnp.float32),
                   jax.ShapeDtypeStruct((M, Hp), jnp.float32)),
        compiler_params=pltpu.CompilerParams(
            dimension_semantics=("parallel",),
            vmem_limit_bytes=_vmem_limit(nbytes)),
    )(x2d, *weight_args)


def vocab_projection(y2d, w, b):
    # w is (D, Np) bf16 with Np a multiple of 128 (vocab padded at init).
    M, K = y2d.shape
    Np = w.shape[1]
    tm = _pick_row_tile(M, target=512)
    tn = next(t for t in (512, 256, 128) if Np % t == 0)
    nbytes = tm * K * 4 + K * tn * 2 + tn * 4 + tm * tn * 4
    return pl.pallas_call(
        _vocab_kernel,
        # column-outer / row-inner: the (K, tn) weight tile is fetched once and
        # reused across every row tile before moving to the next column block.
        grid=(Np // tn, M // tm),
        in_specs=[pl.BlockSpec((tm, K), lambda j, i: (i, 0)),
                  pl.BlockSpec((K, tn), lambda j, i: (0, j)),
                  pl.BlockSpec((1, tn), lambda j, i: (0, j))],
        out_specs=pl.BlockSpec((tm, tn), lambda j, i: (i, j)),
        out_shape=jax.ShapeDtypeStruct((M, Np), jnp.float32),
        compiler_params=pltpu.CompilerParams(
            dimension_semantics=("parallel", "parallel"),
            vmem_limit_bytes=_vmem_limit(nbytes)),
    )(y2d, w, b)


# -------------------------------- model forward pass -------------------------------

def enhanced_sasrec_forward(params, sequences, genre_sequences, *, cfg):
    B, S = sequences.shape
    D, H = cfg['d_model'], cfg['num_heads']

    # TODO(synk): embedding lookups stay as XLA gathers (no clean dense Pallas
    # equivalent without a manual DMA-gather kernel); everything downstream is Pallas.
    x = params['item_emb'][sequences] * math.sqrt(D)                 # (B,S,D)
    g_emb = params['genre_emb'][genre_sequences]                     # (B,S,D/4)
    comb = jnp.concatenate([x, g_emb], axis=-1)                      # (B,S,D+D/4)
    pe_s = params['pe'][:S].reshape(1, S, D)

    # genre fusion (Linear+GELU+LN) + positional encoding, dropout = identity
    x = genre_fusion_pe(comb, pe_s, params)                          # (B,S,D)

    # pad vector only; causal+pad mask is rebuilt inside the attention kernel
    padf = (sequences != 0).astype(jnp.float32).reshape(B, 1, S)

    for layer in params['layers']:
        x = transformer_block(x, padf, layer, num_heads=H)

    x2d = x.reshape(B * S, D)
    y2d, slab = final_heads(x2d, params)                             # LN'd acts + head slab

    logits_p = vocab_projection(y2d, params['out_w'], params['out_b'])
    logits = logits_p[:, :cfg['num_items']].reshape(B, S, cfg['num_items'])
    rating = slab[:, 0:1].reshape(B, S, 1)
    pref = slab[:, 1:3].reshape(B, S, 2)
    content = slab[:, 3:3 + D].reshape(B, S, D)

    return {'next_item_logits': logits,
            'rating_pred': rating,
            'preference_logits': pref,
            'content_features': content}


# ---------------------------- deterministic parameter init --------------------------

def _xavier_io(key, in_dim, out_dim):
    # xavier_uniform_ of a torch Linear(out,in) weight, stored pre-transposed (in, out)
    limit = math.sqrt(6.0 / (in_dim + out_dim))
    return jax.random.uniform(key, (in_dim, out_dim), jnp.float32, -limit, limit)


def init_params(key, cfg):
    D, L, H = cfg['d_model'], cfg['num_layers'], cfg['num_heads']
    d_ff, ni, ng = cfg['d_ff'], cfg['num_items'], cfg['num_genres']
    dk = D // H
    Dh = D // 2
    keys = iter(jax.random.split(key, 64))
    nk = lambda: next(keys)
    bf16 = lambda a: a.astype(jnp.bfloat16)

    item_emb = jax.random.normal(nk(), (ni + 1, D), jnp.float32) * math.sqrt(2.0 / (ni + 1 + D))
    item_emb = item_emb.at[0].set(0.0)                               # padding_idx=0
    genre_emb = jax.random.normal(nk(), (ng + 1, D // 4), jnp.float32)
    genre_emb = genre_emb.at[0].set(0.0)                             # padding_idx=0

    pos = jnp.arange(cfg['max_seq_len'], dtype=jnp.float32)[:, None]
    div = jnp.exp(jnp.arange(0, D, 2, dtype=jnp.float32) * (-math.log(10000.0) / D))
    pe = jnp.zeros((cfg['max_seq_len'], D), jnp.float32)
    pe = pe.at[:, 0::2].set(jnp.sin(pos * div))
    pe = pe.at[:, 1::2].set(jnp.cos(pos * div))

    ones_d = jnp.ones((1, D), jnp.float32)
    zeros_d = jnp.zeros((1, D), jnp.float32)

    layers = []
    for _ in range(L):
        wq = _xavier_io(nk(), D, D) * (1.0 / math.sqrt(dk))          # fold 1/sqrt(dk) into Q
        wk, wv = _xavier_io(nk(), D, D), _xavier_io(nk(), D, D)
        layers.append(dict(
            wqkv=bf16(jnp.concatenate([wq, wk, wv], axis=1)),        # (D, 3D) bf16
            wo=bf16(_xavier_io(nk(), D, D)), bo=zeros_d,
            attn_ln_g=ones_d, attn_ln_b=zeros_d,
            w1=bf16(_xavier_io(nk(), D, d_ff)), b1=jnp.zeros((1, d_ff), jnp.float32),
            w2=bf16(_xavier_io(nk(), d_ff, D)), b2=zeros_d,
            ffn_ln_g=ones_d, ffn_ln_b=zeros_d,
        ))

    # fused prediction heads: shared first layer (D -> 3*D/2), block-diagonal second
    # layer padded to a lane-dense slab of width Hp (multiple of 128).
    r_w1, p_w1, c_w1 = _xavier_io(nk(), D, Dh), _xavier_io(nk(), D, Dh), _xavier_io(nk(), D, Dh)
    r_w2, p_w2, c_w2 = _xavier_io(nk(), Dh, 1), _xavier_io(nk(), Dh, 2), _xavier_io(nk(), Dh, D)
    Hp = 128 * max(1, -(-(3 + D) // 128))
    head_w2 = jnp.zeros((3 * Dh, Hp), jnp.float32)
    head_w2 = head_w2.at[0:Dh, 0:1].set(r_w2)
    head_w2 = head_w2.at[Dh:2 * Dh, 1:3].set(p_w2)
    head_w2 = head_w2.at[2 * Dh:3 * Dh, 3:3 + D].set(c_w2)

    # vocabulary projection padded to a lane-dense multiple of 128 columns
    Np = 128 * max(1, -(-ni // 128))
    out_w = jnp.zeros((D, Np), jnp.float32).at[:, :ni].set(_xavier_io(nk(), D, ni))

    return dict(
        item_emb=item_emb, genre_emb=genre_emb, pe=pe, layers=layers,
        gf_w=bf16(_xavier_io(nk(), D + D // 4, D)), gf_b=zeros_d,
        gf_ln_g=ones_d, gf_ln_b=zeros_d,
        final_ln_g=ones_d, final_ln_b=zeros_d,
        out_w=bf16(out_w), out_b=jnp.zeros((1, Np), jnp.float32),
        head_w1=bf16(jnp.concatenate([r_w1, p_w1, c_w1], axis=1)),   # (D, 3*D/2) bf16
        head_b1=jnp.zeros((1, 3 * Dh), jnp.float32),
        head_w2=bf16(head_w2), head_b2=jnp.zeros((1, Hp), jnp.float32),
    )


# --------------------------------------- main --------------------------------------

if __name__ == "__main__":
    cfg = dict(num_items=50, num_genres=10, max_seq_len=16,
               d_model=64, num_heads=4, num_layers=2, d_ff=128)
    B, S = 2, 8

    key = jax.random.PRNGKey(0)
    k_params, k_seq, k_genre = jax.random.split(key, 3)
    params = init_params(k_params, cfg)
    sequences = jax.random.randint(k_seq, (B, S), 1, cfg['num_items'] + 1, dtype=jnp.int32)
    genre_sequences = jax.random.randint(k_genre, (B, S), 1, cfg['num_genres'] + 1, dtype=jnp.int32)

    fwd = jax.jit(functools.partial(enhanced_sasrec_forward, cfg=cfg))
    outputs = fwd(params, sequences, genre_sequences)
    outputs = jax.block_until_ready(outputs)

    assert outputs['next_item_logits'].shape == (B, S, cfg['num_items'])
    assert outputs['rating_pred'].shape == (B, S, 1)
    assert outputs['preference_logits'].shape == (B, S, 2)
    assert outputs['content_features'].shape == (B, S, cfg['d_model'])
    assert all(bool(jnp.all(jnp.isfinite(v))) for v in outputs.values())
    print("KERNEL_OK")
</pallas_src>

<mosaic_0001>
module attributes {stable_mosaic.version = 11 : i64} {
  func.func @_block_kernel(%arg0: i32, %arg1: memref<1x8x64xf32, #tpu.memory_space<vmem>>, %arg2: memref<1x1x8xf32, #tpu.memory_space<vmem>>, %arg3: memref<64x192xbf16, #tpu.memory_space<vmem>>, %arg4: memref<64x64xbf16, #tpu.memory_space<vmem>>, %arg5: memref<1x64xf32, #tpu.memory_space<vmem>>, %arg6: memref<1x64xf32, #tpu.memory_space<vmem>>, %arg7: memref<1x64xf32, #tpu.memory_space<vmem>>, %arg8: memref<64x128xbf16, #tpu.memory_space<vmem>>, %arg9: memref<1x128xf32, #tpu.memory_space<vmem>>, %arg10: memref<128x64xbf16, #tpu.memory_space<vmem>>, %arg11: memref<1x64xf32, #tpu.memory_space<vmem>>, %arg12: memref<1x64xf32, #tpu.memory_space<vmem>>, %arg13: memref<1x64xf32, #tpu.memory_space<vmem>>, %arg14: memref<1x8x64xf32, #tpu.memory_space<vmem>>) attributes {dimension_semantics = [#tpu.dimension_semantics<parallel>], iteration_bounds = array<i64: 2>, scalar_prefetch = 0 : i64, scratch_operands = 0 : i64, tpu.core_type = #tpu.core_type<tc>, window_params = [{transform_indices = @transform_0, window_bounds = array<i64: 1, 8, 64>}, {transform_indices = @transform_1, window_bounds = array<i64: 1, 1, 8>}, {pipeline_mode = #tpu.pipeline_mode<synchronous>, transform_indices = @transform_2, window_bounds = array<i64: 64, 192>}, {pipeline_mode = #tpu.pipeline_mode<synchronous>, transform_indices = @transform_3, window_bounds = array<i64: 64, 64>}, {pipeline_mode = #tpu.pipeline_mode<synchronous>, transform_indices = @transform_4, window_bounds = array<i64: 1, 64>}, {pipeline_mode = #tpu.pipeline_mode<synchronous>, transform_indices = @transform_5, window_bounds = array<i64: 1, 64>}, {pipeline_mode = #tpu.pipeline_mode<synchronous>, transform_indices = @transform_6, window_bounds = array<i64: 1, 64>}, {pipeline_mode = #tpu.pipeline_mode<synchronous>, transform_indices = @transform_7, window_bounds = array<i64: 64, 128>}, {pipeline_mode = #tpu.pipeline_mode<synchronous>, transform_indices = @transform_8, window_bounds = array<i64: 1, 128>}, {pipeline_mode = #tpu.pipeline_mode<synchronous>, transform_indices = @transform_9, window_bounds = array<i64: 128, 64>}, {pipeline_mode = #tpu.pipeline_mode<synchronous>, transform_indices = @transform_10, window_bounds = array<i64: 1, 64>}, {pipeline_mode = #tpu.pipeline_mode<synchronous>, transform_indices = @transform_11, window_bounds = array<i64: 1, 64>}, {pipeline_mode = #tpu.pipeline_mode<synchronous>, transform_indices = @transform_12, window_bounds = array<i64: 1, 64>}, {transform_indices = @transform_13, window_bounds = array<i64: 1, 8, 64>}]} {
    %c0 = arith.constant 0 : index
    %c0_0 = arith.constant 0 : index
    %c0_1 = arith.constant 0 : index
    %0 = vector.load %arg1[%c0, %c0_0, %c0_1] : memref<1x8x64xf32, #tpu.memory_space<vmem>>, vector<1x8x64xf32>
    %1 = vector.shape_cast %0 : vector<1x8x64xf32> to vector<8x64xf32>
    %2 = arith.truncf %1 : vector<8x64xf32> to vector<8x64xbf16>
    %c0_2 = arith.constant 0 : index
    %c0_3 = arith.constant 0 : index
    %3 = vector.load %arg3[%c0_2, %c0_3] : memref<64x192xbf16, #tpu.memory_space<vmem>>, vector<64x192xbf16>
    %cst = arith.constant dense<0.000000e+00> : vector<8x192xf32>
    %4 = tpu.matmul %2, %3, %cst {dimension_numbers = #tpu.dot_dimension_numbers<[1], [0], [0], [1], [0, 0, 1, 1], [], []>} : vector<8x64xbf16>, vector<64x192xbf16>, vector<8x192xf32> -> vector<8x192xf32>
    %5 = tpu.iota {dimensions = array<i32: 0>} : vector<8x8xi32>
    %6 = tpu.iota {dimensions = array<i32: 1>} : vector<8x8xi32>
    %7 = arith.cmpi sge, %5, %6 : vector<8x8xi32>
    %8 = vector.shape_cast %7 : vector<8x8xi1> to vector<1x8x8xi1>
    %c0_4 = arith.constant 0 : index
    %c0_5 = arith.constant 0 : index
    %c0_6 = arith.constant 0 : index
    %9 = vector.load %arg2[%c0_4, %c0_5, %c0_6] : memref<1x1x8xf32, #tpu.memory_space<vmem>>, vector<1x1x8xf32>
    %cst_7 = arith.constant 5.000000e-01 : f32
    %10 = vector.broadcast %cst_7 : f32 to vector<1x1x8xf32>
    %11 = arith.cmpf ogt, %9, %10 : vector<1x1x8xf32>
    %12 = vector.broadcast %11 : vector<1x1x8xi1> to vector<1x8x8xi1>
    %13 = arith.andi %8, %12 : vector<1x8x8xi1>
    %c0_8 = arith.constant 0 : index
    %c0_9 = arith.constant 0 : index
    %14 = vector.load %arg4[%c0_8, %c0_9] : memref<64x64xbf16, #tpu.memory_space<vmem>>, vector<64x64xbf16>
    %cst_10 = arith.constant 0.000000e+00 : f32
    %15 = vector.broadcast %cst_10 : f32 to vector<8x64xf32>
    %16 = vector.extract_strided_slice %4 {offsets = [0, 0], sizes = [8, 16], strides = [1, 1]} : vector<8x192xf32> to vector<8x16xf32>
    %17 = arith.truncf %16 : vector<8x16xf32> to vector<8x16xbf16>
    %18 = vector.shape_cast %17 : vector<8x16xbf16> to vector<1x8x16xbf16>
    %19 = vector.extract_strided_slice %4 {offsets = [0, 64], sizes = [8, 16], strides = [1, 1]} : vector<8x192xf32> to vector<8x16xf32>
    %20 = arith.truncf %19 : vector<8x16xf32> to vector<8x16xbf16>
    %21 = vector.shape_cast %20 : vector<8x16xbf16> to vector<1x8x16xbf16>
    %22 = vector.extract_strided_slice %4 {offsets = [0, 128], sizes = [8, 16], strides = [1, 1]} : vector<8x192xf32> to vector<8x16xf32>
    %23 = arith.truncf %22 : vector<8x16xf32> to vector<8x16xbf16>
    %24 = vector.shape_cast %23 : vector<8x16xbf16> to vector<1x8x16xbf16>
    "tpu.trace_start"() <{level = 10 : i32, message = "bqd,bkd->bqk"}> : () -> ()
    %cst_11 = arith.constant dense<0.000000e+00> : vector<1x8x8xf32>
    %25 = tpu.matmul %18, %21, %cst_11 {dimension_numbers = #tpu.dot_dimension_numbers<[2], [2], [1], [1], [0, 0, 0, 1, 1, 1], [0], [0]>} : vector<1x8x16xbf16>, vector<1x8x16xbf16>, vector<1x8x8xf32> -> vector<1x8x8xf32>
    %cst_12 = arith.constant -1.000000e+09 : f32
    "tpu.trace_stop"() : () -> ()
    %26 = vector.broadcast %cst_12 : f32 to vector<1x8x8xf32>
    %27 = arith.select %13, %25, %26 : vector<1x8x8xi1>, vector<1x8x8xf32>
    %cst_13 = arith.constant dense<0xFF800000> : vector<1x8xf32>
    %28 = vector.multi_reduction <maximumf>, %27, %cst_13 [2] : vector<1x8x8xf32> to vector<1x8xf32>
    %29 = vector.shape_cast %28 : vector<1x8xf32> to vector<1x8x1xf32>
    %30 = vector.broadcast %29 : vector<1x8x1xf32> to vector<1x8x8xf32>
    %31 = arith.subf %27, %30 : vector<1x8x8xf32>
    %32 = math.exp %31 : vector<1x8x8xf32>
    %cst_14 = arith.constant dense<0.000000e+00> : vector<1x8xf32>
    %33 = vector.multi_reduction <add>, %32, %cst_14 [2] : vector<1x8x8xf32> to vector<1x8xf32>
    %34 = vector.shape_cast %33 : vector<1x8xf32> to vector<1x8x1xf32>
    %35 = tpu.reciprocal %34 {approx = true} : vector<1x8x1xf32> -> vector<1x8x1xf32>
    %36 = vector.broadcast %35 : vector<1x8x1xf32> to vector<1x8x8xf32>
    %37 = arith.mulf %32, %36 : vector<1x8x8xf32>
    %38 = arith.truncf %37 : vector<1x8x8xf32> to vector<1x8x8xbf16>
    "tpu.trace_start"() <{level = 10 : i32, message = "bqk,bkd->bqd"}> : () -> ()
    %cst_15 = arith.constant dense<0.000000e+00> : vector<1x8x16xf32>
    %39 = tpu.matmul %38, %24, %cst_15 {dimension_numbers = #tpu.dot_dimension_numbers<[2], [1], [1], [2], [0, 0, 0, 1, 1, 2], [0], [0]>} : vector<1x8x8xbf16>, vector<1x8x16xbf16>, vector<1x8x16xf32> -> vector<1x8x16xf32>
    "tpu.trace_stop"() : () -> ()
    %40 = vector.shape_cast %39 : vector<1x8x16xf32> to vector<8x16xf32>
    %41 = arith.truncf %40 : vector<8x16xf32> to vector<8x16xbf16>
    %42 = vector.extract_strided_slice %14 {offsets = [0, 0], sizes = [16, 64], strides = [1, 1]} : vector<64x64xbf16> to vector<16x64xbf16>
    %cst_16 = arith.constant dense<0.000000e+00> : vector<8x64xf32>
    %43 = tpu.matmul %41, %42, %cst_16 {dimension_numbers = #tpu.dot_dimension_numbers<[1], [0], [0], [1], [0, 0, 1, 1], [], []>} : vector<8x16xbf16>, vector<16x64xbf16>, vector<8x64xf32> -> vector<8x64xf32>
    %44 = arith.addf %15, %43 : vector<8x64xf32>
    %45 = vector.extract_strided_slice %4 {offsets = [0, 16], sizes = [8, 16], strides = [1, 1]} : vector<8x192xf32> to vector<8x16xf32>
    %46 = arith.truncf %45 : vector<8x16xf32> to vector<8x16xbf16>
    %47 = vector.shape_cast %46 : vector<8x16xbf16> to vector<1x8x16xbf16>
    %48 = vector.extract_strided_slice %4 {offsets = [0, 80], sizes = [8, 16], strides = [1, 1]} : vector<8x192xf32> to vector<8x16xf32>
    %49 = arith.truncf %48 : vector<8x16xf32> to vector<8x16xbf16>
    %50 = vector.shape_cast %49 : vector<8x16xbf16> to vector<1x8x16xbf16>
    %51 = vector.extract_strided_slice %4 {offsets = [0, 144], sizes = [8, 16], strides = [1, 1]} : vector<8x192xf32> to vector<8x16xf32>
    %52 = arith.truncf %51 : vector<8x16xf32> to vector<8x16xbf16>
    %53 = vector.shape_cast %52 : vector<8x16xbf16> to vector<1x8x16xbf16>
    "tpu.trace_start"() <{level = 10 : i32, message = "bqd,bkd->bqk"}> : () -> ()
    %cst_17 = arith.constant dense<0.000000e+00> : vector<1x8x8xf32>
    %54 = tpu.matmul %47, %50, %cst_17 {dimension_numbers = #tpu.dot_dimension_numbers<[2], [2], [1], [1], [0, 0, 0, 1, 1, 1], [0], [0]>} : vector<1x8x16xbf16>, vector<1x8x16xbf16>, vector<1x8x8xf32> -> vector<1x8x8xf32>
    %cst_18 = arith.constant -1.000000e+09 : f32
    "tpu.trace_stop"() : () -> ()
    %55 = vector.broadcast %cst_18 : f32 to vector<1x8x8xf32>
    %56 = arith.select %13, %54, %55 : vector<1x8x8xi1>, vector<1x8x8xf32>
    %cst_19 = arith.constant dense<0xFF800000> : vector<1x8xf32>
    %57 = vector.multi_reduction <maximumf>, %56, %cst_19 [2] : vector<1x8x8xf32> to vector<1x8xf32>
    %58 = vector.shape_cast %57 : vector<1x8xf32> to vector<1x8x1xf32>
    %59 = vector.broadcast %58 : vector<1x8x1xf32> to vector<1x8x8xf32>
    %60 = arith.subf %56, %59 : vector<1x8x8xf32>
    %61 = math.exp %60 : vector<1x8x8xf32>
    %cst_20 = arith.constant dense<0.000000e+00> : vector<1x8xf32>
    %62 = vector.multi_reduction <add>, %61, %cst_20 [2] : vector<1x8x8xf32> to vector<1x8xf32>
    %63 = vector.shape_cast %62 : vector<1x8xf32> to vector<1x8x1xf32>
    %64 = tpu.reciprocal %63 {approx = true} : vector<1x8x1xf32> -> vector<1x8x1xf32>
    %65 = vector.broadcast %64 : vector<1x8x1xf32> to vector<1x8x8xf32>
    %66 = arith.mulf %61, %65 : vector<1x8x8xf32>
    %67 = arith.truncf %66 : vector<1x8x8xf32> to vector<1x8x8xbf16>
    "tpu.trace_start"() <{level = 10 : i32, message = "bqk,bkd->bqd"}> : () -> ()
    %cst_21 = arith.constant dense<0.000000e+00> : vector<1x8x16xf32>
    %68 = tpu.matmul %67, %53, %cst_21 {dimension_numbers = #tpu.dot_dimension_numbers<[2], [1], [1], [2], [0, 0, 0, 1, 1, 2], [0], [0]>} : vector<1x8x8xbf16>, vector<1x8x16xbf16>, vector<1x8x16xf32> -> vector<1x8x16xf32>
    "tpu.trace_stop"() : () -> ()
    %69 = vector.shape_cast %68 : vector<1x8x16xf32> to vector<8x16xf32>
    %70 = arith.truncf %69 : vector<8x16xf32> to vector<8x16xbf16>
    %71 = vector.extract_strided_slice %14 {offsets = [16, 0], sizes = [16, 64], strides = [1, 1]} : vector<64x64xbf16> to vector<16x64xbf16>
    %cst_22 = arith.constant dense<0.000000e+00> : vector<8x64xf32>
    %72 = tpu.matmul %70, %71, %cst_22 {dimension_numbers = #tpu.dot_dimension_numbers<[1], [0], [0], [1], [0, 0, 1, 1], [], []>} : vector<8x16xbf16>, vector<16x64xbf16>, vector<8x64xf32> -> vector<8x64xf32>
    %73 = arith.addf %44, %72 : vector<8x64xf32>
    %74 = vector.extract_strided_slice %4 {offsets = [0, 32], sizes = [8, 16], strides = [1, 1]} : vector<8x192xf32> to vector<8x16xf32>
    %75 = arith.truncf %74 : vector<8x16xf32> to vector<8x16xbf16>
    %76 = vector.shape_cast %75 : vector<8x16xbf16> to vector<1x8x16xbf16>
    %77 = vector.extract_strided_slice %4 {offsets = [0, 96], sizes = [8, 16], strides = [1, 1]} : vector<8x192xf32> to vector<8x16xf32>
    %78 = arith.truncf %77 : vector<8x16xf32> to vector<8x16xbf16>
    %79 = vector.shape_cast %78 : vector<8x16xbf16> to vector<1x8x16xbf16>
    %80 = vector.extract_strided_slice %4 {offsets = [0, 160], sizes = [8, 16], strides = [1, 1]} : vector<8x192xf32> to vector<8x16xf32>
    %81 = arith.truncf %80 : vector<8x16xf32> to vector<8x16xbf16>
    %82 = vector.shape_cast %81 : vector<8x16xbf16> to vector<1x8x16xbf16>
    "tpu.trace_start"() <{level = 10 : i32, message = "bqd,bkd->bqk"}> : () -> ()
    %cst_23 = arith.constant dense<0.000000e+00> : vector<1x8x8xf32>
    %83 = tpu.matmul %76, %79, %cst_23 {dimension_numbers = #tpu.dot_dimension_numbers<[2], [2], [1], [1], [0, 0, 0, 1, 1, 1], [0], [0]>} : vector<1x8x16xbf16>, vector<1x8x16xbf16>, vector<1x8x8xf32> -> vector<1x8x8xf32>
    %cst_24 = arith.constant -1.000000e+09 : f32
    "tpu.trace_stop"() : () -> ()
    %84 = vector.broadcast %cst_24 : f32 to vector<1x8x8xf32>
    %85 = arith.select %13, %83, %84 : vector<1x8x8xi1>, vector<1x8x8xf32>
    %cst_25 = arith.constant dense<0xFF800000> : vector<1x8xf32>
    %86 = vector.multi_reduction <maximumf>, %85, %cst_25 [2] : vector<1x8x8xf32> to vector<1x8xf32>
    %87 = vector.shape_cast %86 : vector<1x8xf32> to vector<1x8x1xf32>
    %88 = vector.broadcast %87 : vector<1x8x1xf32> to vector<1x8x8xf32>
    %89 = arith.subf %85, %88 : vector<1x8x8xf32>
    %90 = math.exp %89 : vector<1x8x8xf32>
    %cst_26 = arith.constant dense<0.000000e+00> : vector<1x8xf32>
    %91 = vector.multi_reduction <add>, %90, %cst_26 [2] : vector<1x8x8xf32> to vector<1x8xf32>
    %92 = vector.shape_cast %91 : vector<1x8xf32> to vector<1x8x1xf32>
    %93 = tpu.reciprocal %92 {approx = true} : vector<1x8x1xf32> -> vector<1x8x1xf32>
    %94 = vector.broadcast %93 : vector<1x8x1xf32> to vector<1x8x8xf32>
    %95 = arith.mulf %90, %94 : vector<1x8x8xf32>
    %96 = arith.truncf %95 : vector<1x8x8xf32> to vector<1x8x8xbf16>
    "tpu.trace_start"() <{level = 10 : i32, message = "bqk,bkd->bqd"}> : () -> ()
    %cst_27 = arith.constant dense<0.000000e+00> : vector<1x8x16xf32>
    %97 = tpu.matmul %96, %82, %cst_27 {dimension_numbers = #tpu.dot_dimension_numbers<[2], [1], [1], [2], [0, 0, 0, 1, 1, 2], [0], [0]>} : vector<1x8x8xbf16>, vector<1x8x16xbf16>, vector<1x8x16xf32> -> vector<1x8x16xf32>
    "tpu.trace_stop"() : () -> ()
    %98 = vector.shape_cast %97 : vector<1x8x16xf32> to vector<8x16xf32>
    %99 = arith.truncf %98 : vector<8x16xf32> to vector<8x16xbf16>
    %100 = vector.extract_strided_slice %14 {offsets = [32, 0], sizes = [16, 64], strides = [1, 1]} : vector<64x64xbf16> to vector<16x64xbf16>
    %cst_28 = arith.constant dense<0.000000e+00> : vector<8x64xf32>
    %101 = tpu.matmul %99, %100, %cst_28 {dimension_numbers = #tpu.dot_dimension_numbers<[1], [0], [0], [1], [0, 0, 1, 1], [], []>} : vector<8x16xbf16>, vector<16x64xbf16>, vector<8x64xf32> -> vector<8x64xf32>
    %102 = arith.addf %73, %101 : vector<8x64xf32>
    %103 = vector.extract_strided_slice %4 {offsets = [0, 48], sizes = [8, 16], strides = [1, 1]} : vector<8x192xf32> to vector<8x16xf32>
    %104 = arith.truncf %103 : vector<8x16xf32> to vector<8x16xbf16>
    %105 = vector.shape_cast %104 : vector<8x16xbf16> to vector<1x8x16xbf16>
    %106 = vector.extract_strided_slice %4 {offsets = [0, 112], sizes = [8, 16], strides = [1, 1]} : vector<8x192xf32> to vector<8x16xf32>
    %107 = arith.truncf %106 : vector<8x16xf32> to vector<8x16xbf16>
    %108 = vector.shape_cast %107 : vector<8x16xbf16> to vector<1x8x16xbf16>
    %109 = vector.extract_strided_slice %4 {offsets = [0, 176], sizes = [8, 16], strides = [1, 1]} : vector<8x192xf32> to vector<8x16xf32>
    %110 = arith.truncf %109 : vector<8x16xf32> to vector<8x16xbf16>
    %111 = vector.shape_cast %110 : vector<8x16xbf16> to vector<1x8x16xbf16>
    "tpu.trace_start"() <{level = 10 : i32, message = "bqd,bkd->bqk"}> : () -> ()
    %cst_29 = arith.constant dense<0.000000e+00> : vector<1x8x8xf32>
    %112 = tpu.matmul %105, %108, %cst_29 {dimension_numbers = #tpu.dot_dimension_numbers<[2], [2], [1], [1], [0, 0, 0, 1, 1, 1], [0], [0]>} : vector<1x8x16xbf16>, vector<1x8x16xbf16>, vector<1x8x8xf32> -> vector<1x8x8xf32>
    %cst_30 = arith.constant -1.000000e+09 : f32
    "tpu.trace_stop"() : () -> ()
    %113 = vector.broadcast %cst_30 : f32 to vector<1x8x8xf32>
    %114 = arith.select %13, %112, %113 : vector<1x8x8xi1>, vector<1x8x8xf32>
    %cst_31 = arith.constant dense<0xFF800000> : vector<1x8xf32>
    %115 = vector.multi_reduction <maximumf>, %114, %cst_31 [2] : vector<1x8x8xf32> to vector<1x8xf32>
    %116 = vector.shape_cast %115 : vector<1x8xf32> to vector<1x8x1xf32>
    %117 = vector.broadcast %116 : vector<1x8x1xf32> to vector<1x8x8xf32>
    %118 = arith.subf %114, %117 : vector<1x8x8xf32>
    %119 = math.exp %118 : vector<1x8x8xf32>
    %cst_32 = arith.constant dense<0.000000e+00> : vector<1x8xf32>
    %120 = vector.multi_reduction <add>, %119, %cst_32 [2] : vector<1x8x8xf32> to vector<1x8xf32>
    %121 = vector.shape_cast %120 : vector<1x8xf32> to vector<1x8x1xf32>
    %122 = tpu.reciprocal %121 {approx = true} : vector<1x8x1xf32> -> vector<1x8x1xf32>
    %123 = vector.broadcast %122 : vector<1x8x1xf32> to vector<1x8x8xf32>
    %124 = arith.mulf %119, %123 : vector<1x8x8xf32>
    %125 = arith.truncf %124 : vector<1x8x8xf32> to vector<1x8x8xbf16>
    "tpu.trace_start"() <{level = 10 : i32, message = "bqk,bkd->bqd"}> : () -> ()
    %cst_33 = arith.constant dense<0.000000e+00> : vector<1x8x16xf32>
    %126 = tpu.matmul %125, %111, %cst_33 {dimension_numbers = #tpu.dot_dimension_numbers<[2], [1], [1], [2], [0, 0, 0, 1, 1, 2], [0], [0]>} : vector<1x8x8xbf16>, vector<1x8x16xbf16>, vector<1x8x16xf32> -> vector<1x8x16xf32>
    "tpu.trace_stop"() : () -> ()
    %127 = vector.shape_cast %126 : vector<1x8x16xf32> to vector<8x16xf32>
    %128 = arith.truncf %127 : vector<8x16xf32> to vector<8x16xbf16>
    %129 = vector.extract_strided_slice %14 {offsets = [48, 0], sizes = [16, 64], strides = [1, 1]} : vector<64x64xbf16> to vector<16x64xbf16>
    %cst_34 = arith.constant dense<0.000000e+00> : vector<8x64xf32>
    %130 = tpu.matmul %128, %129, %cst_34 {dimension_numbers = #tpu.dot_dimension_numbers<[1], [0], [0], [1], [0, 0, 1, 1], [], []>} : vector<8x16xbf16>, vector<16x64xbf16>, vector<8x64xf32> -> vector<8x64xf32>
    %131 = arith.addf %102, %130 : vector<8x64xf32>
    %132 = arith.addf %1, %131 : vector<8x64xf32>
    %c0_35 = arith.constant 0 : index
    %c0_36 = arith.constant 0 : index
    %133 = vector.load %arg5[%c0_35, %c0_36] : memref<1x64xf32, #tpu.memory_space<vmem>>, vector<1x64xf32>
    %134 = vector.broadcast %133 : vector<1x64xf32> to vector<8x64xf32>
    %135 = arith.addf %132, %134 : vector<8x64xf32>
    %c0_37 = arith.constant 0 : index
    %c0_38 = arith.constant 0 : index
    %136 = vector.load %arg6[%c0_37, %c0_38] : memref<1x64xf32, #tpu.memory_space<vmem>>, vector<1x64xf32>
    %c0_39 = arith.constant 0 : index
    %c0_40 = arith.constant 0 : index
    %137 = vector.load %arg7[%c0_39, %c0_40] : memref<1x64xf32, #tpu.memory_space<vmem>>, vector<1x64xf32>
    %cst_41 = arith.constant dense<0.000000e+00> : vector<8xf32>
    %138 = vector.multi_reduction <add>, %135, %cst_41 [1] : vector<8x64xf32> to vector<8xf32>
    %139 = vector.shape_cast %138 : vector<8xf32> to vector<8x1xf32>
    %cst_42 = arith.constant 6.400000e+01 : f32
    %140 = vector.broadcast %cst_42 : f32 to vector<8x1xf32>
    %141 = arith.divf %139, %140 : vector<8x1xf32>
    %142 = vector.broadcast %141 : vector<8x1xf32> to vector<8x64xf32>
    %143 = arith.subf %135, %142 : vector<8x64xf32>
    %144 = arith.mulf %143, %143 : vector<8x64xf32>
    %cst_43 = arith.constant dense<0.000000e+00> : vector<8xf32>
    %145 = vector.multi_reduction <add>, %144, %cst_43 [1] : vector<8x64xf32> to vector<8xf32>
    %146 = vector.shape_cast %145 : vector<8xf32> to vector<8x1xf32>
    %cst_44 = arith.constant 6.400000e+01 : f32
    %147 = vector.broadcast %cst_44 : f32 to vector<8x1xf32>
    %148 = arith.divf %146, %147 : vector<8x1xf32>
    %149 = vector.broadcast %141 : vector<8x1xf32> to vector<8x64xf32>
    %150 = arith.subf %135, %149 : vector<8x64xf32>
    %cst_45 = arith.constant 9.99999974E-6 : f32
    %151 = vector.broadcast %cst_45 : f32 to vector<8x1xf32>
    %152 = arith.addf %148, %151 : vector<8x1xf32>
    %153 = math.rsqrt %152 : vector<8x1xf32>
    %154 = vector.broadcast %153 : vector<8x1xf32> to vector<8x64xf32>
    %155 = arith.mulf %150, %154 : vector<8x64xf32>
    %156 = vector.broadcast %136 : vector<1x64xf32> to vector<8x64xf32>
    %157 = arith.mulf %155, %156 : vector<8x64xf32>
    %158 = vector.broadcast %137 : vector<1x64xf32> to vector<8x64xf32>
    %159 = arith.addf %157, %158 : vector<8x64xf32>
    %160 = arith.truncf %159 : vector<8x64xf32> to vector<8x64xbf16>
    %c0_46 = arith.constant 0 : index
    %c0_47 = arith.constant 0 : index
    %161 = vector.load %arg8[%c0_46, %c0_47] : memref<64x128xbf16, #tpu.memory_space<vmem>>, vector<64x128xbf16>
    %cst_48 = arith.constant dense<0.000000e+00> : vector<8x128xf32>
    %162 = tpu.matmul %160, %161, %cst_48 {dimension_numbers = #tpu.dot_dimension_numbers<[1], [0], [0], [1], [0, 0, 1, 1], [], []>} : vector<8x64xbf16>, vector<64x128xbf16>, vector<8x128xf32> -> vector<8x128xf32>
    %c0_49 = arith.constant 0 : index
    %c0_50 = arith.constant 0 : index
    %163 = vector.load %arg9[%c0_49, %c0_50] : memref<1x128xf32, #tpu.memory_space<vmem>>, vector<1x128xf32>
    %164 = vector.broadcast %163 : vector<1x128xf32> to vector<8x128xf32>
    %165 = arith.addf %162, %164 : vector<8x128xf32>
    %cst_51 = arith.constant 5.000000e-01 : f32
    %166 = vector.broadcast %cst_51 : f32 to vector<8x128xf32>
    %167 = arith.mulf %166, %165 : vector<8x128xf32>
    %cst_52 = arith.constant 4.471500e-02 : f32
    %168 = vector.broadcast %cst_52 : f32 to vector<8x128xf32>
    %169 = arith.mulf %168, %165 : vector<8x128xf32>
    %170 = arith.mulf %169, %165 : vector<8x128xf32>
    %171 = arith.mulf %170, %165 : vector<8x128xf32>
    %172 = arith.addf %165, %171 : vector<8x128xf32>
    %cst_53 = arith.constant 0.797884583 : f32
    %173 = vector.broadcast %cst_53 : f32 to vector<8x128xf32>
    %174 = arith.mulf %173, %172 : vector<8x128xf32>
    %175 = math.tanh %174 : vector<8x128xf32>
    %cst_54 = arith.constant 1.000000e+00 : f32
    %176 = vector.broadcast %cst_54 : f32 to vector<8x128xf32>
    %177 = arith.addf %176, %175 : vector<8x128xf32>
    %178 = arith.mulf %167, %177 : vector<8x128xf32>
    %179 = arith.truncf %178 : vector<8x128xf32> to vector<8x128xbf16>
    %c0_55 = arith.constant 0 : index
    %c0_56 = arith.constant 0 : index
    %180 = vector.load %arg10[%c0_55, %c0_56] : memref<128x64xbf16, #tpu.memory_space<vmem>>, vector<128x64xbf16>
    %cst_57 = arith.constant dense<0.000000e+00> : vector<8x64xf32>
    %181 = tpu.matmul %179, %180, %cst_57 {dimension_numbers = #tpu.dot_dimension_numbers<[1], [0], [0], [1], [0, 0, 1, 1], [], []>} : vector<8x128xbf16>, vector<128x64xbf16>, vector<8x64xf32> -> vector<8x64xf32>
    %c0_58 = arith.constant 0 : index
    %c0_59 = arith.constant 0 : index
    %182 = vector.load %arg11[%c0_58, %c0_59] : memref<1x64xf32, #tpu.memory_space<vmem>>, vector<1x64xf32>
    %183 = vector.broadcast %182 : vector<1x64xf32> to vector<8x64xf32>
    %184 = arith.addf %181, %183 : vector<8x64xf32>
    %185 = arith.addf %159, %184 : vector<8x64xf32>
    %c0_60 = arith.constant 0 : index
    %c0_61 = arith.constant 0 : index
    %186 = vector.load %arg12[%c0_60, %c0_61] : memref<1x64xf32, #tpu.memory_space<vmem>>, vector<1x64xf32>
    %c0_62 = arith.constant 0 : index
    %c0_63 = arith.constant 0 : index
    %187 = vector.load %arg13[%c0_62, %c0_63] : memref<1x64xf32, #tpu.memory_space<vmem>>, vector<1x64xf32>
    %cst_64 = arith.constant dense<0.000000e+00> : vector<8xf32>
    %188 = vector.multi_reduction <add>, %185, %cst_64 [1] : vector<8x64xf32> to vector<8xf32>
    %189 = vector.shape_cast %188 : vector<8xf32> to vector<8x1xf32>
    %cst_65 = arith.constant 6.400000e+01 : f32
    %190 = vector.broadcast %cst_65 : f32 to vector<8x1xf32>
    %191 = arith.divf %189, %190 : vector<8x1xf32>
    %192 = vector.broadcast %191 : vector<8x1xf32> to vector<8x64xf32>
    %193 = arith.subf %185, %192 : vector<8x64xf32>
    %194 = arith.mulf %193, %193 : vector<8x64xf32>
    %cst_66 = arith.constant dense<0.000000e+00> : vector<8xf32>
    %195 = vector.multi_reduction <add>, %194, %cst_66 [1] : vector<8x64xf32> to vector<8xf32>
    %196 = vector.shape_cast %195 : vector<8xf32> to vector<8x1xf32>
    %cst_67 = arith.constant 6.400000e+01 : f32
    %197 = vector.broadcast %cst_67 : f32 to vector<8x1xf32>
    %198 = arith.divf %196, %197 : vector<8x1xf32>
    %199 = vector.broadcast %191 : vector<8x1xf32> to vector<8x64xf32>
    %200 = arith.subf %185, %199 : vector<8x64xf32>
    %cst_68 = arith.constant 9.99999974E-6 : f32
    %201 = vector.broadcast %cst_68 : f32 to vector<8x1xf32>
    %202 = arith.addf %198, %201 : vector<8x1xf32>
    %203 = math.rsqrt %202 : vector<8x1xf32>
    %204 = vector.broadcast %203 : vector<8x1xf32> to vector<8x64xf32>
    %205 = arith.mulf %200, %204 : vector<8x64xf32>
    %206 = vector.broadcast %186 : vector<1x64xf32> to vector<8x64xf32>
    %207 = arith.mulf %205, %206 : vector<8x64xf32>
    %208 = vector.broadcast %187 : vector<1x64xf32> to vector<8x64xf32>
    %209 = arith.addf %207, %208 : vector<8x64xf32>
    %210 = vector.shape_cast %209 : vector<8x64xf32> to vector<1x8x64xf32>
    %c0_69 = arith.constant 0 : index
    %c0_70 = arith.constant 0 : index
    %c0_71 = arith.constant 0 : index
    %211 = vector.load %arg14[%c0_69, %c0_70, %c0_71] : memref<1x8x64xf32, #tpu.memory_space<vmem>>, vector<1x8x64xf32>
    tpu.vector_store %arg14[%c0_69, %c0_70, %c0_71], %210 {strides = array<i32>} : memref<1x8x64xf32, #tpu.memory_space<vmem>>, vector<1x8x64xf32>,
    return
  }
  func.func @transform_0(%arg0: i32) -> (i32, i32, i32) {
    %c0_i32 = arith.constant 0 : i32
    %c0_i32_0 = arith.constant 0 : i32
    %c0_i32_1 = arith.constant 0 : i32
    return %arg0, %c0_i32, %c0_i32_0 : i32, i32, i32
  }
  func.func @transform_1(%arg0: i32) -> (i32, i32, i32) {
    %c0_i32 = arith.constant 0 : i32
    %c0_i32_0 = arith.constant 0 : i32
    %c0_i32_1 = arith.constant 0 : i32
    return %arg0, %c0_i32, %c0_i32_0 : i32, i32, i32
  }
  func.func @transform_2(%arg0: i32) -> (i32, i32) {
    %c0_i32 = arith.constant 0 : i32
    %c0_i32_0 = arith.constant 0 : i32
    %c0_i32_1 = arith.constant 0 : i32
    return %c0_i32, %c0_i32_0 : i32, i32
  }
  func.func @transform_3(%arg0: i32) -> (i32, i32) {
    %c0_i32 = arith.constant 0 : i32
    %c0_i32_0 = arith.constant 0 : i32
    %c0_i32_1 = arith.constant 0 : i32
    return %c0_i32, %c0_i32_0 : i32, i32
  }
  func.func @transform_4(%arg0: i32) -> (i32, i32) {
    %c0_i32 = arith.constant 0 : i32
    %c0_i32_0 = arith.constant 0 : i32
    %c0_i32_1 = arith.constant 0 : i32
    return %c0_i32, %c0_i32_0 : i32, i32
  }
  func.func @transform_5(%arg0: i32) -> (i32, i32) {
    %c0_i32 = arith.constant 0 : i32
    %c0_i32_0 = arith.constant 0 : i32
    %c0_i32_1 = arith.constant 0 : i32
    return %c0_i32, %c0_i32_0 : i32, i32
  }
  func.func @transform_6(%arg0: i32) -> (i32, i32) {
    %c0_i32 = arith.constant 0 : i32
    %c0_i32_0 = arith.constant 0 : i32
    %c0_i32_1 = arith.constant 0 : i32
    return %c0_i32, %c0_i32_0 : i32, i32
  }
  func.func @transform_7(%arg0: i32) -> (i32, i32) {
    %c0_i32 = arith.constant 0 : i32
    %c0_i32_0 = arith.constant 0 : i32
    %c0_i32_1 = arith.constant 0 : i32
    return %c0_i32, %c0_i32_0 : i32, i32
  }
  func.func @transform_8(%arg0: i32) -> (i32, i32) {
    %c0_i32 = arith.constant 0 : i32
    %c0_i32_0 = arith.constant 0 : i32
    %c0_i32_1 = arith.constant 0 : i32
    return %c0_i32, %c0_i32_0 : i32, i32
  }
  func.func @transform_9(%arg0: i32) -> (i32, i32) {
    %c0_i32 = arith.constant 0 : i32
    %c0_i32_0 = arith.constant 0 : i32
    %c0_i32_1 = arith.constant 0 : i32
    return %c0_i32, %c0_i32_0 : i32, i32
  }
  func.func @transform_10(%arg0: i32) -> (i32, i32) {
    %c0_i32 = arith.constant 0 : i32
    %c0_i32_0 = arith.constant 0 : i32
    %c0_i32_1 = arith.constant 0 : i32
    return %c0_i32, %c0_i32_0 : i32, i32
  }
  func.func @transform_11(%arg0: i32) -> (i32, i32) {
    %c0_i32 = arith.constant 0 : i32
    %c0_i32_0 = arith.constant 0 : i32
    %c0_i32_1 = arith.constant 0 : i32
    return %c0_i32, %c0_i32_0 : i32, i32
  }
  func.func @transform_12(%arg0: i32) -> (i32, i32) {
    %c0_i32 = arith.constant 0 : i32
    %c0_i32_0 = arith.constant 0 : i32
    %c0_i32_1 = arith.constant 0 : i32
    return %c0_i32, %c0_i32_0 : i32, i32
  }
  func.func @transform_13(%arg0: i32) -> (i32, i32, i32) {
    %c0_i32 = arith.constant 0 : i32
    %c0_i32_0 = arith.constant 0 : i32
    %c0_i32_1 = arith.constant 0 : i32
    return %arg0, %c0_i32, %c0_i32_0 : i32, i32, i32
  }
}

module attributes {stable_mosaic.version = 11 : i64} {
  func.func @_fusion_kernel(%arg0: i32, %arg1: memref<1x8x80xf32, #tpu.memory_space<vmem>>, %arg2: memref<1x8x64xf32, #tpu.memory_space<vmem>>, %arg3: memref<80x64xbf16, #tpu.memory_space<vmem>>, %arg4: memref<1x64xf32, #tpu.memory_space<vmem>>, %arg5: memref<1x64xf32, #tpu.memory_space<vmem>>, %arg6: memref<1x64xf32, #tpu.memory_space<vmem>>, %arg7: memref<1x8x64xf32, #tpu.memory_space<vmem>>) attributes {dimension_semantics = [#tpu.dimension_semantics<parallel>], iteration_bounds = array<i64: 2>, scalar_prefetch = 0 : i64, scratch_operands = 0 : i64, tpu.core_type = #tpu.core_type<tc>, window_params = [{transform_indices = @transform_0, window_bounds = array<i64: 1, 8, 80>}, {pipeline_mode = #tpu.pipeline_mode<synchronous>, transform_indices = @transform_1, window_bounds = array<i64: 1, 8, 64>}, {pipeline_mode = #tpu.pipeline_mode<synchronous>, transform_indices = @transform_2, window_bounds = array<i64: 80, 64>}, {pipeline_mode = #tpu.pipeline_mode<synchronous>, transform_indices = @transform_3, window_bounds = array<i64: 1, 64>}, {pipeline_mode = #tpu.pipeline_mode<synchronous>, transform_indices = @transform_4, window_bounds = array<i64: 1, 64>}, {pipeline_mode = #tpu.pipeline_mode<synchronous>, transform_indices = @transform_5, window_bounds = array<i64: 1, 64>}, {transform_indices = @transform_6, window_bounds = array<i64: 1, 8, 64>}]} {
    %c0 = arith.constant 0 : index
    %c0_0 = arith.constant 0 : index
    %c0_1 = arith.constant 0 : index
    %0 = vector.load %arg1[%c0, %c0_0, %c0_1] : memref<1x8x80xf32, #tpu.memory_space<vmem>>, vector<1x8x80xf32>
    %1 = vector.shape_cast %0 : vector<1x8x80xf32> to vector<8x80xf32>
    %2 = arith.truncf %1 : vector<8x80xf32> to vector<8x80xbf16>
    %c0_2 = arith.constant 0 : index
    %c0_3 = arith.constant 0 : index
    %3 = vector.load %arg3[%c0_2, %c0_3] : memref<80x64xbf16, #tpu.memory_space<vmem>>, vector<80x64xbf16>
    %cst = arith.constant dense<0.000000e+00> : vector<8x64xf32>
    %4 = tpu.matmul %2, %3, %cst {dimension_numbers = #tpu.dot_dimension_numbers<[1], [0], [0], [1], [0, 0, 1, 1], [], []>} : vector<8x80xbf16>, vector<80x64xbf16>, vector<8x64xf32> -> vector<8x64xf32>
    %c0_4 = arith.constant 0 : index
    %c0_5 = arith.constant 0 : index
    %5 = vector.load %arg4[%c0_4, %c0_5] : memref<1x64xf32, #tpu.memory_space<vmem>>, vector<1x64xf32>
    %6 = vector.broadcast %5 : vector<1x64xf32> to vector<8x64xf32>
    %7 = arith.addf %4, %6 : vector<8x64xf32>
    %cst_6 = arith.constant 5.000000e-01 : f32
    %8 = vector.broadcast %cst_6 : f32 to vector<8x64xf32>
    %9 = arith.mulf %8, %7 : vector<8x64xf32>
    %cst_7 = arith.constant 4.471500e-02 : f32
    %10 = vector.broadcast %cst_7 : f32 to vector<8x64xf32>
    %11 = arith.mulf %10, %7 : vector<8x64xf32>
    %12 = arith.mulf %11, %7 : vector<8x64xf32>
    %13 = arith.mulf %12, %7 : vector<8x64xf32>
    %14 = arith.addf %7, %13 : vector<8x64xf32>
    %cst_8 = arith.constant 0.797884583 : f32
    %15 = vector.broadcast %cst_8 : f32 to vector<8x64xf32>
    %16 = arith.mulf %15, %14 : vector<8x64xf32>
    %17 = math.tanh %16 : vector<8x64xf32>
    %cst_9 = arith.constant 1.000000e+00 : f32
    %18 = vector.broadcast %cst_9 : f32 to vector<8x64xf32>
    %19 = arith.addf %18, %17 : vector<8x64xf32>
    %20 = arith.mulf %9, %19 : vector<8x64xf32>
    %c0_10 = arith.constant 0 : index
    %c0_11 = arith.constant 0 : index
    %21 = vector.load %arg5[%c0_10, %c0_11] : memref<1x64xf32, #tpu.memory_space<vmem>>, vector<1x64xf32>
    %c0_12 = arith.constant 0 : index
    %c0_13 = arith.constant 0 : index
    %22 = vector.load %arg6[%c0_12, %c0_13] : memref<1x64xf32, #tpu.memory_space<vmem>>, vector<1x64xf32>
    %cst_14 = arith.constant dense<0.000000e+00> : vector<8xf32>
    %23 = vector.multi_reduction <add>, %20, %cst_14 [1] : vector<8x64xf32> to vector<8xf32>
    %24 = vector.shape_cast %23 : vector<8xf32> to vector<8x1xf32>
    %cst_15 = arith.constant 6.400000e+01 : f32
    %25 = vector.broadcast %cst_15 : f32 to vector<8x1xf32>
    %26 = arith.divf %24, %25 : vector<8x1xf32>
    %27 = vector.broadcast %26 : vector<8x1xf32> to vector<8x64xf32>
    %28 = arith.subf %20, %27 : vector<8x64xf32>
    %29 = arith.mulf %28, %28 : vector<8x64xf32>
    %cst_16 = arith.constant dense<0.000000e+00> : vector<8xf32>
    %30 = vector.multi_reduction <add>, %29, %cst_16 [1] : vector<8x64xf32> to vector<8xf32>
    %31 = vector.shape_cast %30 : vector<8xf32> to vector<8x1xf32>
    %cst_17 = arith.constant 6.400000e+01 : f32
    %32 = vector.broadcast %cst_17 : f32 to vector<8x1xf32>
    %33 = arith.divf %31, %32 : vector<8x1xf32>
    %34 = vector.broadcast %26 : vector<8x1xf32> to vector<8x64xf32>
    %35 = arith.subf %20, %34 : vector<8x64xf32>
    %cst_18 = arith.constant 9.99999974E-6 : f32
    %36 = vector.broadcast %cst_18 : f32 to vector<8x1xf32>
    %37 = arith.addf %33, %36 : vector<8x1xf32>
    %38 = math.rsqrt %37 : vector<8x1xf32>
    %39 = vector.broadcast %38 : vector<8x1xf32> to vector<8x64xf32>
    %40 = arith.mulf %35, %39 : vector<8x64xf32>
    %41 = vector.broadcast %21 : vector<1x64xf32> to vector<8x64xf32>
    %42 = arith.mulf %40, %41 : vector<8x64xf32>
    %43 = vector.broadcast %22 : vector<1x64xf32> to vector<8x64xf32>
    %44 = arith.addf %42, %43 : vector<8x64xf32>
    %45 = vector.shape_cast %44 : vector<8x64xf32> to vector<1x8x64xf32>
    %c0_19 = arith.constant 0 : index
    %c0_20 = arith.constant 0 : index
    %c0_21 = arith.constant 0 : index
    %46 = vector.load %arg2[%c0_19, %c0_20, %c0_21] : memref<1x8x64xf32, #tpu.memory_space<vmem>>, vector<1x8x64xf32>
    %47 = arith.addf %45, %46 : vector<1x8x64xf32>
    %c0_22 = arith.constant 0 : index
    %c0_23 = arith.constant 0 : index
    %c0_24 = arith.constant 0 : index
    %48 = vector.load %arg7[%c0_22, %c0_23, %c0_24] : memref<1x8x64xf32, #tpu.memory_space<vmem>>, vector<1x8x64xf32>
    tpu.vector_store %arg7[%c0_22, %c0_23, %c0_24], %47 {strides = array<i32>} : memref<1x8x64xf32, #tpu.memory_space<vmem>>, vector<1x8x64xf32>,
    return
  }
  func.func @transform_0(%arg0: i32) -> (i32, i32, i32) {
    %c0_i32 = arith.constant 0 : i32
    %c0_i32_0 = arith.constant 0 : i32
    %c0_i32_1 = arith.constant 0 : i32
    return %arg0, %c0_i32, %c0_i32_0 : i32, i32, i32
  }
  func.func @transform_1(%arg0: i32) -> (i32, i32, i32) {
    %c0_i32 = arith.constant 0 : i32
    %c0_i32_0 = arith.constant 0 : i32
    %c0_i32_1 = arith.constant 0 : i32
    %c0_i32_2 = arith.constant 0 : i32
    return %c0_i32, %c0_i32_0, %c0_i32_1 : i32, i32, i32
  }
  func.func @transform_2(%arg0: i32) -> (i32, i32) {
    %c0_i32 = arith.constant 0 : i32
    %c0_i32_0 = arith.constant 0 : i32
    %c0_i32_1 = arith.constant 0 : i32
    return %c0_i32, %c0_i32_0 : i32, i32
  }
  func.func @transform_3(%arg0: i32) -> (i32, i32) {
    %c0_i32 = arith.constant 0 : i32
    %c0_i32_0 = arith.constant 0 : i32
    %c0_i32_1 = arith.constant 0 : i32
    return %c0_i32, %c0_i32_0 : i32, i32
  }
  func.func @transform_4(%arg0: i32) -> (i32, i32) {
    %c0_i32 = arith.constant 0 : i32
    %c0_i32_0 = arith.constant 0 : i32
    %c0_i32_1 = arith.constant 0 : i32
    return %c0_i32, %c0_i32_0 : i32, i32
  }
  func.func @transform_5(%arg0: i32) -> (i32, i32) {
    %c0_i32 = arith.constant 0 : i32
    %c0_i32_0 = arith.constant 0 : i32
    %c0_i32_1 = arith.constant 0 : i32
    return %c0_i32, %c0_i32_0 : i32, i32
  }
  func.func @transform_6(%arg0: i32) -> (i32, i32, i32) {
    %c0_i32 = arith.constant 0 : i32
    %c0_i32_0 = arith.constant 0 : i32
    %c0_i32_1 = arith.constant 0 : i32
    return %arg0, %c0_i32, %c0_i32_0 : i32, i32, i32
  }
}

module attributes {stable_mosaic.version = 11 : i64} {
  func.func @_vocab_kernel(%arg0: i32, %arg1: i32, %arg2: memref<8x64xf32, #tpu.memory_space<vmem>>, %arg3: memref<64x128xbf16, #tpu.memory_space<vmem>>, %arg4: memref<1x128xf32, #tpu.memory_space<vmem>>, %arg5: memref<8x128xf32, #tpu.memory_space<vmem>>) attributes {dimension_semantics = [#tpu.dimension_semantics<parallel>, #tpu.dimension_semantics<parallel>], iteration_bounds = array<i64: 1, 2>, scalar_prefetch = 0 : i64, scratch_operands = 0 : i64, tpu.core_type = #tpu.core_type<tc>, window_params = [{transform_indices = @transform_0, window_bounds = array<i64: 8, 64>}, {transform_indices = @transform_1, window_bounds = array<i64: 64, 128>}, {transform_indices = @transform_2, window_bounds = array<i64: 1, 128>}, {transform_indices = @transform_3, window_bounds = array<i64: 8, 128>}]} {
    %c0 = arith.constant 0 : index
    %c0_0 = arith.constant 0 : index
    %0 = vector.load %arg2[%c0, %c0_0] : memref<8x64xf32, #tpu.memory_space<vmem>>, vector<8x64xf32>
    %1 = arith.truncf %0 : vector<8x64xf32> to vector<8x64xbf16>
    %c0_1 = arith.constant 0 : index
    %c0_2 = arith.constant 0 : index
    %2 = vector.load %arg3[%c0_1, %c0_2] : memref<64x128xbf16, #tpu.memory_space<vmem>>, vector<64x128xbf16>
    %cst = arith.constant dense<0.000000e+00> : vector<8x128xf32>
    %3 = tpu.matmul %1, %2, %cst {dimension_numbers = #tpu.dot_dimension_numbers<[1], [0], [0], [1], [0, 0, 1, 1], [], []>} : vector<8x64xbf16>, vector<64x128xbf16>, vector<8x128xf32> -> vector<8x128xf32>
    %c0_3 = arith.constant 0 : index
    %c0_4 = arith.constant 0 : index
    %4 = vector.load %arg4[%c0_3, %c0_4] : memref<1x128xf32, #tpu.memory_space<vmem>>, vector<1x128xf32>
    %5 = vector.broadcast %4 : vector<1x128xf32> to vector<8x128xf32>
    %6 = arith.addf %3, %5 : vector<8x128xf32>
    %c0_5 = arith.constant 0 : index
    %c0_6 = arith.constant 0 : index
    %7 = vector.load %arg5[%c0_5, %c0_6] : memref<8x128xf32, #tpu.memory_space<vmem>>, vector<8x128xf32>
    tpu.vector_store %arg5[%c0_5, %c0_6], %6 {strides = array<i32>} : memref<8x128xf32, #tpu.memory_space<vmem>>, vector<8x128xf32>,
    return
  }
  func.func @transform_0(%arg0: i32, %arg1: i32) -> (i32, i32) {
    %c0_i32 = arith.constant 0 : i32
    %c0_i32_0 = arith.constant 0 : i32
    return %arg1, %c0_i32 : i32, i32
  }
  func.func @transform_1(%arg0: i32, %arg1: i32) -> (i32, i32) {
    %c0_i32 = arith.constant 0 : i32
    %c0_i32_0 = arith.constant 0 : i32
    return %c0_i32, %arg0 : i32, i32
  }
  func.func @transform_2(%arg0: i32, %arg1: i32) -> (i32, i32) {
    %c0_i32 = arith.constant 0 : i32
    %c0_i32_0 = arith.constant 0 : i32
    return %c0_i32, %arg0 : i32, i32
  }
  func.func @transform_3(%arg0: i32, %arg1: i32) -> (i32, i32) {
    %c0_i32 = arith.constant 0 : i32
    return %arg1, %arg0 : i32, i32
  }
}

module attributes {stable_mosaic.version = 11 : i64} {
  func.func @_final_heads_kernel(%arg0: i32, %arg1: memref<8x64xf32, #tpu.memory_space<vmem>>, %arg2: memref<1x64xf32, #tpu.memory_space<vmem>>, %arg3: memref<1x64xf32, #tpu.memory_space<vmem>>, %arg4: memref<64x96xbf16, #tpu.memory_space<vmem>>, %arg5: memref<1x96xf32, #tpu.memory_space<vmem>>, %arg6: memref<96x128xbf16, #tpu.memory_space<vmem>>, %arg7: memref<1x128xf32, #tpu.memory_space<vmem>>, %arg8: memref<8x64xf32, #tpu.memory_space<vmem>>, %arg9: memref<8x128xf32, #tpu.memory_space<vmem>>) attributes {dimension_semantics = [#tpu.dimension_semantics<parallel>], iteration_bounds = array<i64: 2>, scalar_prefetch = 0 : i64, scratch_operands = 0 : i64, tpu.core_type = #tpu.core_type<tc>, window_params = [{transform_indices = @transform_0, window_bounds = array<i64: 8, 64>}, {pipeline_mode = #tpu.pipeline_mode<synchronous>, transform_indices = @transform_1, window_bounds = array<i64: 1, 64>}, {pipeline_mode = #tpu.pipeline_mode<synchronous>, transform_indices = @transform_2, window_bounds = array<i64: 1, 64>}, {pipeline_mode = #tpu.pipeline_mode<synchronous>, transform_indices = @transform_3, window_bounds = array<i64: 64, 96>}, {pipeline_mode = #tpu.pipeline_mode<synchronous>, transform_indices = @transform_4, window_bounds = array<i64: 1, 96>}, {pipeline_mode = #tpu.pipeline_mode<synchronous>, transform_indices = @transform_5, window_bounds = array<i64: 96, 128>}, {pipeline_mode = #tpu.pipeline_mode<synchronous>, transform_indices = @transform_6, window_bounds = array<i64: 1, 128>}, {transform_indices = @transform_7, window_bounds = array<i64: 8, 64>}, {transform_indices = @transform_8, window_bounds = array<i64: 8, 128>}]} {
    %c0 = arith.constant 0 : index
    %c0_0 = arith.constant 0 : index
    %0 = vector.load %arg1[%c0, %c0_0] : memref<8x64xf32, #tpu.memory_space<vmem>>, vector<8x64xf32>
    %c0_1 = arith.constant 0 : index
    %c0_2 = arith.constant 0 : index
    %1 = vector.load %arg2[%c0_1, %c0_2] : memref<1x64xf32, #tpu.memory_space<vmem>>, vector<1x64xf32>
    %c0_3 = arith.constant 0 : index
    %c0_4 = arith.constant 0 : index
    %2 = vector.load %arg3[%c0_3, %c0_4] : memref<1x64xf32, #tpu.memory_space<vmem>>, vector<1x64xf32>
    %cst = arith.constant dense<0.000000e+00> : vector<8xf32>
    %3 = vector.multi_reduction <add>, %0, %cst [1] : vector<8x64xf32> to vector<8xf32>
    %4 = vector.shape_cast %3 : vector<8xf32> to vector<8x1xf32>
    %cst_5 = arith.constant 6.400000e+01 : f32
    %5 = vector.broadcast %cst_5 : f32 to vector<8x1xf32>
    %6 = arith.divf %4, %5 : vector<8x1xf32>
    %7 = vector.broadcast %6 : vector<8x1xf32> to vector<8x64xf32>
    %8 = arith.subf %0, %7 : vector<8x64xf32>
    %9 = arith.mulf %8, %8 : vector<8x64xf32>
    %cst_6 = arith.constant dense<0.000000e+00> : vector<8xf32>
    %10 = vector.multi_reduction <add>, %9, %cst_6 [1] : vector<8x64xf32> to vector<8xf32>
    %11 = vector.shape_cast %10 : vector<8xf32> to vector<8x1xf32>
    %cst_7 = arith.constant 6.400000e+01 : f32
    %12 = vector.broadcast %cst_7 : f32 to vector<8x1xf32>
    %13 = arith.divf %11, %12 : vector<8x1xf32>
    %14 = vector.broadcast %6 : vector<8x1xf32> to vector<8x64xf32>
    %15 = arith.subf %0, %14 : vector<8x64xf32>
    %cst_8 = arith.constant 9.99999974E-6 : f32
    %16 = vector.broadcast %cst_8 : f32 to vector<8x1xf32>
    %17 = arith.addf %13, %16 : vector<8x1xf32>
    %18 = math.rsqrt %17 : vector<8x1xf32>
    %19 = vector.broadcast %18 : vector<8x1xf32> to vector<8x64xf32>
    %20 = arith.mulf %15, %19 : vector<8x64xf32>
    %21 = vector.broadcast %1 : vector<1x64xf32> to vector<8x64xf32>
    %22 = arith.mulf %20, %21 : vector<8x64xf32>
    %23 = vector.broadcast %2 : vector<1x64xf32> to vector<8x64xf32>
    %24 = arith.addf %22, %23 : vector<8x64xf32>
    %c0_9 = arith.constant 0 : index
    %c0_10 = arith.constant 0 : index
    %25 = vector.load %arg8[%c0_9, %c0_10] : memref<8x64xf32, #tpu.memory_space<vmem>>, vector<8x64xf32>
    tpu.vector_store %arg8[%c0_9, %c0_10], %24 {strides = array<i32>} : memref<8x64xf32, #tpu.memory_space<vmem>>, vector<8x64xf32>,
    %26 = arith.truncf %24 : vector<8x64xf32> to vector<8x64xbf16>
    %c0_11 = arith.constant 0 : index
    %c0_12 = arith.constant 0 : index
    %27 = vector.load %arg4[%c0_11, %c0_12] : memref<64x96xbf16, #tpu.memory_space<vmem>>, vector<64x96xbf16>
    %cst_13 = arith.constant dense<0.000000e+00> : vector<8x96xf32>
    %28 = tpu.matmul %26, %27, %cst_13 {dimension_numbers = #tpu.dot_dimension_numbers<[1], [0], [0], [1], [0, 0, 1, 1], [], []>} : vector<8x64xbf16>, vector<64x96xbf16>, vector<8x96xf32> -> vector<8x96xf32>
    %c0_14 = arith.constant 0 : index
    %c0_15 = arith.constant 0 : index
    %29 = vector.load %arg5[%c0_14, %c0_15] : memref<1x96xf32, #tpu.memory_space<vmem>>, vector<1x96xf32>
    %30 = vector.broadcast %29 : vector<1x96xf32> to vector<8x96xf32>
    %31 = arith.addf %28, %30 : vector<8x96xf32>
    %cst_16 = arith.constant 5.000000e-01 : f32
    %32 = vector.broadcast %cst_16 : f32 to vector<8x96xf32>
    %33 = arith.mulf %32, %31 : vector<8x96xf32>
    %cst_17 = arith.constant 4.471500e-02 : f32
    %34 = vector.broadcast %cst_17 : f32 to vector<8x96xf32>
    %35 = arith.mulf %34, %31 : vector<8x96xf32>
    %36 = arith.mulf %35, %31 : vector<8x96xf32>
    %37 = arith.mulf %36, %31 : vector<8x96xf32>
    %38 = arith.addf %31, %37 : vector<8x96xf32>
    %cst_18 = arith.constant 0.797884583 : f32
    %39 = vector.broadcast %cst_18 : f32 to vector<8x96xf32>
    %40 = arith.mulf %39, %38 : vector<8x96xf32>
    %41 = math.tanh %40 : vector<8x96xf32>
    %cst_19 = arith.constant 1.000000e+00 : f32
    %42 = vector.broadcast %cst_19 : f32 to vector<8x96xf32>
    %43 = arith.addf %42, %41 : vector<8x96xf32>
    %44 = arith.mulf %33, %43 : vector<8x96xf32>
    %45 = arith.truncf %44 : vector<8x96xf32> to vector<8x96xbf16>
    %c0_20 = arith.constant 0 : index
    %c0_21 = arith.constant 0 : index
    %46 = vector.load %arg6[%c0_20, %c0_21] : memref<96x128xbf16, #tpu.memory_space<vmem>>, vector<96x128xbf16>
    %cst_22 = arith.constant dense<0.000000e+00> : vector<8x128xf32>
    %47 = tpu.matmul %45, %46, %cst_22 {dimension_numbers = #tpu.dot_dimension_numbers<[1], [0], [0], [1], [0, 0, 1, 1], [], []>} : vector<8x96xbf16>, vector<96x128xbf16>, vector<8x128xf32> -> vector<8x128xf32>
    %c0_23 = arith.constant 0 : index
    %c0_24 = arith.constant 0 : index
    %48 = vector.load %arg7[%c0_23, %c0_24] : memref<1x128xf32, #tpu.memory_space<vmem>>, vector<1x128xf32>
    %49 = vector.broadcast %48 : vector<1x128xf32> to vector<8x128xf32>
    %50 = arith.addf %47, %49 : vector<8x128xf32>
    %51 = tpu.iota {dimensions = array<i32: 1>} : vector<8x128xi32>
    %c0_i32 = arith.constant 0 : i32
    %52 = vector.broadcast %c0_i32 : i32 to vector<8x128xi32>
    %53 = arith.cmpi eq, %51, %52 : vector<8x128xi32>
    %cst_25 = arith.constant 0.000000e+00 : f32
    %54 = vector.broadcast %cst_25 : f32 to vector<8x128xf32>
    %55 = arith.subf %54, %50 : vector<8x128xf32>
    %56 = math.exp %55 : vector<8x128xf32>
    %cst_26 = arith.constant 1.000000e+00 : f32
    %57 = vector.broadcast %cst_26 : f32 to vector<8x128xf32>
    %58 = arith.addf %57, %56 : vector<8x128xf32>
    %cst_27 = arith.constant 1.000000e+00 : f32
    %59 = vector.broadcast %cst_27 : f32 to vector<8x128xf32>
    %60 = arith.divf %59, %58 : vector<8x128xf32>
    %cst_28 = arith.constant 5.000000e+00 : f32
    %61 = vector.broadcast %cst_28 : f32 to vector<8x128xf32>
    %62 = arith.mulf %60, %61 : vector<8x128xf32>
    %63 = arith.select %53, %62, %50 : vector<8x128xi1>, vector<8x128xf32>
    %c0_29 = arith.constant 0 : index
    %c0_30 = arith.constant 0 : index
    %64 = vector.load %arg9[%c0_29, %c0_30] : memref<8x128xf32, #tpu.memory_space<vmem>>, vector<8x128xf32>
    tpu.vector_store %arg9[%c0_29, %c0_30], %63 {strides = array<i32>} : memref<8x128xf32, #tpu.memory_space<vmem>>, vector<8x128xf32>,
    return
  }
  func.func @transform_0(%arg0: i32) -> (i32, i32) {
    %c0_i32 = arith.constant 0 : i32
    %c0_i32_0 = arith.constant 0 : i32
    return %arg0, %c0_i32 : i32, i32
  }
  func.func @transform_1(%arg0: i32) -> (i32, i32) {
    %c0_i32 = arith.constant 0 : i32
    %c0_i32_0 = arith.constant 0 : i32
    %c0_i32_1 = arith.constant 0 : i32
    return %c0_i32, %c0_i32_0 : i32, i32
  }
  func.func @transform_2(%arg0: i32) -> (i32, i32) {
    %c0_i32 = arith.constant 0 : i32
    %c0_i32_0 = arith.constant 0 : i32
    %c0_i32_1 = arith.constant 0 : i32
    return %c0_i32, %c0_i32_0 : i32, i32
  }
  func.func @transform_3(%arg0: i32) -> (i32, i32) {
    %c0_i32 = arith.constant 0 : i32
    %c0_i32_0 = arith.constant 0 : i32
    %c0_i32_1 = arith.constant 0 : i32
    return %c0_i32, %c0_i32_0 : i32, i32
  }
  func.func @transform_4(%arg0: i32) -> (i32, i32) {
    %c0_i32 = arith.constant 0 : i32
    %c0_i32_0 = arith.constant 0 : i32
    %c0_i32_1 = arith.constant 0 : i32
    return %c0_i32, %c0_i32_0 : i32, i32
  }
  func.func @transform_5(%arg0: i32) -> (i32, i32) {
    %c0_i32 = arith.constant 0 : i32
    %c0_i32_0 = arith.constant 0 : i32
    %c0_i32_1 = arith.constant 0 : i32
    return %c0_i32, %c0_i32_0 : i32, i32
  }
  func.func @transform_6(%arg0: i32) -> (i32, i32) {
    %c0_i32 = arith.constant 0 : i32
    %c0_i32_0 = arith.constant 0 : i32
    %c0_i32_1 = arith.constant 0 : i32
    return %c0_i32, %c0_i32_0 : i32, i32
  }
  func.func @transform_7(%arg0: i32) -> (i32, i32) {
    %c0_i32 = arith.constant 0 : i32
    %c0_i32_0 = arith.constant 0 : i32
    return %arg0, %c0_i32 : i32, i32
  }
  func.func @transform_8(%arg0: i32) -> (i32, i32) {
    %c0_i32 = arith.constant 0 : i32
    %c0_i32_0 = arith.constant 0 : i32
    return %arg0, %c0_i32 : i32, i32
  }
}

</mosaic_0001>

<llo_original>
// kernel: enhanced_sasrec_forward.9
$region0: #{enhanced_sasrec_forward.9}
  #allocation0 [shape = 'u32[]', space=smem, size = 0x4, offset = 0x4, fixed_abs, tag = 'smem constant byte address 0x4 - core index']
  #allocation1 [shape = 'u32[144,128]{1,0:T(1,128)}', space=vmem, size = 0x12000, scoped, tag = 'internal scratch']
  %s0 = inlined_call_operand.vmem [shape: f32[16,64], index: 0, kind: input, shape index: {}]
  %s1 = inlined_call_operand.vmem [shape: bf16[64,128], index: 1, kind: input, shape index: {}]
  %s2 = inlined_call_operand.vmem [shape: f32[1,128], index: 2, kind: input, shape index: {}]
  %s3 = inlined_call_operand.vmem [shape: f32[16,128], index: 3, kind: output, shape index: {}]
  %s4 = sld [smem:[#allocation0]]
  $region45: #{enhanced_sasrec_forward.9} parent=0
    _
  %s6 = ssub.s32 1, %s4
  %s7 = scalar_select 0, %s6, %s4
  loop: start=0, step=1, limit=4
  $region2: #{enhanced_sasrec_forward.9} parent=0 // loop_pre_header
    _
  $region3: #{enhanced_sasrec_forward.9} parent=0 // loop_header
    %s9 = sphi 0, %s13
    %p10 = scmp.ge.s32.totalorder %s9, 4
    %s16 = sphi 0, %s28
    %s17 = sphi 0, %s24
    %s18 = sphi 0, %s16
    %s19 = sphi 0, %s17
    %s20 = sphi 0, %s18
    %s21 = sphi 0, %s19
    %s31 = sphi 0, %s33
    %s34 = sphi 0, %s31
    %s35 = sphi 0, %s34
    %s51 = sphi 0, %s35
    %s57 = sphi 0, %s59
    %s60 = sphi 0, %s57
    %s61 = sphi 0, %s60
    %s77 = sphi 0, %s61
    %s83 = sphi 0, %s85
    %s86 = sphi 0, %s83
    %s87 = sphi 0, %s86
    %s103 = sphi 0, %s87
    %s111 = sphi 0, %s113
    %s114 = sphi 0, %s111
    %s115 = sphi 0, %s114
    %s131 = sphi 0, %s115
  $region4: #{enhanced_sasrec_forward.9} parent=0 // loop_header_branch
    %12 = sbr.rel (%p10) target = $region8
  $region5: #{enhanced_sasrec_forward.9} parent=0 // loop_body
    %s14 = ssub.s32 %s9, 1
    %s15 = ssub.s32 %s9, 2
    %s22 = sadd.s32 1, %s17
    %p23 = scmp.ge.s32.totalorder %s22, 2
    %s24 = scalar_select %p23, 0, %s22
    %s25 = sadd.s32 1, %s16
    %s26 = scalar_select %p23, %s25, %s16
    %p27 = scmp.ge.s32.totalorder %s26, 1
    %s28 = scalar_select %p27, 0, %s26
    %s29 = ssub.s32 %s17, %s24
    %p30 = scmp.eq.s32.totalorder %s29, 0
    %s32 = sadd.s32 %s31, 1
    %s33 = scalar_select %p30, %s31, %s32
    %p36 = pneg %p30
    %p37 = scmp.eq.s32.totalorder %s9, 1
    %p38 = por %p36, %p37
    %p39 = scmp.ne.s32.totalorder %s31, %s34
    %p40 = scmp.eq.s32.totalorder %s9, 0
    %p41 = por %p39, %p40
    %p42 = scmp.ne.s32.totalorder %s31, %s34
    %p43 = scmp.eq.s32.totalorder %s14, 1
    %p44 = por %p42, %p43
    %p45 = scmp.ne.s32.totalorder %s34, %s35
    %p46 = scmp.eq.s32.totalorder %s14, 0
    %p47 = por %p45, %p46
    %p48 = scmp.ne.s32.totalorder %s34, %s35
    %p49 = scmp.eq.s32.totalorder %s15, 1
    %p50 = por %p48, %p49
    %p52 = scmp.ne.s32.totalorder %s35, %s51
    %p53 = scmp.eq.s32.totalorder %s15, 0
    %p54 = por %p52, %p53
    %s55 = ssub.s32 %s16, %s28
    %p56 = scmp.eq.s32.totalorder %s55, 0
    %s58 = sadd.s32 %s57, 1
    %s59 = scalar_select %p56, %s57, %s58
    %p62 = pneg %p56
    %p63 = scmp.eq.s32.totalorder %s9, 1
    %p64 = por %p62, %p63
    %p65 = scmp.ne.s32.totalorder %s57, %s60
    %p66 = scmp.eq.s32.totalorder %s9, 0
    %p67 = por %p65, %p66
    %p68 = scmp.ne.s32.totalorder %s57, %s60
    %p69 = scmp.eq.s32.totalorder %s14, 1
    %p70 = por %p68, %p69
    %p71 = scmp.ne.s32.totalorder %s60, %s61
    %p72 = scmp.eq.s32.totalorder %s14, 0
    %p73 = por %p71, %p72
    %p74 = scmp.ne.s32.totalorder %s60, %s61
    %p75 = scmp.eq.s32.totalorder %s15, 1
    %p76 = por %p74, %p75
    %p78 = scmp.ne.s32.totalorder %s61, %s77
    %p79 = scmp.eq.s32.totalorder %s15, 0
    %p80 = por %p78, %p79
    %s81 = ssub.s32 %s16, %s28
    %p82 = scmp.eq.s32.totalorder %s81, 0
    %s84 = sadd.s32 %s83, 1
    %s85 = scalar_select %p82, %s83, %s84
    %p88 = pneg %p82
    %p89 = scmp.eq.s32.totalorder %s9, 1
    %p90 = por %p88, %p89
    %p91 = scmp.ne.s32.totalorder %s83, %s86
    %p92 = scmp.eq.s32.totalorder %s9, 0
    %p93 = por %p91, %p92
    %p94 = scmp.ne.s32.totalorder %s83, %s86
    %p95 = scmp.eq.s32.totalorder %s14, 1
    %p96 = por %p94, %p95
    %p97 = scmp.ne.s32.totalorder %s86, %s87
    %p98 = scmp.eq.s32.totalorder %s14, 0
    %p99 = por %p97, %p98
    %p100 = scmp.ne.s32.totalorder %s86, %s87
    %p101 = scmp.eq.s32.totalorder %s15, 1
    %p102 = por %p100, %p101
    %p104 = scmp.ne.s32.totalorder %s87, %s103
    %p105 = scmp.eq.s32.totalorder %s15, 0
    %p106 = por %p104, %p105
    %s107 = ssub.s32 %s17, %s24
    %s108 = ssub.s32 %s16, %s28
    %s109 = sor.u32 %s107, %s108
    %p110 = scmp.eq.s32.totalorder %s109, 0
    %s112 = sadd.s32 %s111, 1
    %s113 = scalar_select %p110, %s111, %s112
    %p116 = pneg %p110
    %p117 = scmp.eq.s32.totalorder %s9, 1
    %p118 = por %p116, %p117
    %p119 = scmp.ne.s32.totalorder %s111, %s114
    %p120 = scmp.eq.s32.totalorder %s9, 0
    %p121 = por %p119, %p120
    %p122 = scmp.ne.s32.totalorder %s111, %s114
    %p123 = scmp.eq.s32.totalorder %s14, 1
    %p124 = por %p122, %p123
    %p125 = scmp.ne.s32.totalorder %s114, %s115
    %p126 = scmp.eq.s32.totalorder %s14, 0
    %p127 = por %p125, %p126
    %p128 = scmp.ne.s32.totalorder %s114, %s115
    %p129 = scmp.eq.s32.totalorder %s15, 1
    %p130 = por %p128, %p129
    %p132 = scmp.ne.s32.totalorder %s115, %s131
    %p133 = scmp.eq.s32.totalorder %s15, 0
    %p134 = por %p132, %p133
    %p135 = scmp.le.s32.totalorder 1, %s9
    %p136 = scmp.lt.s32.totalorder %s9, 3
    %p137 = pnand %p135, %p136
    %p138 = pneg %p137
    // Predicated region
    $region9: #{enhanced_sasrec_forward.9} parent=5 // pred_check
      _
    $region10: #{enhanced_sasrec_forward.9} parent=5 // pred_check_branch
      %140 = sbr.rel (%p137) target = $region12
    $region11: #{enhanced_sasrec_forward.9} parent=5 // pred_region
      %s141 = ssub.s32 %s9, 1
      // Predicated region
      $region13: #{enhanced_sasrec_forward.9} parent=11 // pred_check
        %p142 = pneg %p73
      $region14: #{enhanced_sasrec_forward.9} parent=11 // pred_check_branch
        %144 = sbr.rel (%p142) target = $region16
      $region15: #{enhanced_sasrec_forward.9} parent=11 // pred_region
        %p145 = scmp.lt.s32.totalorder %s18, 0
        %s146 = scalar_select %p145, %s18, 0
        %s147 = smul.addr %s146, 4
        %s148 = scalar_lea.vmem %s1, %s147
      $region16: #{enhanced_sasrec_forward.9} parent=11 // pred_fallthru
        _
      // Predicated region
      $region17: #{enhanced_sasrec_forward.9} parent=11 // pred_check
        %p149 = pneg %p99
      $region18: #{enhanced_sasrec_forward.9} parent=11 // pred_check_branch
        %151 = sbr.rel (%p149) target = $region20
      $region19: #{enhanced_sasrec_forward.9} parent=11 // pred_region
        %p152 = scmp.lt.s32.totalorder %s18, 0
        %s153 = scalar_select %p152, %s18, 0
        %s154 = scalar_lea.vmem %s2, %s153
      $region20: #{enhanced_sasrec_forward.9} parent=11 // pred_fallthru
        _
    $region12: #{enhanced_sasrec_forward.9} parent=5 // pred_fallthru
      _
    %p155 = scmp.lt.s32.totalorder %s9, 2
    // Predicated region
    $region21: #{enhanced_sasrec_forward.9} parent=5 // pred_check
      %p156 = pneg %p155
    $region22: #{enhanced_sasrec_forward.9} parent=5 // pred_check_branch
      %158 = sbr.rel (%p156) target = $region24
    $region23: #{enhanced_sasrec_forward.9} parent=5 // pred_region
      // Predicated region
      $region25: #{enhanced_sasrec_forward.9} parent=23 // pred_check
        %p159 = pneg %p41
      $region26: #{enhanced_sasrec_forward.9} parent=23 // pred_check_branch
        %161 = sbr.rel (%p159) target = $region28
      $region27: #{enhanced_sasrec_forward.9} parent=23 // pred_region
        %p162 = scmp.lt.s32.totalorder %s17, 1
        %s163 = scalar_select %p162, %s17, 1
        %s164 = smul.addr %s163, 8
        %s165 = scalar_lea.vmem %s0, %s164
      $region28: #{enhanced_sasrec_forward.9} parent=23 // pred_fallthru
        _
    $region24: #{enhanced_sasrec_forward.9} parent=5 // pred_fallthru
      _
    %p166 = scmp.le.s32.totalorder 1, %s9
    %p167 = scmp.lt.s32.totalorder %s9, 3
    %p168 = pnand %p166, %p167
    %p169 = pneg %p168
    // Predicated region
    $region29: #{enhanced_sasrec_forward.9} parent=5 // pred_check
      _
    $region30: #{enhanced_sasrec_forward.9} parent=5 // pred_check_branch
      %171 = sbr.rel (%p168) target = $region32
    $region31: #{enhanced_sasrec_forward.9} parent=5 // pred_region
      %s172 = ssub.s32 %s9, 1
      %p173 = scmp.lt.s32.totalorder %s19, 1
      %s174 = scalar_select %p173, %s19, 1
      %s175 = smul.addr %s174, 8
      %s176 = scalar_lea.vmem %s0, %s175
      %p177 = pneg %p47
      %p178 = pneg %p44
      %p179 = scmp.lt.s32.totalorder %s18, 0
      %s180 = scalar_select %p179, %s18, 0
      %s181 = smul.addr %s180, 4
      %s182 = scalar_lea.vmem %s1, %s181
      %p183 = pneg %p73
      %p184 = pneg %p70
      %p185 = scmp.lt.s32.totalorder %s18, 0
      %s186 = scalar_select %p185, %s18, 0
      %s187 = scalar_lea.vmem %s2, %s186
      %p188 = pneg %p99
      %p189 = pneg %p96
      %p190 = pneg %p127
      %p191 = pneg %p124
      %p192 = scmp.lt.s32.totalorder %s19, 1
      %s193 = scalar_select %p192, %s19, 1
      %p194 = scmp.lt.s32.totalorder %s18, 0
      %s195 = scalar_select %p194, %s18, 0
      %s196 = sadd.s32 %s195, %s193
      %s197 = smul.addr %s196, 8
      %s198 = scalar_lea.vmem %s3, %s197
      %p199 = scmp.lt.s32.totalorder %s19, 1
      %s200 = scalar_select %p199, %s19, 1
      %s201 = smul.addr %s200, 8
      %s202 = scalar_lea.vmem %s0, %s201
      %p203 = scmp.lt.s32.totalorder %s18, 0
      %s204 = scalar_select %p203, %s18, 0
      %s205 = smul.addr %s204, 4
      %s206 = scalar_lea.vmem %s1, %s205
      %p207 = scmp.lt.s32.totalorder %s18, 0
      %s208 = scalar_select %p207, %s18, 0
      %s209 = scalar_lea.vmem %s2, %s208
      %p210 = scmp.lt.s32.totalorder %s19, 1
      %s211 = scalar_select %p210, %s19, 1
      %p212 = scmp.lt.s32.totalorder %s18, 0
      %s213 = scalar_select %p212, %s18, 0
      %s214 = sadd.s32 %s213, %s211
      %s215 = smul.addr %s214, 8
      %s216 = scalar_lea.vmem %s3, %s215
      %v218 = vld [vmem:[%s202] sm:$0xff]
      %v219 = vpack.c.bf16 %v218, %v218
      %v220 = vld [vmem:[%s206] sm:$0xf]
      %v221 = vld [vmem:[%s206 + $0x4] sm:$0xf]
      %v222 = vld [vmem:[%s206 + $0x8] sm:$0xf]
      %v223 = vld [vmem:[%s206 + $0xc] sm:$0xf]
      %v224 = vld [vmem:[%s206 + $0x10] sm:$0xf]
      %v225 = vld [vmem:[%s206 + $0x14] sm:$0xf]
      %v226 = vld [vmem:[%s206 + $0x18] sm:$0xf]
      %v227 = vld [vmem:[%s206 + $0x1c] sm:$0xf]
      %v228 = vld [vmem:[%s209] sm:$0x1]
      %v230 = vlaneseq
      %v231 = vshrl.u32 %v230, 7
      %v232 = vsub.s32 0, %v231
      %v233 = vrot.slane %v228, %v232
      %v243 = vunpack.c.l.b16 %v220
      %v244 = vunpack.c.l.b16 %v221
      %v245 = vunpack.c.l.b16 %v222
      %v246 = vunpack.c.l.b16 %v223
      %v247 = vunpack.c.l.b16 %v224
      %v248 = vunpack.c.l.b16 %v225
      %v249 = vunpack.c.l.b16 %v226
      %v250 = vunpack.c.l.b16 %v227
      %v251 = vpack.c.b16 %v244, %v243
      %v252 = vpack.c.b16 %v246, %v245
      %v253 = vpack.c.b16 %v248, %v247
      %v254 = vpack.c.b16 %v250, %v249
      %vm259 = vcmask 523264
      %v261 = vsel %vm259, %v219, 0
      %263 = vmatprep.subr.bf16.mxu0 0
      %264 = vmatpush1.bf16.msra.mxu0 %v251
      %265 = vmatprep.subr.bf16.mxu0 0
      %266 = vmatpush1.bf16.msra.mxu0 %v252
      %267 = vmatprep.subr.bf16.mxu0 0
      %268 = vmatpush1.bf16.msra.mxu0 %v253
      %269 = vmatprep.subr.bf16.mxu0 0
      %270 = vmatpush1.bf16.msra.mxu0 %v254
      %271 = vmatprep.subr.bf16.mxu0 0
      %272 = vmatpush1.bf16.msra.mxu0 0
      %273 = vmatprep.subr.bf16.mxu0 0
      %274 = vmatpush1.bf16.msra.mxu0 0
      %275 = vmatprep.subr.bf16.mxu0 0
      %276 = vmatpush1.bf16.msra.mxu0 0
      %277 = vmatprep.subr.bf16.mxu0 0
      %278 = vmatpush1.bf16.msra.mxu0 0
      %279 = vmatprep.subr.bf16.mxu0 0
      %280 = vmatpush1.bf16.msra.mxu0 0
      %281 = vmatprep.subr.bf16.mxu0 0
      %282 = vmatpush1.bf16.msra.mxu0 0
      %283 = vmatprep.subr.bf16.mxu0 0
      %284 = vmatpush1.bf16.msra.mxu0 0
      %285 = vmatprep.subr.bf16.mxu0 0
      %286 = vmatpush1.bf16.msra.mxu0 0
      %287 = vmatprep.subr.bf16.mxu0 0
      %288 = vmatpush1.bf16.msra.mxu0 0
      %289 = vmatprep.subr.bf16.mxu0 0
      %290 = vmatpush1.bf16.msra.mxu0 0
      %291 = vmatprep.subr.bf16.mxu0 0
      %292 = vmatpush1.bf16.msra.mxu0 0
      %293 = vmatprep.subr.bf16.mxu0 0
      %294 = vmatpush1.bf16.msra.mxu0 0
      %295 = vmatprep.mubr.bf16.mxu0 0
      %296 = vmatmul.mubr.bf16.gmra.mrb[0].mxu0 %v261
      %v297 = vpop.f32.mrb[0].mxu0
      %v298 = vadd.f32 %v233, %v297
      %v299 = vpop.f32.mrb[0].mxu0
      %v300 = vpop.f32.mrb[0].mxu0
      %v301 = vpop.f32.mrb[0].mxu0
      %302 = vdwg.mxu0
      %303 = vst [vmem:[%s216] sm:$0xff] %v298
      %p304 = scmp.lt.s32.totalorder %s19, 1
      %s305 = scalar_select %p304, %s19, 1
      %p306 = scmp.lt.s32.totalorder %s18, 0
      %s307 = scalar_select %p306, %s18, 0
      %s308 = sadd.s32 %s307, %s305
      %s309 = smul.addr %s308, 8
      %s310 = scalar_lea.vmem %s3, %s309
      // Predicated region
      $region33: #{enhanced_sasrec_forward.9} parent=31 // pred_check
        %p311 = pneg %p124
      $region34: #{enhanced_sasrec_forward.9} parent=31 // pred_check_branch
        %313 = sbr.rel (%p311) target = $region36
      $region35: #{enhanced_sasrec_forward.9} parent=31 // pred_region
        _
      $region36: #{enhanced_sasrec_forward.9} parent=31 // pred_fallthru
        _
    $region32: #{enhanced_sasrec_forward.9} parent=5 // pred_fallthru
      _
    %p314 = scmp.le.s32.totalorder 2, %s9
    // Predicated region
    $region37: #{enhanced_sasrec_forward.9} parent=5 // pred_check
      %p315 = pneg %p314
    $region38: #{enhanced_sasrec_forward.9} parent=5 // pred_check_branch
      %317 = sbr.rel (%p315) target = $region40
    $region39: #{enhanced_sasrec_forward.9} parent=5 // pred_region
      %s318 = ssub.s32 %s9, 2
      // Predicated region
      $region41: #{enhanced_sasrec_forward.9} parent=39 // pred_check
        %p319 = pneg %p130
      $region42: #{enhanced_sasrec_forward.9} parent=39 // pred_check_branch
        %321 = sbr.rel (%p319) target = $region44
      $region43: #{enhanced_sasrec_forward.9} parent=39 // pred_region
        %p322 = scmp.lt.s32.totalorder %s21, 1
        %s323 = scalar_select %p322, %s21, 1
        %p324 = scmp.lt.s32.totalorder %s20, 0
        %s325 = scalar_select %p324, %s20, 0
        %s326 = sadd.s32 %s325, %s323
        %s327 = smul.addr %s326, 8
        %s328 = scalar_lea.vmem %s3, %s327
      $region44: #{enhanced_sasrec_forward.9} parent=39 // pred_fallthru
        _
    $region40: #{enhanced_sasrec_forward.9} parent=5 // pred_fallthru
      _
  $region6: #{enhanced_sasrec_forward.9} parent=0 // loop_footer
    %s13 = sadd.s32 1, %s9
  $region7: #{enhanced_sasrec_forward.9} parent=0 // loop_footer_branch
    %8 = sbr.rel target = $region3
  $region8: #{enhanced_sasrec_forward.9} parent=0 // loop_exit
    _

// kernel: enhanced_sasrec_forward.5
$region0: #{enhanced_sasrec_forward.5}
  #allocation0 [shape = 'u32[]', space=smem, size = 0x4, offset = 0x4, fixed_abs, tag = 'smem constant byte address 0x4 - core index']
  #allocation1 [shape = 'u32[144,128]{1,0:T(1,128)}', space=vmem, size = 0x12000, scoped, tag = 'internal scratch']
  %s0 = inlined_call_operand.vmem [shape: f32[2,8,80], index: 0, kind: input, shape index: {}]
  %s1 = inlined_call_operand.vmem [shape: f32[1,8,64], index: 1, kind: input, shape index: {}]
  %s2 = inlined_call_operand.vmem [shape: bf16[80,64], index: 2, kind: input, shape index: {}]
  %s3 = inlined_call_operand.vmem [shape: f32[1,64], index: 3, kind: input, shape index: {}]
  %s4 = inlined_call_operand.vmem [shape: f32[1,64], index: 4, kind: input, shape index: {}]
  %s5 = inlined_call_operand.vmem [shape: f32[1,64], index: 5, kind: input, shape index: {}]
  %s6 = inlined_call_operand.vmem [shape: f32[2,8,64], index: 6, kind: output, shape index: {}]
  %s7 = sld [smem:[#allocation0]]
  $region57: #{enhanced_sasrec_forward.5} parent=0
    _
  %s9 = ssub.s32 1, %s7
  %s10 = scalar_select 0, %s9, %s7
  loop: start=0, step=1, limit=4
  $region2: #{enhanced_sasrec_forward.5} parent=0 // loop_pre_header
    _
  $region3: #{enhanced_sasrec_forward.5} parent=0 // loop_header
    %s12 = sphi 0, %s16
    %p13 = scmp.ge.s32.totalorder %s12, 4
    %s22 = sphi 0, %s24
    %s25 = sphi 0, %s22
    %s26 = sphi 0, %s25
    %s42 = sphi 0, %s26
    %s46 = sphi 0, %s46
    %s48 = sphi 0, %s46
    %s49 = sphi 0, %s48
    %s63 = sphi 0, %s49
    %s67 = sphi 0, %s67
    %s69 = sphi 0, %s67
    %s70 = sphi 0, %s69
    %s84 = sphi 0, %s70
    %s88 = sphi 0, %s88
    %s90 = sphi 0, %s88
    %s91 = sphi 0, %s90
    %s105 = sphi 0, %s91
    %s109 = sphi 0, %s109
    %s111 = sphi 0, %s109
    %s112 = sphi 0, %s111
    %s126 = sphi 0, %s112
    %s130 = sphi 0, %s130
    %s132 = sphi 0, %s130
    %s133 = sphi 0, %s132
    %s147 = sphi 0, %s133
    %s153 = sphi 0, %s155
    %s156 = sphi 0, %s153
    %s157 = sphi 0, %s156
    %s173 = sphi 0, %s157
  $region4: #{enhanced_sasrec_forward.5} parent=0 // loop_header_branch
    %15 = sbr.rel (%p13) target = $region8
  $region5: #{enhanced_sasrec_forward.5} parent=0 // loop_body
    %s17 = ssub.s32 %s12, 1
    %s18 = ssub.s32 %s12, 2
    %s19 = sadd.s32 %s12, 1
    %s20 = ssub.s32 %s12, %s19
    %p21 = scmp.eq.s32.totalorder %s20, 0
    %s23 = sadd.s32 %s22, 1
    %s24 = scalar_select %p21, %s22, %s23
    %p27 = pneg %p21
    %p28 = scmp.eq.s32.totalorder %s12, 1
    %p29 = por %p27, %p28
    %p30 = scmp.ne.s32.totalorder %s22, %s25
    %p31 = scmp.eq.s32.totalorder %s12, 0
    %p32 = por %p30, %p31
    %p33 = scmp.ne.s32.totalorder %s22, %s25
    %p34 = scmp.eq.s32.totalorder %s17, 1
    %p35 = por %p33, %p34
    %p36 = scmp.ne.s32.totalorder %s25, %s26
    %p37 = scmp.eq.s32.totalorder %s17, 0
    %p38 = por %p36, %p37
    %p39 = scmp.ne.s32.totalorder %s25, %s26
    %p40 = scmp.eq.s32.totalorder %s18, 1
    %p41 = por %p39, %p40
    %p43 = scmp.ne.s32.totalorder %s26, %s42
    %p44 = scmp.eq.s32.totalorder %s18, 0
    %p45 = por %p43, %p44
    %s47 = sadd.s32 %s46, 1
    %p50 = scmp.eq.s32.totalorder %s12, 1
    %p51 = scmp.ne.s32.totalorder %s46, %s48
    %p52 = scmp.eq.s32.totalorder %s12, 0
    %p53 = por %p51, %p52
    %p54 = scmp.ne.s32.totalorder %s46, %s48
    %p55 = scmp.eq.s32.totalorder %s17, 1
    %p56 = por %p54, %p55
    %p57 = scmp.ne.s32.totalorder %s48, %s49
    %p58 = scmp.eq.s32.totalorder %s17, 0
    %p59 = por %p57, %p58
    %p60 = scmp.ne.s32.totalorder %s48, %s49
    %p61 = scmp.eq.s32.totalorder %s18, 1
    %p62 = por %p60, %p61
    %p64 = scmp.ne.s32.totalorder %s49, %s63
    %p65 = scmp.eq.s32.totalorder %s18, 0
    %p66 = por %p64, %p65
    %s68 = sadd.s32 %s67, 1
    %p71 = scmp.eq.s32.totalorder %s12, 1
    %p72 = scmp.ne.s32.totalorder %s67, %s69
    %p73 = scmp.eq.s32.totalorder %s12, 0
    %p74 = por %p72, %p73
    %p75 = scmp.ne.s32.totalorder %s67, %s69
    %p76 = scmp.eq.s32.totalorder %s17, 1
    %p77 = por %p75, %p76
    %p78 = scmp.ne.s32.totalorder %s69, %s70
    %p79 = scmp.eq.s32.totalorder %s17, 0
    %p80 = por %p78, %p79
    %p81 = scmp.ne.s32.totalorder %s69, %s70
    %p82 = scmp.eq.s32.totalorder %s18, 1
    %p83 = por %p81, %p82
    %p85 = scmp.ne.s32.totalorder %s70, %s84
    %p86 = scmp.eq.s32.totalorder %s18, 0
    %p87 = por %p85, %p86
    %s89 = sadd.s32 %s88, 1
    %p92 = scmp.eq.s32.totalorder %s12, 1
    %p93 = scmp.ne.s32.totalorder %s88, %s90
    %p94 = scmp.eq.s32.totalorder %s12, 0
    %p95 = por %p93, %p94
    %p96 = scmp.ne.s32.totalorder %s88, %s90
    %p97 = scmp.eq.s32.totalorder %s17, 1
    %p98 = por %p96, %p97
    %p99 = scmp.ne.s32.totalorder %s90, %s91
    %p100 = scmp.eq.s32.totalorder %s17, 0
    %p101 = por %p99, %p100
    %p102 = scmp.ne.s32.totalorder %s90, %s91
    %p103 = scmp.eq.s32.totalorder %s18, 1
    %p104 = por %p102, %p103
    %p106 = scmp.ne.s32.totalorder %s91, %s105
    %p107 = scmp.eq.s32.totalorder %s18, 0
    %p108 = por %p106, %p107
    %s110 = sadd.s32 %s109, 1
    %p113 = scmp.eq.s32.totalorder %s12, 1
    %p114 = scmp.ne.s32.totalorder %s109, %s111
    %p115 = scmp.eq.s32.totalorder %s12, 0
    %p116 = por %p114, %p115
    %p117 = scmp.ne.s32.totalorder %s109, %s111
    %p118 = scmp.eq.s32.totalorder %s17, 1
    %p119 = por %p117, %p118
    %p120 = scmp.ne.s32.totalorder %s111, %s112
    %p121 = scmp.eq.s32.totalorder %s17, 0
    %p122 = por %p120, %p121
    %p123 = scmp.ne.s32.totalorder %s111, %s112
    %p124 = scmp.eq.s32.totalorder %s18, 1
    %p125 = por %p123, %p124
    %p127 = scmp.ne.s32.totalorder %s112, %s126
    %p128 = scmp.eq.s32.totalorder %s18, 0
    %p129 = por %p127, %p128
    %s131 = sadd.s32 %s130, 1
    %p134 = scmp.eq.s32.totalorder %s12, 1
    %p135 = scmp.ne.s32.totalorder %s130, %s132
    %p136 = scmp.eq.s32.totalorder %s12, 0
    %p137 = por %p135, %p136
    %p138 = scmp.ne.s32.totalorder %s130, %s132
    %p139 = scmp.eq.s32.totalorder %s17, 1
    %p140 = por %p138, %p139
    %p141 = scmp.ne.s32.totalorder %s132, %s133
    %p142 = scmp.eq.s32.totalorder %s17, 0
    %p143 = por %p141, %p142
    %p144 = scmp.ne.s32.totalorder %s132, %s133
    %p145 = scmp.eq.s32.totalorder %s18, 1
    %p146 = por %p144, %p145
    %p148 = scmp.ne.s32.totalorder %s133, %s147
    %p149 = scmp.eq.s32.totalorder %s18, 0
    %p150 = por %p148, %p149
    %s151 = ssub.s32 %s12, %s19
    %p152 = scmp.eq.s32.totalorder %s151, 0
    %s154 = sadd.s32 %s153, 1
    %s155 = scalar_select %p152, %s153, %s154
    %p158 = pneg %p152
    %p159 = scmp.eq.s32.totalorder %s12, 1
    %p160 = por %p158, %p159
    %p161 = scmp.ne.s32.totalorder %s153, %s156
    %p162 = scmp.eq.s32.totalorder %s12, 0
    %p163 = por %p161, %p162
    %p164 = scmp.ne.s32.totalorder %s153, %s156
    %p165 = scmp.eq.s32.totalorder %s17, 1
    %p166 = por %p164, %p165
    %p167 = scmp.ne.s32.totalorder %s156, %s157
    %p168 = scmp.eq.s32.totalorder %s17, 0
    %p169 = por %p167, %p168
    %p170 = scmp.ne.s32.totalorder %s156, %s157
    %p171 = scmp.eq.s32.totalorder %s18, 1
    %p172 = por %p170, %p171
    %p174 = scmp.ne.s32.totalorder %s157, %s173
    %p175 = scmp.eq.s32.totalorder %s18, 0
    %p176 = por %p174, %p175
    %p177 = scmp.le.s32.totalorder 1, %s12
    %p178 = scmp.lt.s32.totalorder %s12, 3
    %p179 = pnand %p177, %p178
    %p180 = pneg %p179
    // Predicated region
    $region9: #{enhanced_sasrec_forward.5} parent=5 // pred_check
      _
    $region10: #{enhanced_sasrec_forward.5} parent=5 // pred_check_branch
      %182 = sbr.rel (%p179) target = $region12
    $region11: #{enhanced_sasrec_forward.5} parent=5 // pred_region
      %s183 = ssub.s32 %s12, 1
      // Predicated region
      $region13: #{enhanced_sasrec_forward.5} parent=11 // pred_check
        %p184 = pneg %p59
      $region14: #{enhanced_sasrec_forward.5} parent=11 // pred_check_branch
        %186 = sbr.rel (%p184) target = $region16
      $region15: #{enhanced_sasrec_forward.5} parent=11 // pred_region
        _
      $region16: #{enhanced_sasrec_forward.5} parent=11 // pred_fallthru
        _
      // Predicated region
      $region17: #{enhanced_sasrec_forward.5} parent=11 // pred_check
        %p187 = pneg %p80
      $region18: #{enhanced_sasrec_forward.5} parent=11 // pred_check_branch
        %189 = sbr.rel (%p187) target = $region20
      $region19: #{enhanced_sasrec_forward.5} parent=11 // pred_region
        _
      $region20: #{enhanced_sasrec_forward.5} parent=11 // pred_fallthru
        _
      // Predicated region
      $region21: #{enhanced_sasrec_forward.5} parent=11 // pred_check
        %p190 = pneg %p101
      $region22: #{enhanced_sasrec_forward.5} parent=11 // pred_check_branch
        %192 = sbr.rel (%p190) target = $region24
      $region23: #{enhanced_sasrec_forward.5} parent=11 // pred_region
        _
      $region24: #{enhanced_sasrec_forward.5} parent=11 // pred_fallthru
        _
      // Predicated region
      $region25: #{enhanced_sasrec_forward.5} parent=11 // pred_check
        %p193 = pneg %p122
      $region26: #{enhanced_sasrec_forward.5} parent=11 // pred_check_branch
        %195 = sbr.rel (%p193) target = $region28
      $region27: #{enhanced_sasrec_forward.5} parent=11 // pred_region
        _
      $region28: #{enhanced_sasrec_forward.5} parent=11 // pred_fallthru
        _
      // Predicated region
      $region29: #{enhanced_sasrec_forward.5} parent=11 // pred_check
        %p196 = pneg %p143
      $region30: #{enhanced_sasrec_forward.5} parent=11 // pred_check_branch
        %198 = sbr.rel (%p196) target = $region32
      $region31: #{enhanced_sasrec_forward.5} parent=11 // pred_region
        _
      $region32: #{enhanced_sasrec_forward.5} parent=11 // pred_fallthru
        _
    $region12: #{enhanced_sasrec_forward.5} parent=5 // pred_fallthru
      _
    %p199 = scmp.lt.s32.totalorder %s12, 2
    // Predicated region
    $region33: #{enhanced_sasrec_forward.5} parent=5 // pred_check
      %p200 = pneg %p199
    $region34: #{enhanced_sasrec_forward.5} parent=5 // pred_check_branch
      %202 = sbr.rel (%p200) target = $region36
    $region35: #{enhanced_sasrec_forward.5} parent=5 // pred_region
      // Predicated region
      $region37: #{enhanced_sasrec_forward.5} parent=35 // pred_check
        %p203 = pneg %p32
      $region38: #{enhanced_sasrec_forward.5} parent=35 // pred_check_branch
        %205 = sbr.rel (%p203) target = $region40
      $region39: #{enhanced_sasrec_forward.5} parent=35 // pred_region
        %p206 = scmp.lt.s32.totalorder %s12, 1
        %s207 = scalar_select %p206, %s12, 1
        %s208 = smul.addr %s207, 8
        %s209 = scalar_lea.vmem %s0, %s208
      $region40: #{enhanced_sasrec_forward.5} parent=35 // pred_fallthru
        _
    $region36: #{enhanced_sasrec_forward.5} parent=5 // pred_fallthru
      _
    %p210 = scmp.le.s32.totalorder 1, %s12
    %p211 = scmp.lt.s32.totalorder %s12, 3
    %p212 = pnand %p210, %p211
    %p213 = pneg %p212
    // Predicated region
    $region41: #{enhanced_sasrec_forward.5} parent=5 // pred_check
      _
    $region42: #{enhanced_sasrec_forward.5} parent=5 // pred_check_branch
      %215 = sbr.rel (%p212) target = $region44
    $region43: #{enhanced_sasrec_forward.5} parent=5 // pred_region
      %s216 = ssub.s32 %s12, 1
      %p217 = scmp.lt.s32.totalorder %s17, 1
      %s218 = scalar_select %p217, %s17, 1
      %s219 = smul.addr %s218, 8
      %s220 = scalar_lea.vmem %s0, %s219
      %p221 = pneg %p38
      %p222 = pneg %p35
      %p223 = pneg %p59
      %p224 = pneg %p56
      %p225 = pneg %p80
      %p226 = pneg %p77
      %p227 = pneg %p101
      %p228 = pneg %p98
      %p229 = pneg %p122
      %p230 = pneg %p119
      %p231 = pneg %p143
      %p232 = pneg %p140
      %p233 = pneg %p169
      %p234 = pneg %p166
      %p235 = scmp.lt.s32.totalorder %s17, 1
      %s236 = scalar_select %p235, %s17, 1
      %s237 = smul.addr %s236, 8
      %s238 = scalar_lea.vmem %s6, %s237
      %p239 = scmp.lt.s32.totalorder %s17, 1
      %s240 = scalar_select %p239, %s17, 1
      %s241 = smul.addr %s240, 8
      %s242 = scalar_lea.vmem %s0, %s241
      %p243 = scmp.lt.s32.totalorder %s17, 1
      %s244 = scalar_select %p243, %s17, 1
      %s245 = smul.addr %s244, 8
      %s246 = scalar_lea.vmem %s6, %s245
      %v248 = vld [vmem:[%s242] sm:$0xff]
      %v249 = vpack.c.bf16 %v248, %v248
      %v250 = vld [vmem:[%s2] sm:$0xf]
      %v251 = vld [vmem:[%s2 + $0x4] sm:$0xf]
      %v252 = vld [vmem:[%s2 + $0x8] sm:$0xf]
      %v253 = vld [vmem:[%s2 + $0xc] sm:$0xf]
      %v254 = vld [vmem:[%s2 + $0x10] sm:$0xf]
      %v255 = vld [vmem:[%s2 + $0x14] sm:$0xf]
      %v256 = vld [vmem:[%s2 + $0x18] sm:$0xf]
      %v257 = vld [vmem:[%s2 + $0x1c] sm:$0xf]
      %v258 = vld [vmem:[%s2 + $0x20] sm:$0xf]
      %v259 = vld [vmem:[%s2 + $0x24] sm:$0xf]
      %v260 = vld [vmem:[%s3] sm:$0x1]
      %v262 = vlaneseq
      %v263 = vshrl.u32 %v262, 7
      %v264 = vsub.s32 0, %v263
      %v265 = vrot.slane %v260, %v264
      %v277 = vunpack.c.l.b16 %v250
      %v278 = vunpack.c.l.b16 %v251
      %v279 = vunpack.c.l.b16 %v252
      %v280 = vunpack.c.l.b16 %v253
      %v281 = vunpack.c.l.b16 %v254
      %v282 = vunpack.c.l.b16 %v255
      %v283 = vunpack.c.l.b16 %v256
      %v284 = vunpack.c.l.b16 %v257
      %v285 = vunpack.c.l.b16 %v258
      %v286 = vunpack.c.l.b16 %v259
      %v287 = vpack.c.b16 %v278, %v277
      %v288 = vpack.c.b16 %v280, %v279
      %v289 = vpack.c.b16 %v282, %v281
      %v290 = vpack.c.b16 %v284, %v283
      %v291 = vpack.c.b16 %v286, %v285
      %vm297 = vcmask 654336
      %v299 = vsel %vm297, %v249, 0
      %301 = vmatprep.subr.bf16.mxu0 0
      %302 = vmatpush1.bf16.msra.mxu0 %v287
      %303 = vmatprep.subr.bf16.mxu0 0
      %304 = vmatpush1.bf16.msra.mxu0 %v288
      %305 = vmatprep.subr.bf16.mxu0 0
      %306 = vmatpush1.bf16.msra.mxu0 %v289
      %307 = vmatprep.subr.bf16.mxu0 0
      %308 = vmatpush1.bf16.msra.mxu0 %v290
      %309 = vmatprep.subr.bf16.mxu0 0
      %310 = vmatpush1.bf16.msra.mxu0 %v291
      %311 = vmatprep.subr.bf16.mxu0 0
      %312 = vmatpush1.bf16.msra.mxu0 0
      %313 = vmatprep.subr.bf16.mxu0 0
      %314 = vmatpush1.bf16.msra.mxu0 0
      %315 = vmatprep.subr.bf16.mxu0 0
      %316 = vmatpush1.bf16.msra.mxu0 0
      %317 = vmatprep.subr.bf16.mxu0 0
      %318 = vmatpush1.bf16.msra.mxu0 0
      %319 = vmatprep.subr.bf16.mxu0 0
      %320 = vmatpush1.bf16.msra.mxu0 0
      %321 = vmatprep.subr.bf16.mxu0 0
      %322 = vmatpush1.bf16.msra.mxu0 0
      %323 = vmatprep.subr.bf16.mxu0 0
      %324 = vmatpush1.bf16.msra.mxu0 0
      %325 = vmatprep.subr.bf16.mxu0 0
      %326 = vmatpush1.bf16.msra.mxu0 0
      %327 = vmatprep.subr.bf16.mxu0 0
      %328 = vmatpush1.bf16.msra.mxu0 0
      %329 = vmatprep.subr.bf16.mxu0 0
      %330 = vmatpush1.bf16.msra.mxu0 0
      %331 = vmatprep.subr.bf16.mxu0 0
      %332 = vmatpush1.bf16.msra.mxu0 0
      %333 = vmatprep.mubr.bf16.mxu0 0
      %334 = vmatmul.mubr.bf16.gmra.mrb[0].mxu0 %v299
      %v335 = vpop.f32.mrb[0].mxu0
      %v336 = vadd.f32 %v265, %v335
      %v337 = vpop.f32.mrb[0].mxu0
      %v338 = vpop.f32.mrb[0].mxu0
      %v339 = vpop.f32.mrb[0].mxu0
      %340 = vdwg.mxu0
      %v341 = vmul.f32 %v336, 0.5
      %v342 = vmul.f32 %v336, 0.044715
      %v343 = vmul.f32 %v342, %v336
      %v344 = vmul.f32 %v343, %v336
      %v345 = vadd.f32 %v336, %v344
      %v346 = vmul.f32 %v345, 0.7978846
      %v347 = vtanh.pop %v346
      %v348 = vadd.f32 %v347, 1.0
      %v349 = vmul.f32 %v341, %v348
      %v350 = vld [vmem:[%s4] sm:$0x1]
      %v351 = vld [vmem:[%s5] sm:$0x1]
      %vm352 = vcmask 523264
      %v353 = vsel %vm352, %v349, 0.0
      %354 = vadd.xlane.f32.xlu0 %v353
      %v355 = vpop.xlane.xlu0 %354
      %v356 = vrcp.pop 64.0
      %v357 = vmul.f32 %v355, %v356
      %v358 = vsub.f32 %v349, %v357
      %v359 = vmul.f32 %v358, %v358
      %v360 = vsel %vm352, %v359, 0.0
      %361 = vadd.xlane.f32.xlu0 %v360
      %v362 = vpop.xlane.xlu0 %361
      %v363 = vmul.f32 %v362, %v356
      %v364 = vadd.f32 %v363, 1e-05
      %v365 = vrsqrt.pop %v364
      %v366 = vmul.f32 %v358, %v365
      %v368 = vlaneseq
      %v369 = vshrl.u32 %v368, 7
      %v370 = vsub.s32 0, %v369
      %v371 = vrot.slane %v350, %v370
      %v373 = vmul.f32 %v366, %v371
      %v375 = vlaneseq
      %v376 = vshrl.u32 %v375, 7
      %v377 = vsub.s32 0, %v376
      %v378 = vrot.slane %v351, %v377
      %v380 = vadd.f32 %v373, %v378
      %v381 = vld [vmem:[%s1] sm:$0xff]
      %v382 = vadd.f32 %v380, %v381
      %383 = vst.msk [vmem:[%s246] sm:$0xff] %vm352, %v382
      %p384 = scmp.lt.s32.totalorder %s17, 1
      %s385 = scalar_select %p384, %s17, 1
      %s386 = smul.addr %s385, 8
      %s387 = scalar_lea.vmem %s6, %s386
      // Predicated region
      $region45: #{enhanced_sasrec_forward.5} parent=43 // pred_check
        %p388 = pneg %p166
      $region46: #{enhanced_sasrec_forward.5} parent=43 // pred_check_branch
        %390 = sbr.rel (%p388) target = $region48
      $region47: #{enhanced_sasrec_forward.5} parent=43 // pred_region
        _
      $region48: #{enhanced_sasrec_forward.5} parent=43 // pred_fallthru
        _
    $region44: #{enhanced_sasrec_forward.5} parent=5 // pred_fallthru
      _
    %p391 = scmp.le.s32.totalorder 2, %s12
    // Predicated region
    $region49: #{enhanced_sasrec_forward.5} parent=5 // pred_check
      %p392 = pneg %p391
    $region50: #{enhanced_sasrec_forward.5} parent=5 // pred_check_branch
      %394 = sbr.rel (%p392) target = $region52
    $region51: #{enhanced_sasrec_forward.5} parent=5 // pred_region
      %s395 = ssub.s32 %s12, 2
      // Predicated region
      $region53: #{enhanced_sasrec_forward.5} parent=51 // pred_check
        %p396 = pneg %p172
      $region54: #{enhanced_sasrec_forward.5} parent=51 // pred_check_branch
        %398 = sbr.rel (%p396) target = $region56
      $region55: #{enhanced_sasrec_forward.5} parent=51 // pred_region
        %p399 = scmp.lt.s32.totalorder %s18, 1
        %s400 = scalar_select %p399, %s18, 1
        %s401 = smul.addr %s400, 8
        %s402 = scalar_lea.vmem %s6, %s401
      $region56: #{enhanced_sasrec_forward.5} parent=51 // pred_fallthru
        _
    $region52: #{enhanced_sasrec_forward.5} parent=5 // pred_fallthru
      _
  $region6: #{enhanced_sasrec_forward.5} parent=0 // loop_footer
    %s16 = sadd.s32 1, %s12
  $region7: #{enhanced_sasrec_forward.5} parent=0 // loop_footer_branch
    %11 = sbr.rel target = $region3
  $region8: #{enhanced_sasrec_forward.5} parent=0 // loop_exit
    _

// kernel: enhanced_sasrec_forward.8
$region0: #{enhanced_sasrec_forward.8}
  #allocation0 [shape = 'u32[]', space=smem, size = 0x4, offset = 0x4, fixed_abs, tag = 'smem constant byte address 0x4 - core index']
  #allocation1 [shape = 'u32[144,128]{1,0:T(1,128)}', space=vmem, size = 0x12000, scoped, tag = 'internal scratch']
  %s0 = inlined_call_operand.vmem [shape: f32[16,64], index: 0, kind: input, shape index: {}]
  %s1 = inlined_call_operand.vmem [shape: f32[1,64], index: 1, kind: input, shape index: {}]
  %s2 = inlined_call_operand.vmem [shape: f32[1,64], index: 2, kind: input, shape index: {}]
  %s3 = inlined_call_operand.vmem [shape: bf16[64,96], index: 3, kind: input, shape index: {}]
  %s4 = inlined_call_operand.vmem [shape: f32[1,96], index: 4, kind: input, shape index: {}]
  %s5 = inlined_call_operand.vmem [shape: bf16[96,128], index: 5, kind: input, shape index: {}]
  %s6 = inlined_call_operand.vmem [shape: f32[1,128], index: 6, kind: input, shape index: {}]
  %s7 = inlined_call_operand.vmem [shape: f32[16,64], index: 7, kind: output, shape index: {0}]
  %s8 = inlined_call_operand.vmem [shape: f32[16,128], index: 8, kind: output, shape index: {1}]
  %9 = xla_tuple %s7, %s8
  %s10 = sld [smem:[#allocation0]]
  $region69: #{enhanced_sasrec_forward.8} parent=0
    _
  %s12 = ssub.s32 1, %s10
  %s13 = scalar_select 0, %s12, %s10
  loop: start=0, step=1, limit=4
  $region2: #{enhanced_sasrec_forward.8} parent=0 // loop_pre_header
    _
  $region3: #{enhanced_sasrec_forward.8} parent=0 // loop_header
    %s15 = sphi 0, %s19
    %p16 = scmp.ge.s32.totalorder %s15, 4
    %s25 = sphi 0, %s27
    %s28 = sphi 0, %s25
    %s29 = sphi 0, %s28
    %s45 = sphi 0, %s29
    %s49 = sphi 0, %s49
    %s51 = sphi 0, %s49
    %s52 = sphi 0, %s51
    %s66 = sphi 0, %s52
    %s70 = sphi 0, %s70
    %s72 = sphi 0, %s70
    %s73 = sphi 0, %s72
    %s87 = sphi 0, %s73
    %s91 = sphi 0, %s91
    %s93 = sphi 0, %s91
    %s94 = sphi 0, %s93
    %s108 = sphi 0, %s94
    %s112 = sphi 0, %s112
    %s114 = sphi 0, %s112
    %s115 = sphi 0, %s114
    %s129 = sphi 0, %s115
    %s133 = sphi 0, %s133
    %s135 = sphi 0, %s133
    %s136 = sphi 0, %s135
    %s150 = sphi 0, %s136
    %s154 = sphi 0, %s154
    %s156 = sphi 0, %s154
    %s157 = sphi 0, %s156
    %s171 = sphi 0, %s157
    %s177 = sphi 0, %s179
    %s180 = sphi 0, %s177
    %s181 = sphi 0, %s180
    %s197 = sphi 0, %s181
    %s203 = sphi 0, %s205
    %s206 = sphi 0, %s203
    %s207 = sphi 0, %s206
    %s223 = sphi 0, %s207
  $region4: #{enhanced_sasrec_forward.8} parent=0 // loop_header_branch
    %18 = sbr.rel (%p16) target = $region8
  $region5: #{enhanced_sasrec_forward.8} parent=0 // loop_body
    %s20 = ssub.s32 %s15, 1
    %s21 = ssub.s32 %s15, 2
    %s22 = sadd.s32 %s15, 1
    %s23 = ssub.s32 %s15, %s22
    %p24 = scmp.eq.s32.totalorder %s23, 0
    %s26 = sadd.s32 %s25, 1
    %s27 = scalar_select %p24, %s25, %s26
    %p30 = pneg %p24
    %p31 = scmp.eq.s32.totalorder %s15, 1
    %p32 = por %p30, %p31
    %p33 = scmp.ne.s32.totalorder %s25, %s28
    %p34 = scmp.eq.s32.totalorder %s15, 0
    %p35 = por %p33, %p34
    %p36 = scmp.ne.s32.totalorder %s25, %s28
    %p37 = scmp.eq.s32.totalorder %s20, 1
    %p38 = por %p36, %p37
    %p39 = scmp.ne.s32.totalorder %s28, %s29
    %p40 = scmp.eq.s32.totalorder %s20, 0
    %p41 = por %p39, %p40
    %p42 = scmp.ne.s32.totalorder %s28, %s29
    %p43 = scmp.eq.s32.totalorder %s21, 1
    %p44 = por %p42, %p43
    %p46 = scmp.ne.s32.totalorder %s29, %s45
    %p47 = scmp.eq.s32.totalorder %s21, 0
    %p48 = por %p46, %p47
    %s50 = sadd.s32 %s49, 1
    %p53 = scmp.eq.s32.totalorder %s15, 1
    %p54 = scmp.ne.s32.totalorder %s49, %s51
    %p55 = scmp.eq.s32.totalorder %s15, 0
    %p56 = por %p54, %p55
    %p57 = scmp.ne.s32.totalorder %s49, %s51
    %p58 = scmp.eq.s32.totalorder %s20, 1
    %p59 = por %p57, %p58
    %p60 = scmp.ne.s32.totalorder %s51, %s52
    %p61 = scmp.eq.s32.totalorder %s20, 0
    %p62 = por %p60, %p61
    %p63 = scmp.ne.s32.totalorder %s51, %s52
    %p64 = scmp.eq.s32.totalorder %s21, 1
    %p65 = por %p63, %p64
    %p67 = scmp.ne.s32.totalorder %s52, %s66
    %p68 = scmp.eq.s32.totalorder %s21, 0
    %p69 = por %p67, %p68
    %s71 = sadd.s32 %s70, 1
    %p74 = scmp.eq.s32.totalorder %s15, 1
    %p75 = scmp.ne.s32.totalorder %s70, %s72
    %p76 = scmp.eq.s32.totalorder %s15, 0
    %p77 = por %p75, %p76
    %p78 = scmp.ne.s32.totalorder %s70, %s72
    %p79 = scmp.eq.s32.totalorder %s20, 1
    %p80 = por %p78, %p79
    %p81 = scmp.ne.s32.totalorder %s72, %s73
    %p82 = scmp.eq.s32.totalorder %s20, 0
    %p83 = por %p81, %p82
    %p84 = scmp.ne.s32.totalorder %s72, %s73
    %p85 = scmp.eq.s32.totalorder %s21, 1
    %p86 = por %p84, %p85
    %p88 = scmp.ne.s32.totalorder %s73, %s87
    %p89 = scmp.eq.s32.totalorder %s21, 0
    %p90 = por %p88, %p89
    %s92 = sadd.s32 %s91, 1
    %p95 = scmp.eq.s32.totalorder %s15, 1
    %p96 = scmp.ne.s32.totalorder %s91, %s93
    %p97 = scmp.eq.s32.totalorder %s15, 0
    %p98 = por %p96, %p97
    %p99 = scmp.ne.s32.totalorder %s91, %s93
    %p100 = scmp.eq.s32.totalorder %s20, 1
    %p101 = por %p99, %p100
    %p102 = scmp.ne.s32.totalorder %s93, %s94
    %p103 = scmp.eq.s32.totalorder %s20, 0
    %p104 = por %p102, %p103
    %p105 = scmp.ne.s32.totalorder %s93, %s94
    %p106 = scmp.eq.s32.totalorder %s21, 1
    %p107 = por %p105, %p106
    %p109 = scmp.ne.s32.totalorder %s94, %s108
    %p110 = scmp.eq.s32.totalorder %s21, 0
    %p111 = por %p109, %p110
    %s113 = sadd.s32 %s112, 1
    %p116 = scmp.eq.s32.totalorder %s15, 1
    %p117 = scmp.ne.s32.totalorder %s112, %s114
    %p118 = scmp.eq.s32.totalorder %s15, 0
    %p119 = por %p117, %p118
    %p120 = scmp.ne.s32.totalorder %s112, %s114
    %p121 = scmp.eq.s32.totalorder %s20, 1
    %p122 = por %p120, %p121
    %p123 = scmp.ne.s32.totalorder %s114, %s115
    %p124 = scmp.eq.s32.totalorder %s20, 0
    %p125 = por %p123, %p124
    %p126 = scmp.ne.s32.totalorder %s114, %s115
    %p127 = scmp.eq.s32.totalorder %s21, 1
    %p128 = por %p126, %p127
    %p130 = scmp.ne.s32.totalorder %s115, %s129
    %p131 = scmp.eq.s32.totalorder %s21, 0
    %p132 = por %p130, %p131
    %s134 = sadd.s32 %s133, 1
    %p137 = scmp.eq.s32.totalorder %s15, 1
    %p138 = scmp.ne.s32.totalorder %s133, %s135
    %p139 = scmp.eq.s32.totalorder %s15, 0
    %p140 = por %p138, %p139
    %p141 = scmp.ne.s32.totalorder %s133, %s135
    %p142 = scmp.eq.s32.totalorder %s20, 1
    %p143 = por %p141, %p142
    %p144 = scmp.ne.s32.totalorder %s135, %s136
    %p145 = scmp.eq.s32.totalorder %s20, 0
    %p146 = por %p144, %p145
    %p147 = scmp.ne.s32.totalorder %s135, %s136
    %p148 = scmp.eq.s32.totalorder %s21, 1
    %p149 = por %p147, %p148
    %p151 = scmp.ne.s32.totalorder %s136, %s150
    %p152 = scmp.eq.s32.totalorder %s21, 0
    %p153 = por %p151, %p152
    %s155 = sadd.s32 %s154, 1
    %p158 = scmp.eq.s32.totalorder %s15, 1
    %p159 = scmp.ne.s32.totalorder %s154, %s156
    %p160 = scmp.eq.s32.totalorder %s15, 0
    %p161 = por %p159, %p160
    %p162 = scmp.ne.s32.totalorder %s154, %s156
    %p163 = scmp.eq.s32.totalorder %s20, 1
    %p164 = por %p162, %p163
    %p165 = scmp.ne.s32.totalorder %s156, %s157
    %p166 = scmp.eq.s32.totalorder %s20, 0
    %p167 = por %p165, %p166
    %p168 = scmp.ne.s32.totalorder %s156, %s157
    %p169 = scmp.eq.s32.totalorder %s21, 1
    %p170 = por %p168, %p169
    %p172 = scmp.ne.s32.totalorder %s157, %s171
    %p173 = scmp.eq.s32.totalorder %s21, 0
    %p174 = por %p172, %p173
    %s175 = ssub.s32 %s15, %s22
    %p176 = scmp.eq.s32.totalorder %s175, 0
    %s178 = sadd.s32 %s177, 1
    %s179 = scalar_select %p176, %s177, %s178
    %p182 = pneg %p176
    %p183 = scmp.eq.s32.totalorder %s15, 1
    %p184 = por %p182, %p183
    %p185 = scmp.ne.s32.totalorder %s177, %s180
    %p186 = scmp.eq.s32.totalorder %s15, 0
    %p187 = por %p185, %p186
    %p188 = scmp.ne.s32.totalorder %s177, %s180
    %p189 = scmp.eq.s32.totalorder %s20, 1
    %p190 = por %p188, %p189
    %p191 = scmp.ne.s32.totalorder %s180, %s181
    %p192 = scmp.eq.s32.totalorder %s20, 0
    %p193 = por %p191, %p192
    %p194 = scmp.ne.s32.totalorder %s180, %s181
    %p195 = scmp.eq.s32.totalorder %s21, 1
    %p196 = por %p194, %p195
    %p198 = scmp.ne.s32.totalorder %s181, %s197
    %p199 = scmp.eq.s32.totalorder %s21, 0
    %p200 = por %p198, %p199
    %s201 = ssub.s32 %s15, %s22
    %p202 = scmp.eq.s32.totalorder %s201, 0
    %s204 = sadd.s32 %s203, 1
    %s205 = scalar_select %p202, %s203, %s204
    %p208 = pneg %p202
    %p209 = scmp.eq.s32.totalorder %s15, 1
    %p210 = por %p208, %p209
    %p211 = scmp.ne.s32.totalorder %s203, %s206
    %p212 = scmp.eq.s32.totalorder %s15, 0
    %p213 = por %p211, %p212
    %p214 = scmp.ne.s32.totalorder %s203, %s206
    %p215 = scmp.eq.s32.totalorder %s20, 1
    %p216 = por %p214, %p215
    %p217 = scmp.ne.s32.totalorder %s206, %s207
    %p218 = scmp.eq.s32.totalorder %s20, 0
    %p219 = por %p217, %p218
    %p220 = scmp.ne.s32.totalorder %s206, %s207
    %p221 = scmp.eq.s32.totalorder %s21, 1
    %p222 = por %p220, %p221
    %p224 = scmp.ne.s32.totalorder %s207, %s223
    %p225 = scmp.eq.s32.totalorder %s21, 0
    %p226 = por %p224, %p225
    %p227 = scmp.le.s32.totalorder 1, %s15
    %p228 = scmp.lt.s32.totalorder %s15, 3
    %p229 = pnand %p227, %p228
    %p230 = pneg %p229
    // Predicated region
    $region9: #{enhanced_sasrec_forward.8} parent=5 // pred_check
      _
    $region10: #{enhanced_sasrec_forward.8} parent=5 // pred_check_branch
      %232 = sbr.rel (%p229) target = $region12
    $region11: #{enhanced_sasrec_forward.8} parent=5 // pred_region
      %s233 = ssub.s32 %s15, 1
      // Predicated region
      $region13: #{enhanced_sasrec_forward.8} parent=11 // pred_check
        %p234 = pneg %p62
      $region14: #{enhanced_sasrec_forward.8} parent=11 // pred_check_branch
        %236 = sbr.rel (%p234) target = $region16
      $region15: #{enhanced_sasrec_forward.8} parent=11 // pred_region
        _
      $region16: #{enhanced_sasrec_forward.8} parent=11 // pred_fallthru
        _
      // Predicated region
      $region17: #{enhanced_sasrec_forward.8} parent=11 // pred_check
        %p237 = pneg %p83
      $region18: #{enhanced_sasrec_forward.8} parent=11 // pred_check_branch
        %239 = sbr.rel (%p237) target = $region20
      $region19: #{enhanced_sasrec_forward.8} parent=11 // pred_region
        _
      $region20: #{enhanced_sasrec_forward.8} parent=11 // pred_fallthru
        _
      // Predicated region
      $region21: #{enhanced_sasrec_forward.8} parent=11 // pred_check
        %p240 = pneg %p104
      $region22: #{enhanced_sasrec_forward.8} parent=11 // pred_check_branch
        %242 = sbr.rel (%p240) target = $region24
      $region23: #{enhanced_sasrec_forward.8} parent=11 // pred_region
        _
      $region24: #{enhanced_sasrec_forward.8} parent=11 // pred_fallthru
        _
      // Predicated region
      $region25: #{enhanced_sasrec_forward.8} parent=11 // pred_check
        %p243 = pneg %p125
      $region26: #{enhanced_sasrec_forward.8} parent=11 // pred_check_branch
        %245 = sbr.rel (%p243) target = $region28
      $region27: #{enhanced_sasrec_forward.8} parent=11 // pred_region
        _
      $region28: #{enhanced_sasrec_forward.8} parent=11 // pred_fallthru
        _
      // Predicated region
      $region29: #{enhanced_sasrec_forward.8} parent=11 // pred_check
        %p246 = pneg %p146
      $region30: #{enhanced_sasrec_forward.8} parent=11 // pred_check_branch
        %248 = sbr.rel (%p246) target = $region32
      $region31: #{enhanced_sasrec_forward.8} parent=11 // pred_region
        _
      $region32: #{enhanced_sasrec_forward.8} parent=11 // pred_fallthru
        _
      // Predicated region
      $region33: #{enhanced_sasrec_forward.8} parent=11 // pred_check
        %p249 = pneg %p167
      $region34: #{enhanced_sasrec_forward.8} parent=11 // pred_check_branch
        %251 = sbr.rel (%p249) target = $region36
      $region35: #{enhanced_sasrec_forward.8} parent=11 // pred_region
        _
      $region36: #{enhanced_sasrec_forward.8} parent=11 // pred_fallthru
        _
    $region12: #{enhanced_sasrec_forward.8} parent=5 // pred_fallthru
      _
    %p252 = scmp.lt.s32.totalorder %s15, 2
    // Predicated region
    $region37: #{enhanced_sasrec_forward.8} parent=5 // pred_check
      %p253 = pneg %p252
    $region38: #{enhanced_sasrec_forward.8} parent=5 // pred_check_branch
      %255 = sbr.rel (%p253) target = $region40
    $region39: #{enhanced_sasrec_forward.8} parent=5 // pred_region
      // Predicated region
      $region41: #{enhanced_sasrec_forward.8} parent=39 // pred_check
        %p256 = pneg %p35
      $region42: #{enhanced_sasrec_forward.8} parent=39 // pred_check_branch
        %258 = sbr.rel (%p256) target = $region44
      $region43: #{enhanced_sasrec_forward.8} parent=39 // pred_region
        %p259 = scmp.lt.s32.totalorder %s15, 1
        %s260 = scalar_select %p259, %s15, 1
        %s261 = smul.addr %s260, 8
        %s262 = scalar_lea.vmem %s0, %s261
      $region44: #{enhanced_sasrec_forward.8} parent=39 // pred_fallthru
        _
    $region40: #{enhanced_sasrec_forward.8} parent=5 // pred_fallthru
      _
    %p263 = scmp.le.s32.totalorder 1, %s15
    %p264 = scmp.lt.s32.totalorder %s15, 3
    %p265 = pnand %p263, %p264
    %p266 = pneg %p265
    // Predicated region
    $region45: #{enhanced_sasrec_forward.8} parent=5 // pred_check
      _
    $region46: #{enhanced_sasrec_forward.8} parent=5 // pred_check_branch
      %268 = sbr.rel (%p265) target = $region48
    $region47: #{enhanced_sasrec_forward.8} parent=5 // pred_region
      %s269 = ssub.s32 %s15, 1
      %p270 = scmp.lt.s32.totalorder %s20, 1
      %s271 = scalar_select %p270, %s20, 1
      %s272 = smul.addr %s271, 8
      %s273 = scalar_lea.vmem %s0, %s272
      %p274 = pneg %p41
      %p275 = pneg %p38
      %p276 = pneg %p62
      %p277 = pneg %p59
      %p278 = pneg %p83
      %p279 = pneg %p80
      %p280 = pneg %p104
      %p281 = pneg %p101
      %p282 = pneg %p125
      %p283 = pneg %p122
      %p284 = pneg %p146
      %p285 = pneg %p143
      %p286 = pneg %p167
      %p287 = pneg %p164
      %p288 = pneg %p193
      %p289 = pneg %p190
      %p290 = scmp.lt.s32.totalorder %s20, 1
      %s291 = scalar_select %p290, %s20, 1
      %s292 = smul.addr %s291, 8
      %s293 = scalar_lea.vmem %s7, %s292
      %p294 = pneg %p219
      %p295 = pneg %p216
      %p296 = scmp.lt.s32.totalorder %s20, 1
      %s297 = scalar_select %p296, %s20, 1
      %s298 = smul.addr %s297, 8
      %s299 = scalar_lea.vmem %s8, %s298
      %p300 = scmp.lt.s32.totalorder %s20, 1
      %s301 = scalar_select %p300, %s20, 1
      %s302 = smul.addr %s301, 8
      %s303 = scalar_lea.vmem %s0, %s302
      %p304 = scmp.lt.s32.totalorder %s20, 1
      %s305 = scalar_select %p304, %s20, 1
      %s306 = smul.addr %s305, 8
      %s307 = scalar_lea.vmem %s7, %s306
      %p308 = scmp.lt.s32.totalorder %s20, 1
      %s309 = scalar_select %p308, %s20, 1
      %s310 = smul.addr %s309, 8
      %s311 = scalar_lea.vmem %s8, %s310
      %v313 = vld [vmem:[%s303] sm:$0xff]
      %v314 = vld [vmem:[%s1] sm:$0x1]
      %v315 = vld [vmem:[%s2] sm:$0x1]
      %vm316 = vcmask 523264
      %v317 = vsel %vm316, %v313, 0.0
      %318 = vadd.xlane.f32.xlu0 %v317
      %v319 = vpop.xlane.xlu0 %318
      %v320 = vrcp.pop 64.0
      %v321 = vmul.f32 %v319, %v320
      %v322 = vsub.f32 %v313, %v321
      %v323 = vmul.f32 %v322, %v322
      %v324 = vsel %vm316, %v323, 0.0
      %325 = vadd.xlane.f32.xlu0 %v324
      %v326 = vpop.xlane.xlu0 %325
      %v327 = vmul.f32 %v326, %v320
      %v328 = vadd.f32 %v327, 1e-05
      %v329 = vrsqrt.pop %v328
      %v330 = vmul.f32 %v322, %v329
      %v332 = vlaneseq
      %v333 = vshrl.u32 %v332, 7
      %v334 = vsub.s32 0, %v333
      %v335 = vrot.slane %v314, %v334
      %v337 = vmul.f32 %v330, %v335
      %v339 = vlaneseq
      %v340 = vshrl.u32 %v339, 7
      %v341 = vsub.s32 0, %v340
      %v342 = vrot.slane %v315, %v341
      %v344 = vadd.f32 %v337, %v342
      %345 = vst.msk [vmem:[%s307] sm:$0xff] %vm316, %v344
      %v346 = vpack.c.bf16 %v344, %v344
      %v347 = vld [vmem:[%s3] sm:$0xf]
      %v348 = vld [vmem:[%s3 + $0x4] sm:$0xf]
      %v349 = vld [vmem:[%s3 + $0x8] sm:$0xf]
      %v350 = vld [vmem:[%s3 + $0xc] sm:$0xf]
      %v351 = vld [vmem:[%s3 + $0x10] sm:$0xf]
      %v352 = vld [vmem:[%s3 + $0x14] sm:$0xf]
      %v353 = vld [vmem:[%s3 + $0x18] sm:$0xf]
      %v354 = vld [vmem:[%s3 + $0x1c] sm:$0xf]
      %v355 = vld [vmem:[%s4] sm:$0x1]
      %v357 = vlaneseq
      %v358 = vshrl.u32 %v357, 7
      %v359 = vsub.s32 0, %v358
      %v360 = vrot.slane %v355, %v359
      %v370 = vunpack.c.l.b16 %v347
      %v371 = vunpack.c.l.b16 %v348
      %v372 = vunpack.c.l.b16 %v349
      %v373 = vunpack.c.l.b16 %v350
      %v374 = vunpack.c.l.b16 %v351
      %v375 = vunpack.c.l.b16 %v352
      %v376 = vunpack.c.l.b16 %v353
      %v377 = vunpack.c.l.b16 %v354
      %v378 = vpack.c.b16 %v371, %v370
      %v379 = vpack.c.b16 %v373, %v372
      %v380 = vpack.c.b16 %v375, %v374
      %v381 = vpack.c.b16 %v377, %v376
      %v387 = vsel %vm316, %v346, 0
      %389 = vmatprep.subr.bf16.mxu0 0
      %390 = vmatpush1.bf16.msra.mxu0 %v378
      %391 = vmatprep.subr.bf16.mxu0 0
      %392 = vmatpush1.bf16.msra.mxu0 %v379
      %393 = vmatprep.subr.bf16.mxu0 0
      %394 = vmatpush1.bf16.msra.mxu0 %v380
      %395 = vmatprep.subr.bf16.mxu0 0
      %396 = vmatpush1.bf16.msra.mxu0 %v381
      %397 = vmatprep.subr.bf16.mxu0 0
      %398 = vmatpush1.bf16.msra.mxu0 0
      %399 = vmatprep.subr.bf16.mxu0 0
      %400 = vmatpush1.bf16.msra.mxu0 0
      %401 = vmatprep.subr.bf16.mxu0 0
      %402 = vmatpush1.bf16.msra.mxu0 0
      %403 = vmatprep.subr.bf16.mxu0 0
      %404 = vmatpush1.bf16.msra.mxu0 0
      %405 = vmatprep.subr.bf16.mxu0 0
      %406 = vmatpush1.bf16.msra.mxu0 0
      %407 = vmatprep.subr.bf16.mxu0 0
      %408 = vmatpush1.bf16.msra.mxu0 0
      %409 = vmatprep.subr.bf16.mxu0 0
      %410 = vmatpush1.bf16.msra.mxu0 0
      %411 = vmatprep.subr.bf16.mxu0 0
      %412 = vmatpush1.bf16.msra.mxu0 0
      %413 = vmatprep.subr.bf16.mxu0 0
      %414 = vmatpush1.bf16.msra.mxu0 0
      %415 = vmatprep.subr.bf16.mxu0 0
      %416 = vmatpush1.bf16.msra.mxu0 0
      %417 = vmatprep.subr.bf16.mxu0 0
      %418 = vmatpush1.bf16.msra.mxu0 0
      %419 = vmatprep.subr.bf16.mxu0 0
      %420 = vmatpush1.bf16.msra.mxu0 0
      %421 = vmatprep.mubr.bf16.mxu0 0
      %422 = vmatmul.mubr.bf16.gmra.mrb[0].mxu0 %v387
      %v423 = vpop.f32.mrb[0].mxu0
      %v424 = vadd.f32 %v360, %v423
      %v425 = vpop.f32.mrb[0].mxu0
      %v426 = vpop.f32.mrb[0].mxu0
      %v427 = vpop.f32.mrb[0].mxu0
      %428 = vdwg.mxu0
      %v429 = vmul.f32 %v424, 0.5
      %v430 = vmul.f32 %v424, 0.044715
      %v431 = vmul.f32 %v430, %v424
      %v432 = vmul.f32 %v431, %v424
      %v433 = vadd.f32 %v424, %v432
      %v434 = vmul.f32 %v433, 0.7978846
      %v435 = vtanh.pop %v434
      %v436 = vadd.f32 %v435, 1.0
      %v437 = vmul.f32 %v429, %v436
      %v438 = vpack.c.bf16 %v437, %v437
      %v439 = vld [vmem:[%s5] sm:$0xf]
      %v440 = vld [vmem:[%s5 + $0x4] sm:$0xf]
      %v441 = vld [vmem:[%s5 + $0x8] sm:$0xf]
      %v442 = vld [vmem:[%s5 + $0xc] sm:$0xf]
      %v443 = vld [vmem:[%s5 + $0x10] sm:$0xf]
      %v444 = vld [vmem:[%s5 + $0x14] sm:$0xf]
      %v445 = vld [vmem:[%s5 + $0x18] sm:$0xf]
      %v446 = vld [vmem:[%s5 + $0x1c] sm:$0xf]
      %v447 = vld [vmem:[%s5 + $0x20] sm:$0xf]
      %v448 = vld [vmem:[%s5 + $0x24] sm:$0xf]
      %v449 = vld [vmem:[%s5 + $0x28] sm:$0xf]
      %v450 = vld [vmem:[%s5 + $0x2c] sm:$0xf]
      %v451 = vld [vmem:[%s6] sm:$0x1]
      %v453 = vlaneseq
      %v454 = vshrl.u32 %v453, 7
      %v455 = vsub.s32 0, %v454
      %v456 = vrot.slane %v451, %v455
      %v470 = vunpack.c.l.b16 %v439
      %v471 = vunpack.c.l.b16 %v440
      %v472 = vunpack.c.l.b16 %v441
      %v473 = vunpack.c.l.b16 %v442
      %v474 = vunpack.c.l.b16 %v443
      %v475 = vunpack.c.l.b16 %v444
      %v476 = vunpack.c.l.b16 %v445
      %v477 = vunpack.c.l.b16 %v446
      %v478 = vunpack.c.l.b16 %v447
      %v479 = vunpack.c.l.b16 %v448
      %v480 = vunpack.c.l.b16 %v449
      %v481 = vunpack.c.l.b16 %v450
      %v482 = vpack.c.b16 %v471, %v470
      %v483 = vpack.c.b16 %v473, %v472
      %v484 = vpack.c.b16 %v475, %v474
      %v485 = vpack.c.b16 %v477, %v476
      %v486 = vpack.c.b16 %v479, %v478
      %v487 = vpack.c.b16 %v481, %v480
      %vm494 = vcmask 785408
      %v496 = vsel %vm494, %v438, 0
      %498 = vmatprep.subr.bf16.mxu0 0
      %499 = vmatpush1.bf16.msra.mxu0 %v482
      %500 = vmatprep.subr.bf16.mxu0 0
      %501 = vmatpush1.bf16.msra.mxu0 %v483
      %502 = vmatprep.subr.bf16.mxu0 0
      %503 = vmatpush1.bf16.msra.mxu0 %v484
      %504 = vmatprep.subr.bf16.mxu0 0
      %505 = vmatpush1.bf16.msra.mxu0 %v485
      %506 = vmatprep.subr.bf16.mxu0 0
      %507 = vmatpush1.bf16.msra.mxu0 %v486
      %508 = vmatprep.subr.bf16.mxu0 0
      %509 = vmatpush1.bf16.msra.mxu0 %v487
      %510 = vmatprep.subr.bf16.mxu0 0
      %511 = vmatpush1.bf16.msra.mxu0 0
      %512 = vmatprep.subr.bf16.mxu0 0
      %513 = vmatpush1.bf16.msra.mxu0 0
      %514 = vmatprep.subr.bf16.mxu0 0
      %515 = vmatpush1.bf16.msra.mxu0 0
      %516 = vmatprep.subr.bf16.mxu0 0
      %517 = vmatpush1.bf16.msra.mxu0 0
      %518 = vmatprep.subr.bf16.mxu0 0
      %519 = vmatpush1.bf16.msra.mxu0 0
      %520 = vmatprep.subr.bf16.mxu0 0
      %521 = vmatpush1.bf16.msra.mxu0 0
      %522 = vmatprep.subr.bf16.mxu0 0
      %523 = vmatpush1.bf16.msra.mxu0 0
      %524 = vmatprep.subr.bf16.mxu0 0
      %525 = vmatpush1.bf16.msra.mxu0 0
      %526 = vmatprep.subr.bf16.mxu0 0
      %527 = vmatpush1.bf16.msra.mxu0 0
      %528 = vmatprep.subr.bf16.mxu0 0
      %529 = vmatpush1.bf16.msra.mxu0 0
      %530 = vmatprep.mubr.bf16.mxu0 0
      %531 = vmatmul.mubr.bf16.gmra.mrb[0].mxu0 %v496
      %v532 = vpop.f32.mrb[0].mxu0
      %v533 = vadd.f32 %v456, %v532
      %v534 = vpop.f32.mrb[0].mxu0
      %v535 = vpop.f32.mrb[0].mxu0
      %v536 = vpop.f32.mrb[0].mxu0
      %537 = vdwg.mxu0
      %v538 = vlaneseq
      %v539 = vand.u32 %v538, 127
      %vm540 = vcmp.eq.s32.totalorder %v539, 0
      %v541 = vsub.f32 0.0, %v533
      %v542 = vmul.f32 %v541, 1.442695
      %v543 = vpow.pop %v542
      %v544 = vadd.f32 %v543, 1.0
      %v545 = vrcp.pop %v544
      %v546 = vmul.f32 1.0, %v545
      %v547 = vmul.f32 %v546, 5.0
      %v548 = vsel %vm540, %v547, %v533
      %549 = vst [vmem:[%s311] sm:$0xff] %v548
      %p550 = scmp.lt.s32.totalorder %s20, 1
      %s551 = scalar_select %p550, %s20, 1
      %s552 = smul.addr %s551, 8
      %s553 = scalar_lea.vmem %s7, %s552
      %p554 = scmp.lt.s32.totalorder %s20, 1
      %s555 = scalar_select %p554, %s20, 1
      %s556 = smul.addr %s555, 8
      %s557 = scalar_lea.vmem %s8, %s556
      // Predicated region
      $region49: #{enhanced_sasrec_forward.8} parent=47 // pred_check
        %p558 = pneg %p190
      $region50: #{enhanced_sasrec_forward.8} parent=47 // pred_check_branch
        %560 = sbr.rel (%p558) target = $region52
      $region51: #{enhanced_sasrec_forward.8} parent=47 // pred_region
        _
      $region52: #{enhanced_sasrec_forward.8} parent=47 // pred_fallthru
        _
      // Predicated region
      $region53: #{enhanced_sasrec_forward.8} parent=47 // pred_check
        %p561 = pneg %p216
      $region54: #{enhanced_sasrec_forward.8} parent=47 // pred_check_branch
        %563 = sbr.rel (%p561) target = $region56
      $region55: #{enhanced_sasrec_forward.8} parent=47 // pred_region
        _
      $region56: #{enhanced_sasrec_forward.8} parent=47 // pred_fallthru
        _
    $region48: #{enhanced_sasrec_forward.8} parent=5 // pred_fallthru
      _
    %p564 = scmp.le.s32.totalorder 2, %s15
    // Predicated region
    $region57: #{enhanced_sasrec_forward.8} parent=5 // pred_check
      %p565 = pneg %p564
    $region58: #{enhanced_sasrec_forward.8} parent=5 // pred_check_branch
      %567 = sbr.rel (%p565) target = $region60
    $region59: #{enhanced_sasrec_forward.8} parent=5 // pred_region
      %s568 = ssub.s32 %s15, 2
      // Predicated region
      $region61: #{enhanced_sasrec_forward.8} parent=59 // pred_check
        %p569 = pneg %p196
      $region62: #{enhanced_sasrec_forward.8} parent=59 // pred_check_branch
        %571 = sbr.rel (%p569) target = $region64
      $region63: #{enhanced_sasrec_forward.8} parent=59 // pred_region
        %p572 = scmp.lt.s32.totalorder %s21, 1
        %s573 = scalar_select %p572, %s21, 1
        %s574 = smul.addr %s573, 8
        %s575 = scalar_lea.vmem %s7, %s574
      $region64: #{enhanced_sasrec_forward.8} parent=59 // pred_fallthru
        _
      // Predicated region
      $region65: #{enhanced_sasrec_forward.8} parent=59 // pred_check
        %p576 = pneg %p222
      $region66: #{enhanced_sasrec_forward.8} parent=59 // pred_check_branch
        %578 = sbr.rel (%p576) target = $region68
      $region67: #{enhanced_sasrec_forward.8} parent=59 // pred_region
        %p579 = scmp.lt.s32.totalorder %s21, 1
        %s580 = scalar_select %p579, %s21, 1
        %s581 = smul.addr %s580, 8
        %s582 = scalar_lea.vmem %s8, %s581
      $region68: #{enhanced_sasrec_forward.8} parent=59 // pred_fallthru
        _
    $region60: #{enhanced_sasrec_forward.8} parent=5 // pred_fallthru
      _
  $region6: #{enhanced_sasrec_forward.8} parent=0 // loop_footer
    %s19 = sadd.s32 1, %s15
  $region7: #{enhanced_sasrec_forward.8} parent=0 // loop_footer_branch
    %14 = sbr.rel target = $region3
  $region8: #{enhanced_sasrec_forward.8} parent=0 // loop_exit
    _

// kernel: enhanced_sasrec_forward.6
$region0: #{enhanced_sasrec_forward.6}
  #allocation0 [shape = 'u32[]', space=smem, size = 0x4, offset = 0x4, fixed_abs, tag = 'smem constant byte address 0x4 - core index']
  #allocation1 [shape = 'u32[144,128]{1,0:T(1,128)}', space=vmem, size = 0x12000, scoped, tag = 'internal scratch']
  %s0 = inlined_call_operand.vmem [shape: f32[2,8,64], index: 0, kind: input, shape index: {}]
  %s1 = inlined_call_operand.vmem [shape: f32[2,1,8], index: 1, kind: input, shape index: {}]
  %s2 = inlined_call_operand.vmem [shape: bf16[64,192], index: 2, kind: input, shape index: {}]
  %s3 = inlined_call_operand.vmem [shape: bf16[64,64], index: 3, kind: input, shape index: {}]
  %s4 = inlined_call_operand.vmem [shape: f32[1,64], index: 4, kind: input, shape index: {}]
  %s5 = inlined_call_operand.vmem [shape: f32[1,64], index: 5, kind: input, shape index: {}]
  %s6 = inlined_call_operand.vmem [shape: f32[1,64], index: 6, kind: input, shape index: {}]
  %s7 = inlined_call_operand.vmem [shape: bf16[64,128], index: 7, kind: input, shape index: {}]
  %s8 = inlined_call_operand.vmem [shape: f32[1,128], index: 8, kind: input, shape index: {}]
  %s9 = inlined_call_operand.vmem [shape: bf16[128,64], index: 9, kind: input, shape index: {}]
  %s10 = inlined_call_operand.vmem [shape: f32[1,64], index: 10, kind: input, shape index: {}]
  %s11 = inlined_call_operand.vmem [shape: f32[1,64], index: 11, kind: input, shape index: {}]
  %s12 = inlined_call_operand.vmem [shape: f32[1,64], index: 12, kind: input, shape index: {}]
  %s13 = inlined_call_operand.vmem [shape: f32[2,8,64], index: 13, kind: output, shape index: {}]
  %s14 = sld [smem:[#allocation0]]
  $region85: #{enhanced_sasrec_forward.6} parent=0
    _
  %s16 = ssub.s32 1, %s14
  %s17 = scalar_select 0, %s16, %s14
  loop: start=0, step=1, limit=4
  $region2: #{enhanced_sasrec_forward.6} parent=0 // loop_pre_header
    _
  $region3: #{enhanced_sasrec_forward.6} parent=0 // loop_header
    %s19 = sphi 0, %s23
    %p20 = scmp.ge.s32.totalorder %s19, 4
    %s29 = sphi 0, %s31
    %s32 = sphi 0, %s29
    %s33 = sphi 0, %s32
    %s49 = sphi 0, %s33
    %s55 = sphi 0, %s57
    %s58 = sphi 0, %s55
    %s59 = sphi 0, %s58
    %s75 = sphi 0, %s59
    %s79 = sphi 0, %s79
    %s81 = sphi 0, %s79
    %s82 = sphi 0, %s81
    %s96 = sphi 0, %s82
    %s100 = sphi 0, %s100
    %s102 = sphi 0, %s100
    %s103 = sphi 0, %s102
    %s117 = sphi 0, %s103
    %s121 = sphi 0, %s121
    %s123 = sphi 0, %s121
    %s124 = sphi 0, %s123
    %s138 = sphi 0, %s124
    %s142 = sphi 0, %s142
    %s144 = sphi 0, %s142
    %s145 = sphi 0, %s144
    %s159 = sphi 0, %s145
    %s163 = sphi 0, %s163
    %s165 = sphi 0, %s163
    %s166 = sphi 0, %s165
    %s180 = sphi 0, %s166
    %s184 = sphi 0, %s184
    %s186 = sphi 0, %s184
    %s187 = sphi 0, %s186
    %s201 = sphi 0, %s187
    %s205 = sphi 0, %s205
    %s207 = sphi 0, %s205
    %s208 = sphi 0, %s207
    %s222 = sphi 0, %s208
    %s226 = sphi 0, %s226
    %s228 = sphi 0, %s226
    %s229 = sphi 0, %s228
    %s243 = sphi 0, %s229
    %s247 = sphi 0, %s247
    %s249 = sphi 0, %s247
    %s250 = sphi 0, %s249
    %s264 = sphi 0, %s250
    %s268 = sphi 0, %s268
    %s270 = sphi 0, %s268
    %s271 = sphi 0, %s270
    %s285 = sphi 0, %s271
    %s289 = sphi 0, %s289
    %s291 = sphi 0, %s289
    %s292 = sphi 0, %s291
    %s306 = sphi 0, %s292
    %s312 = sphi 0, %s314
    %s315 = sphi 0, %s312
    %s316 = sphi 0, %s315
    %s332 = sphi 0, %s316
  $region4: #{enhanced_sasrec_forward.6} parent=0 // loop_header_branch
    %22 = sbr.rel (%p20) target = $region8
  $region5: #{enhanced_sasrec_forward.6} parent=0 // loop_body
    %s24 = ssub.s32 %s19, 1
    %s25 = ssub.s32 %s19, 2
    %s26 = sadd.s32 %s19, 1
    %s27 = ssub.s32 %s19, %s26
    %p28 = scmp.eq.s32.totalorder %s27, 0
    %s30 = sadd.s32 %s29, 1
    %s31 = scalar_select %p28, %s29, %s30
    %p34 = pneg %p28
    %p35 = scmp.eq.s32.totalorder %s19, 1
    %p36 = por %p34, %p35
    %p37 = scmp.ne.s32.totalorder %s29, %s32
    %p38 = scmp.eq.s32.totalorder %s19, 0
    %p39 = por %p37, %p38
    %p40 = scmp.ne.s32.totalorder %s29, %s32
    %p41 = scmp.eq.s32.totalorder %s24, 1
    %p42 = por %p40, %p41
    %p43 = scmp.ne.s32.totalorder %s32, %s33
    %p44 = scmp.eq.s32.totalorder %s24, 0
    %p45 = por %p43, %p44
    %p46 = scmp.ne.s32.totalorder %s32, %s33
    %p47 = scmp.eq.s32.totalorder %s25, 1
    %p48 = por %p46, %p47
    %p50 = scmp.ne.s32.totalorder %s33, %s49
    %p51 = scmp.eq.s32.totalorder %s25, 0
    %p52 = por %p50, %p51
    %s53 = ssub.s32 %s19, %s26
    %p54 = scmp.eq.s32.totalorder %s53, 0
    %s56 = sadd.s32 %s55, 1
    %s57 = scalar_select %p54, %s55, %s56
    %p60 = pneg %p54
    %p61 = scmp.eq.s32.totalorder %s19, 1
    %p62 = por %p60, %p61
    %p63 = scmp.ne.s32.totalorder %s55, %s58
    %p64 = scmp.eq.s32.totalorder %s19, 0
    %p65 = por %p63, %p64
    %p66 = scmp.ne.s32.totalorder %s55, %s58
    %p67 = scmp.eq.s32.totalorder %s24, 1
    %p68 = por %p66, %p67
    %p69 = scmp.ne.s32.totalorder %s58, %s59
    %p70 = scmp.eq.s32.totalorder %s24, 0
    %p71 = por %p69, %p70
    %p72 = scmp.ne.s32.totalorder %s58, %s59
    %p73 = scmp.eq.s32.totalorder %s25, 1
    %p74 = por %p72, %p73
    %p76 = scmp.ne.s32.totalorder %s59, %s75
    %p77 = scmp.eq.s32.totalorder %s25, 0
    %p78 = por %p76, %p77
    %s80 = sadd.s32 %s79, 1
    %p83 = scmp.eq.s32.totalorder %s19, 1
    %p84 = scmp.ne.s32.totalorder %s79, %s81
    %p85 = scmp.eq.s32.totalorder %s19, 0
    %p86 = por %p84, %p85
    %p87 = scmp.ne.s32.totalorder %s79, %s81
    %p88 = scmp.eq.s32.totalorder %s24, 1
    %p89 = por %p87, %p88
    %p90 = scmp.ne.s32.totalorder %s81, %s82
    %p91 = scmp.eq.s32.totalorder %s24, 0
    %p92 = por %p90, %p91
    %p93 = scmp.ne.s32.totalorder %s81, %s82
    %p94 = scmp.eq.s32.totalorder %s25, 1
    %p95 = por %p93, %p94
    %p97 = scmp.ne.s32.totalorder %s82, %s96
    %p98 = scmp.eq.s32.totalorder %s25, 0
    %p99 = por %p97, %p98
    %s101 = sadd.s32 %s100, 1
    %p104 = scmp.eq.s32.totalorder %s19, 1
    %p105 = scmp.ne.s32.totalorder %s100, %s102
    %p106 = scmp.eq.s32.totalorder %s19, 0
    %p107 = por %p105, %p106
    %p108 = scmp.ne.s32.totalorder %s100, %s102
    %p109 = scmp.eq.s32.totalorder %s24, 1
    %p110 = por %p108, %p109
    %p111 = scmp.ne.s32.totalorder %s102, %s103
    %p112 = scmp.eq.s32.totalorder %s24, 0
    %p113 = por %p111, %p112
    %p114 = scmp.ne.s32.totalorder %s102, %s103
    %p115 = scmp.eq.s32.totalorder %s25, 1
    %p116 = por %p114, %p115
    %p118 = scmp.ne.s32.totalorder %s103, %s117
    %p119 = scmp.eq.s32.totalorder %s25, 0
    %p120 = por %p118, %p119
    %s122 = sadd.s32 %s121, 1
    %p125 = scmp.eq.s32.totalorder %s19, 1
    %p126 = scmp.ne.s32.totalorder %s121, %s123
    %p127 = scmp.eq.s32.totalorder %s19, 0
    %p128 = por %p126, %p127
    %p129 = scmp.ne.s32.totalorder %s121, %s123
    %p130 = scmp.eq.s32.totalorder %s24, 1
    %p131 = por %p129, %p130
    %p132 = scmp.ne.s32.totalorder %s123, %s124
    %p133 = scmp.eq.s32.totalorder %s24, 0
    %p134 = por %p132, %p133
    %p135 = scmp.ne.s32.totalorder %s123, %s124
    %p136 = scmp.eq.s32.totalorder %s25, 1
    %p137 = por %p135, %p136
    %p139 = scmp.ne.s32.totalorder %s124, %s138
    %p140 = scmp.eq.s32.totalorder %s25, 0
    %p141 = por %p139, %p140
    %s143 = sadd.s32 %s142, 1
    %p146 = scmp.eq.s32.totalorder %s19, 1
    %p147 = scmp.ne.s32.totalorder %s142, %s144
    %p148 = scmp.eq.s32.totalorder %s19, 0
    %p149 = por %p147, %p148
    %p150 = scmp.ne.s32.totalorder %s142, %s144
    %p151 = scmp.eq.s32.totalorder %s24, 1
    %p152 = por %p150, %p151
    %p153 = scmp.ne.s32.totalorder %s144, %s145
    %p154 = scmp.eq.s32.totalorder %s24, 0
    %p155 = por %p153, %p154
    %p156 = scmp.ne.s32.totalorder %s144, %s145
    %p157 = scmp.eq.s32.totalorder %s25, 1
    %p158 = por %p156, %p157
    %p160 = scmp.ne.s32.totalorder %s145, %s159
    %p161 = scmp.eq.s32.totalorder %s25, 0
    %p162 = por %p160, %p161
    %s164 = sadd.s32 %s163, 1
    %p167 = scmp.eq.s32.totalorder %s19, 1
    %p168 = scmp.ne.s32.totalorder %s163, %s165
    %p169 = scmp.eq.s32.totalorder %s19, 0
    %p170 = por %p168, %p169
    %p171 = scmp.ne.s32.totalorder %s163, %s165
    %p172 = scmp.eq.s32.totalorder %s24, 1
    %p173 = por %p171, %p172
    %p174 = scmp.ne.s32.totalorder %s165, %s166
    %p175 = scmp.eq.s32.totalorder %s24, 0
    %p176 = por %p174, %p175
    %p177 = scmp.ne.s32.totalorder %s165, %s166
    %p178 = scmp.eq.s32.totalorder %s25, 1
    %p179 = por %p177, %p178
    %p181 = scmp.ne.s32.totalorder %s166, %s180
    %p182 = scmp.eq.s32.totalorder %s25, 0
    %p183 = por %p181, %p182
    %s185 = sadd.s32 %s184, 1
    %p188 = scmp.eq.s32.totalorder %s19, 1
    %p189 = scmp.ne.s32.totalorder %s184, %s186
    %p190 = scmp.eq.s32.totalorder %s19, 0
    %p191 = por %p189, %p190
    %p192 = scmp.ne.s32.totalorder %s184, %s186
    %p193 = scmp.eq.s32.totalorder %s24, 1
    %p194 = por %p192, %p193
    %p195 = scmp.ne.s32.totalorder %s186, %s187
    %p196 = scmp.eq.s32.totalorder %s24, 0
    %p197 = por %p195, %p196
    %p198 = scmp.ne.s32.totalorder %s186, %s187
    %p199 = scmp.eq.s32.totalorder %s25, 1
    %p200 = por %p198, %p199
    %p202 = scmp.ne.s32.totalorder %s187, %s201
    %p203 = scmp.eq.s32.totalorder %s25, 0
    %p204 = por %p202, %p203
    %s206 = sadd.s32 %s205, 1
    %p209 = scmp.eq.s32.totalorder %s19, 1
    %p210 = scmp.ne.s32.totalorder %s205, %s207
    %p211 = scmp.eq.s32.totalorder %s19, 0
    %p212 = por %p210, %p211
    %p213 = scmp.ne.s32.totalorder %s205, %s207
    %p214 = scmp.eq.s32.totalorder %s24, 1
    %p215 = por %p213, %p214
    %p216 = scmp.ne.s32.totalorder %s207, %s208
    %p217 = scmp.eq.s32.totalorder %s24, 0
    %p218 = por %p216, %p217
    %p219 = scmp.ne.s32.totalorder %s207, %s208
    %p220 = scmp.eq.s32.totalorder %s25, 1
    %p221 = por %p219, %p220
    %p223 = scmp.ne.s32.totalorder %s208, %s222
    %p224 = scmp.eq.s32.totalorder %s25, 0
    %p225 = por %p223, %p224
    %s227 = sadd.s32 %s226, 1
    %p230 = scmp.eq.s32.totalorder %s19, 1
    %p231 = scmp.ne.s32.totalorder %s226, %s228
    %p232 = scmp.eq.s32.totalorder %s19, 0
    %p233 = por %p231, %p232
    %p234 = scmp.ne.s32.totalorder %s226, %s228
    %p235 = scmp.eq.s32.totalorder %s24, 1
    %p236 = por %p234, %p235
    %p237 = scmp.ne.s32.totalorder %s228, %s229
    %p238 = scmp.eq.s32.totalorder %s24, 0
    %p239 = por %p237, %p238
    %p240 = scmp.ne.s32.totalorder %s228, %s229
    %p241 = scmp.eq.s32.totalorder %s25, 1
    %p242 = por %p240, %p241
    %p244 = scmp.ne.s32.totalorder %s229, %s243
    %p245 = scmp.eq.s32.totalorder %s25, 0
    %p246 = por %p244, %p245
    %s248 = sadd.s32 %s247, 1
    %p251 = scmp.eq.s32.totalorder %s19, 1
    %p252 = scmp.ne.s32.totalorder %s247, %s249
    %p253 = scmp.eq.s32.totalorder %s19, 0
    %p254 = por %p252, %p253
    %p255 = scmp.ne.s32.totalorder %s247, %s249
    %p256 = scmp.eq.s32.totalorder %s24, 1
    %p257 = por %p255, %p256
    %p258 = scmp.ne.s32.totalorder %s249, %s250
    %p259 = scmp.eq.s32.totalorder %s24, 0
    %p260 = por %p258, %p259
    %p261 = scmp.ne.s32.totalorder %s249, %s250
    %p262 = scmp.eq.s32.totalorder %s25, 1
    %p263 = por %p261, %p262
    %p265 = scmp.ne.s32.totalorder %s250, %s264
    %p266 = scmp.eq.s32.totalorder %s25, 0
    %p267 = por %p265, %p266
    %s269 = sadd.s32 %s268, 1
    %p272 = scmp.eq.s32.totalorder %s19, 1
    %p273 = scmp.ne.s32.totalorder %s268, %s270
    %p274 = scmp.eq.s32.totalorder %s19, 0
    %p275 = por %p273, %p274
    %p276 = scmp.ne.s32.totalorder %s268, %s270
    %p277 = scmp.eq.s32.totalorder %s24, 1
    %p278 = por %p276, %p277
    %p279 = scmp.ne.s32.totalorder %s270, %s271
    %p280 = scmp.eq.s32.totalorder %s24, 0
    %p281 = por %p279, %p280
    %p282 = scmp.ne.s32.totalorder %s270, %s271
    %p283 = scmp.eq.s32.totalorder %s25, 1
    %p284 = por %p282, %p283
    %p286 = scmp.ne.s32.totalorder %s271, %s285
    %p287 = scmp.eq.s32.totalorder %s25, 0
    %p288 = por %p286, %p287
    %s290 = sadd.s32 %s289, 1
    %p293 = scmp.eq.s32.totalorder %s19, 1
    %p294 = scmp.ne.s32.totalorder %s289, %s291
    %p295 = scmp.eq.s32.totalorder %s19, 0
    %p296 = por %p294, %p295
    %p297 = scmp.ne.s32.totalorder %s289, %s291
    %p298 = scmp.eq.s32.totalorder %s24, 1
    %p299 = por %p297, %p298
    %p300 = scmp.ne.s32.totalorder %s291, %s292
    %p301 = scmp.eq.s32.totalorder %s24, 0
    %p302 = por %p300, %p301
    %p303 = scmp.ne.s32.totalorder %s291, %s292
    %p304 = scmp.eq.s32.totalorder %s25, 1
    %p305 = por %p303, %p304
    %p307 = scmp.ne.s32.totalorder %s292, %s306
    %p308 = scmp.eq.s32.totalorder %s25, 0
    %p309 = por %p307, %p308
    %s310 = ssub.s32 %s19, %s26
    %p311 = scmp.eq.s32.totalorder %s310, 0
    %s313 = sadd.s32 %s312, 1
    %s314 = scalar_select %p311, %s312, %s313
    %p317 = pneg %p311
    %p318 = scmp.eq.s32.totalorder %s19, 1
    %p319 = por %p317, %p318
    %p320 = scmp.ne.s32.totalorder %s312, %s315
    %p321 = scmp.eq.s32.totalorder %s19, 0
    %p322 = por %p320, %p321
    %p323 = scmp.ne.s32.totalorder %s312, %s315
    %p324 = scmp.eq.s32.totalorder %s24, 1
    %p325 = por %p323, %p324
    %p326 = scmp.ne.s32.totalorder %s315, %s316
    %p327 = scmp.eq.s32.totalorder %s24, 0
    %p328 = por %p326, %p327
    %p329 = scmp.ne.s32.totalorder %s315, %s316
    %p330 = scmp.eq.s32.totalorder %s25, 1
    %p331 = por %p329, %p330
    %p333 = scmp.ne.s32.totalorder %s316, %s332
    %p334 = scmp.eq.s32.totalorder %s25, 0
    %p335 = por %p333, %p334
    %p336 = scmp.le.s32.totalorder 1, %s19
    %p337 = scmp.lt.s32.totalorder %s19, 3
    %p338 = pnand %p336, %p337
    %p339 = pneg %p338
    // Predicated region
    $region9: #{enhanced_sasrec_forward.6} parent=5 // pred_check
      _
    $region10: #{enhanced_sasrec_forward.6} parent=5 // pred_check_branch
      %341 = sbr.rel (%p338) target = $region12
    $region11: #{enhanced_sasrec_forward.6} parent=5 // pred_region
      %s342 = ssub.s32 %s19, 1
      // Predicated region
      $region13: #{enhanced_sasrec_forward.6} parent=11 // pred_check
        %p343 = pneg %p92
      $region14: #{enhanced_sasrec_forward.6} parent=11 // pred_check_branch
        %345 = sbr.rel (%p343) target = $region16
      $region15: #{enhanced_sasrec_forward.6} parent=11 // pred_region
        _
      $region16: #{enhanced_sasrec_forward.6} parent=11 // pred_fallthru
        _
      // Predicated region
      $region17: #{enhanced_sasrec_forward.6} parent=11 // pred_check
        %p346 = pneg %p113
      $region18: #{enhanced_sasrec_forward.6} parent=11 // pred_check_branch
        %348 = sbr.rel (%p346) target = $region20
      $region19: #{enhanced_sasrec_forward.6} parent=11 // pred_region
        _
      $region20: #{enhanced_sasrec_forward.6} parent=11 // pred_fallthru
        _
      // Predicated region
      $region21: #{enhanced_sasrec_forward.6} parent=11 // pred_check
        %p349 = pneg %p134
      $region22: #{enhanced_sasrec_forward.6} parent=11 // pred_check_branch
        %351 = sbr.rel (%p349) target = $region24
      $region23: #{enhanced_sasrec_forward.6} parent=11 // pred_region
        _
      $region24: #{enhanced_sasrec_forward.6} parent=11 // pred_fallthru
        _
      // Predicated region
      $region25: #{enhanced_sasrec_forward.6} parent=11 // pred_check
        %p352 = pneg %p155
      $region26: #{enhanced_sasrec_forward.6} parent=11 // pred_check_branch
        %354 = sbr.rel (%p352) target = $region28
      $region27: #{enhanced_sasrec_forward.6} parent=11 // pred_region
        _
      $region28: #{enhanced_sasrec_forward.6} parent=11 // pred_fallthru
        _
      // Predicated region
      $region29: #{enhanced_sasrec_forward.6} parent=11 // pred_check
        %p355 = pneg %p176
      $region30: #{enhanced_sasrec_forward.6} parent=11 // pred_check_branch
        %357 = sbr.rel (%p355) target = $region32
      $region31: #{enhanced_sasrec_forward.6} parent=11 // pred_region
        _
      $region32: #{enhanced_sasrec_forward.6} parent=11 // pred_fallthru
        _
      // Predicated region
      $region33: #{enhanced_sasrec_forward.6} parent=11 // pred_check
        %p358 = pneg %p197
      $region34: #{enhanced_sasrec_forward.6} parent=11 // pred_check_branch
        %360 = sbr.rel (%p358) target = $region36
      $region35: #{enhanced_sasrec_forward.6} parent=11 // pred_region
        _
      $region36: #{enhanced_sasrec_forward.6} parent=11 // pred_fallthru
        _
      // Predicated region
      $region37: #{enhanced_sasrec_forward.6} parent=11 // pred_check
        %p361 = pneg %p218
      $region38: #{enhanced_sasrec_forward.6} parent=11 // pred_check_branch
        %363 = sbr.rel (%p361) target = $region40
      $region39: #{enhanced_sasrec_forward.6} parent=11 // pred_region
        _
      $region40: #{enhanced_sasrec_forward.6} parent=11 // pred_fallthru
        _
      // Predicated region
      $region41: #{enhanced_sasrec_forward.6} parent=11 // pred_check
        %p364 = pneg %p239
      $region42: #{enhanced_sasrec_forward.6} parent=11 // pred_check_branch
        %366 = sbr.rel (%p364) target = $region44
      $region43: #{enhanced_sasrec_forward.6} parent=11 // pred_region
        _
      $region44: #{enhanced_sasrec_forward.6} parent=11 // pred_fallthru
        _
      // Predicated region
      $region45: #{enhanced_sasrec_forward.6} parent=11 // pred_check
        %p367 = pneg %p260
      $region46: #{enhanced_sasrec_forward.6} parent=11 // pred_check_branch
        %369 = sbr.rel (%p367) target = $region48
      $region47: #{enhanced_sasrec_forward.6} parent=11 // pred_region
        _
      $region48: #{enhanced_sasrec_forward.6} parent=11 // pred_fallthru
        _
      // Predicated region
      $region49: #{enhanced_sasrec_forward.6} parent=11 // pred_check
        %p370 = pneg %p281
      $region50: #{enhanced_sasrec_forward.6} parent=11 // pred_check_branch
        %372 = sbr.rel (%p370) target = $region52
      $region51: #{enhanced_sasrec_forward.6} parent=11 // pred_region
        _
      $region52: #{enhanced_sasrec_forward.6} parent=11 // pred_fallthru
        _
      // Predicated region
      $region53: #{enhanced_sasrec_forward.6} parent=11 // pred_check
        %p373 = pneg %p302
      $region54: #{enhanced_sasrec_forward.6} parent=11 // pred_check_branch
        %375 = sbr.rel (%p373) target = $region56
      $region55: #{enhanced_sasrec_forward.6} parent=11 // pred_region
        _
      $region56: #{enhanced_sasrec_forward.6} parent=11 // pred_fallthru
        _
    $region12: #{enhanced_sasrec_forward.6} parent=5 // pred_fallthru
      _
    %p376 = scmp.lt.s32.totalorder %s19, 2
    // Predicated region
    $region57: #{enhanced_sasrec_forward.6} parent=5 // pred_check
      %p377 = pneg %p376
    $region58: #{enhanced_sasrec_forward.6} parent=5 // pred_check_branch
      %379 = sbr.rel (%p377) target = $region60
    $region59: #{enhanced_sasrec_forward.6} parent=5 // pred_region
      // Predicated region
      $region61: #{enhanced_sasrec_forward.6} parent=59 // pred_check
        %p380 = pneg %p39
      $region62: #{enhanced_sasrec_forward.6} parent=59 // pred_check_branch
        %382 = sbr.rel (%p380) target = $region64
      $region63: #{enhanced_sasrec_forward.6} parent=59 // pred_region
        %p383 = scmp.lt.s32.totalorder %s19, 1
        %s384 = scalar_select %p383, %s19, 1
        %s385 = smul.addr %s384, 8
        %s386 = scalar_lea.vmem %s0, %s385
      $region64: #{enhanced_sasrec_forward.6} parent=59 // pred_fallthru
        _
      // Predicated region
      $region65: #{enhanced_sasrec_forward.6} parent=59 // pred_check
        %p387 = pneg %p65
      $region66: #{enhanced_sasrec_forward.6} parent=59 // pred_check_branch
        %389 = sbr.rel (%p387) target = $region68
      $region67: #{enhanced_sasrec_forward.6} parent=59 // pred_region
        %p390 = scmp.lt.s32.totalorder %s19, 1
        %s391 = scalar_select %p390, %s19, 1
        %s392 = scalar_lea.vmem %s1, %s391
      $region68: #{enhanced_sasrec_forward.6} parent=59 // pred_fallthru
        _
    $region60: #{enhanced_sasrec_forward.6} parent=5 // pred_fallthru
      _
    %p393 = scmp.le.s32.totalorder 1, %s19
    %p394 = scmp.lt.s32.totalorder %s19, 3
    %p395 = pnand %p393, %p394
    %p396 = pneg %p395
    // Predicated region
    $region69: #{enhanced_sasrec_forward.6} parent=5 // pred_check
      _
    $region70: #{enhanced_sasrec_forward.6} parent=5 // pred_check_branch
      %398 = sbr.rel (%p395) target = $region72
    $region71: #{enhanced_sasrec_forward.6} parent=5 // pred_region
      %s399 = ssub.s32 %s19, 1
      %p400 = scmp.lt.s32.totalorder %s24, 1
      %s401 = scalar_select %p400, %s24, 1
      %s402 = smul.addr %s401, 8
      %s403 = scalar_lea.vmem %s0, %s402
      %p404 = pneg %p45
      %p405 = pneg %p42
      %p406 = scmp.lt.s32.totalorder %s24, 1
      %s407 = scalar_select %p406, %s24, 1
      %s408 = scalar_lea.vmem %s1, %s407
      %p409 = pneg %p71
      %p410 = pneg %p68
      %p411 = pneg %p92
      %p412 = pneg %p89
      %p413 = pneg %p113
      %p414 = pneg %p110
      %p415 = pneg %p134
      %p416 = pneg %p131
      %p417 = pneg %p155
      %p418 = pneg %p152
      %p419 = pneg %p176
      %p420 = pneg %p173
      %p421 = pneg %p197
      %p422 = pneg %p194
      %p423 = pneg %p218
      %p424 = pneg %p215
      %p425 = pneg %p239
      %p426 = pneg %p236
      %p427 = pneg %p260
      %p428 = pneg %p257
      %p429 = pneg %p281
      %p430 = pneg %p278
      %p431 = pneg %p302
      %p432 = pneg %p299
      %p433 = pneg %p328
      %p434 = pneg %p325
      %p435 = scmp.lt.s32.totalorder %s24, 1
      %s436 = scalar_select %p435, %s24, 1
      %s437 = smul.addr %s436, 8
      %s438 = scalar_lea.vmem %s13, %s437
      %p439 = scmp.lt.s32.totalorder %s24, 1
      %s440 = scalar_select %p439, %s24, 1
      %s441 = smul.addr %s440, 8
      %s442 = scalar_lea.vmem %s0, %s441
      %p443 = scmp.lt.s32.totalorder %s24, 1
      %s444 = scalar_select %p443, %s24, 1
      %s445 = scalar_lea.vmem %s1, %s444
      %p446 = scmp.lt.s32.totalorder %s24, 1
      %s447 = scalar_select %p446, %s24, 1
      %s448 = smul.addr %s447, 8
      %s449 = scalar_lea.vmem %s13, %s448
      %v451 = vld [vmem:[%s442] sm:$0xff]
      %v452 = vpack.c.bf16 %v451, %v451
      %v453 = vld [vmem:[%s2] sm:$0xff]
      %v454 = vld [vmem:[%s2 + $0x8] sm:$0xff]
      %v455 = vld [vmem:[%s2 + $0x10] sm:$0xff]
      %v456 = vld [vmem:[%s2 + $0x18] sm:$0xff]
      %v457 = vld [vmem:[%s2 + $0x20] sm:$0xff]
      %v458 = vld [vmem:[%s2 + $0x28] sm:$0xff]
      %v459 = vld [vmem:[%s2 + $0x30] sm:$0xff]
      %v460 = vld [vmem:[%s2 + $0x38] sm:$0xff]
      %v469 = vunpack.c.l.b16 %v453
      %v470 = vunpack.c.h.b16 %v453
      %v471 = vunpack.c.l.b16 %v454
      %v472 = vunpack.c.h.b16 %v454
      %v473 = vunpack.c.l.b16 %v455
      %v474 = vunpack.c.h.b16 %v455
      %v475 = vunpack.c.l.b16 %v456
      %v476 = vunpack.c.h.b16 %v456
      %v477 = vunpack.c.l.b16 %v457
      %v478 = vunpack.c.h.b16 %v457
      %v479 = vunpack.c.l.b16 %v458
      %v480 = vunpack.c.h.b16 %v458
      %v481 = vunpack.c.l.b16 %v459
      %v482 = vunpack.c.h.b16 %v459
      %v483 = vunpack.c.l.b16 %v460
      %v484 = vunpack.c.h.b16 %v460
      %v485 = vpack.c.b16 %v471, %v469
      %v486 = vpack.c.b16 %v472, %v470
      %v487 = vpack.c.b16 %v475, %v473
      %v488 = vpack.c.b16 %v476, %v474
      %v489 = vpack.c.b16 %v479, %v477
      %v490 = vpack.c.b16 %v480, %v478
      %v491 = vpack.c.b16 %v483, %v481
      %v492 = vpack.c.b16 %v484, %v482
      %vm501 = vcmask 523264
      %v503 = vsel %vm501, %v452, 0
      %505 = vmatprep.subr.bf16.mxu0 %v486
      %506 = vmatpush1.bf16.msra.mxu0 %v485
      %507 = vmatprep.subr.bf16.mxu0 %v488
      %508 = vmatpush1.bf16.msra.mxu0 %v487
      %509 = vmatprep.subr.bf16.mxu0 %v490
      %510 = vmatpush1.bf16.msra.mxu0 %v489
      %511 = vmatprep.subr.bf16.mxu0 %v492
      %512 = vmatpush1.bf16.msra.mxu0 %v491
      %513 = vmatprep.subr.bf16.mxu0 0
      %514 = vmatpush1.bf16.msra.mxu0 0
      %515 = vmatprep.subr.bf16.mxu0 0
      %516 = vmatpush1.bf16.msra.mxu0 0
      %517 = vmatprep.subr.bf16.mxu0 0
      %518 = vmatpush1.bf16.msra.mxu0 0
      %519 = vmatprep.subr.bf16.mxu0 0
      %520 = vmatpush1.bf16.msra.mxu0 0
      %521 = vmatprep.subr.bf16.mxu0 0
      %522 = vmatpush1.bf16.msra.mxu0 0
      %523 = vmatprep.subr.bf16.mxu0 0
      %524 = vmatpush1.bf16.msra.mxu0 0
      %525 = vmatprep.subr.bf16.mxu0 0
      %526 = vmatpush1.bf16.msra.mxu0 0
      %527 = vmatprep.subr.bf16.mxu0 0
      %528 = vmatpush1.bf16.msra.mxu0 0
      %529 = vmatprep.subr.bf16.mxu0 0
      %530 = vmatpush1.bf16.msra.mxu0 0
      %531 = vmatprep.subr.bf16.mxu0 0
      %532 = vmatpush1.bf16.msra.mxu0 0
      %533 = vmatprep.subr.bf16.mxu0 0
      %534 = vmatpush1.bf16.msra.mxu0 0
      %535 = vmatprep.subr.bf16.mxu0 0
      %536 = vmatpush1.bf16.msra.mxu0 0
      %537 = vmatprep.mubr.bf16.mxu0 0
      %538 = vmatmul.mubr.bf16.gmra.mrb[0].mxu0 %v503
      %v539 = vpop.f32.mrb[0].mxu0
      %v540 = vadd.f32 0.0, %v539
      %v541 = vpop.f32.mrb[0].mxu0
      %v542 = vadd.f32 0.0, %v541
      %v543 = vpop.f32.mrb[0].mxu0
      %v544 = vpop.f32.mrb[0].mxu0
      %545 = vdwg.mxu0
      %v546 = vlaneseq
      %v547 = vshrl.u32 %v546, 7
      %v548 = vlaneseq
      %v549 = vand.u32 %v548, 127
      %vm550 = vcmp.ge.s32.totalorder %v547, %v549
      %v551 = vld [vmem:[%s445] sm:$0x1]
      %vm552 = vcmp.gt.f32.partialorder %v551, 0.5
      %v553 = vsel %vm552, 1, 0
      %v554 = vlaneseq
      %v555 = vshrl.u32 %v554, 7
      %v556 = vsub.s32 0, %v555
      %v557 = vrot.slane %v553, %v556
      %vm558 = vcmp.eq.s32.totalorder %v557, 1
      %vm559 = vmand %vm550, %vm558
      %v560 = vld [vmem:[%s3] sm:$0xf]
      %v561 = vld [vmem:[%s3 + $0x4] sm:$0xf]
      %v562 = vld [vmem:[%s3 + $0x8] sm:$0xf]
      %v563 = vld [vmem:[%s3 + $0xc] sm:$0xf]
      %v564 = vld [vmem:[%s3 + $0x10] sm:$0xf]
      %v565 = vld [vmem:[%s3 + $0x14] sm:$0xf]
      %v566 = vld [vmem:[%s3 + $0x18] sm:$0xf]
      %v567 = vld [vmem:[%s3 + $0x1c] sm:$0xf]
      %v568 = vpack.c.bf16 %v540, %v540
      %v569 = vpack.c.bf16 %v542, %v542
      %571 = vrot.lane.b32.xlu0 %v568, 64
      %v572 = vpop.permute.xlu0 %571
      %vm573 = vcmask 130048
      %v575 = vsel %vm573, %v568, 0
      %v578 = vsel %vm573, %v572, 0
      %580 = vmatprep.subr.bf16.mxu0 0
      %581 = vmatpush1.bf16.xpose.msra.mxu0 %v578
      %582 = vmatprep.subr.bf16.mxu0 0
      %583 = vmatpush1.bf16.xpose.msra.mxu0 0
      %584 = vmatprep.subr.bf16.mxu0 0
      %585 = vmatpush1.bf16.xpose.msra.mxu0 0
      %586 = vmatprep.subr.bf16.mxu0 0
      %587 = vmatpush1.bf16.xpose.msra.mxu0 0
      %588 = vmatprep.subr.bf16.mxu0 0
      %589 = vmatpush1.bf16.xpose.msra.mxu0 0
      %590 = vmatprep.subr.bf16.mxu0 0
      %591 = vmatpush1.bf16.xpose.msra.mxu0 0
      %592 = vmatprep.subr.bf16.mxu0 0
      %593 = vmatpush1.bf16.xpose.msra.mxu0 0
      %594 = vmatprep.subr.bf16.mxu0 0
      %595 = vmatpush1.bf16.xpose.msra.mxu0 0
      %596 = vmatprep.subr.bf16.mxu0 0
      %597 = vmatpush1.bf16.xpose.msra.mxu0 0
      %598 = vmatprep.subr.bf16.mxu0 0
      %599 = vmatpush1.bf16.xpose.msra.mxu0 0
      %600 = vmatprep.subr.bf16.mxu0 0
      %601 = vmatpush1.bf16.xpose.msra.mxu0 0
      %602 = vmatprep.subr.bf16.mxu0 0
      %603 = vmatpush1.bf16.xpose.msra.mxu0 0
      %604 = vmatprep.subr.bf16.mxu0 0
      %605 = vmatpush1.bf16.xpose.msra.mxu0 0
      %606 = vmatprep.subr.bf16.mxu0 0
      %607 = vmatpush1.bf16.xpose.msra.mxu0 0
      %608 = vmatprep.subr.bf16.mxu0 0
      %609 = vmatpush1.bf16.xpose.msra.mxu0 0
      %610 = vmatprep.subr.bf16.mxu0 0
      %611 = vmatpush1.bf16.xpose.msra.mxu0 0
      %612 = vmatprep.mubr.bf16.mxu0 0
      %613 = vmatmul.mubr.bf16.gmra.mrb[0].mxu0 %v575
      %v614 = vpop.f32.mrb[0].mxu0
      %v615 = vadd.f32 0.0, %v614
      %v616 = vpop.f32.mrb[0].mxu0
      %v617 = vpop.f32.mrb[0].mxu0
      %v618 = vpop.f32.mrb[0].mxu0
      %619 = vdwg.mxu0
      %v620 = vsel %vm559, %v615, -1e+09
      %vm621 = vcmask 64512
      %v622 = vsel %vm621, %v620, -inf
      %623 = vmax.xlane.f32.xlu0 %v622
      %v624 = vpop.xlane.xlu0 %623
      %v625 = vsub.f32 %v620, %v624
      %v626 = vmul.f32 %v625, 1.442695
      %v627 = vpow.pop %v626
      %v628 = vsel %vm621, %v627, 0.0
      %629 = vadd.xlane.f32.xlu0 %v628
      %v630 = vpop.xlane.xlu0 %629
      %v631 = vrcp.pop %v630
      %v632 = vmul.f32 %v627, %v631
      %v633 = vpack.c.bf16 %v632, %v632
      %v635 = vsel %vm621, %v633, 0
      %vm637 = vcmask 1043456
      %v639 = vsel %vm637, %v569, 0
      %641 = vmatprep.subr.bf16.mxu0 0
      %642 = vmatpush1.bf16.msra.mxu0 %v639
      %643 = vmatprep.subr.bf16.mxu0 0
      %644 = vmatpush1.bf16.msra.mxu0 0
      %645 = vmatprep.subr.bf16.mxu0 0
      %646 = vmatpush1.bf16.msra.mxu0 0
      %647 = vmatprep.subr.bf16.mxu0 0
      %648 = vmatpush1.bf16.msra.mxu0 0
      %649 = vmatprep.subr.bf16.mxu0 0
      %650 = vmatpush1.bf16.msra.mxu0 0
      %651 = vmatprep.subr.bf16.mxu0 0
      %652 = vmatpush1.bf16.msra.mxu0 0
      %653 = vmatprep.subr.bf16.mxu0 0
      %654 = vmatpush1.bf16.msra.mxu0 0
      %655 = vmatprep.subr.bf16.mxu0 0
      %656 = vmatpush1.bf16.msra.mxu0 0
      %657 = vmatprep.subr.bf16.mxu0 0
      %658 = vmatpush1.bf16.msra.mxu0 0
      %659 = vmatprep.subr.bf16.mxu0 0
      %660 = vmatpush1.bf16.msra.mxu0 0
      %661 = vmatprep.subr.bf16.mxu0 0
      %662 = vmatpush1.bf16.msra.mxu0 0
      %663 = vmatprep.subr.bf16.mxu0 0
      %664 = vmatpush1.bf16.msra.mxu0 0
      %665 = vmatprep.subr.bf16.mxu0 0
      %666 = vmatpush1.bf16.msra.mxu0 0
      %667 = vmatprep.subr.bf16.mxu0 0
      %668 = vmatpush1.bf16.msra.mxu0 0
      %669 = vmatprep.subr.bf16.mxu0 0
      %670 = vmatpush1.bf16.msra.mxu0 0
      %671 = vmatprep.subr.bf16.mxu0 0
      %672 = vmatpush1.bf16.msra.mxu0 0
      %673 = vmatprep.mubr.bf16.mxu0 0
      %674 = vmatmul.mubr.bf16.gmra.mrb[0].mxu0 %v635
      %v675 = vpop.f32.mrb[0].mxu0
      %v676 = vadd.f32 0.0, %v675
      %v677 = vpop.f32.mrb[0].mxu0
      %v678 = vpop.f32.mrb[0].mxu0
      %v679 = vpop.f32.mrb[0].mxu0
      %680 = vdwg.mxu0
      %v681 = vpack.c.bf16 %v676, %v676
      %682 = vrot.lane.b32.xlu0 %v568, 112
      %v683 = vpop.permute.xlu0 %682
      %684 = vrot.lane.b32.xlu0 %v568, 48
      %v685 = vpop.permute.xlu0 %684
      %v687 = vsel %vm573, %v683, 0
      %v690 = vsel %vm573, %v685, 0
      %692 = vmatprep.subr.bf16.mxu0 0
      %693 = vmatpush1.bf16.xpose.msra.mxu0 %v690
      %694 = vmatprep.subr.bf16.mxu0 0
      %695 = vmatpush1.bf16.xpose.msra.mxu0 0
      %696 = vmatprep.subr.bf16.mxu0 0
      %697 = vmatpush1.bf16.xpose.msra.mxu0 0
      %698 = vmatprep.subr.bf16.mxu0 0
      %699 = vmatpush1.bf16.xpose.msra.mxu0 0
      %700 = vmatprep.subr.bf16.mxu0 0
      %701 = vmatpush1.bf16.xpose.msra.mxu0 0
      %702 = vmatprep.subr.bf16.mxu0 0
      %703 = vmatpush1.bf16.xpose.msra.mxu0 0
      %704 = vmatprep.subr.bf16.mxu0 0
      %705 = vmatpush1.bf16.xpose.msra.mxu0 0
      %706 = vmatprep.subr.bf16.mxu0 0
      %707 = vmatpush1.bf16.xpose.msra.mxu0 0
      %708 = vmatprep.subr.bf16.mxu0 0
      %709 = vmatpush1.bf16.xpose.msra.mxu0 0
      %710 = vmatprep.subr.bf16.mxu0 0
      %711 = vmatpush1.bf16.xpose.msra.mxu0 0
      %712 = vmatprep.subr.bf16.mxu0 0
      %713 = vmatpush1.bf16.xpose.msra.mxu0 0
      %714 = vmatprep.subr.bf16.mxu0 0
      %715 = vmatpush1.bf16.xpose.msra.mxu0 0
      %716 = vmatprep.subr.bf16.mxu0 0
      %717 = vmatpush1.bf16.xpose.msra.mxu0 0
      %718 = vmatprep.subr.bf16.mxu0 0
      %719 = vmatpush1.bf16.xpose.msra.mxu0 0
      %720 = vmatprep.subr.bf16.mxu0 0
      %721 = vmatpush1.bf16.xpose.msra.mxu0 0
      %722 = vmatprep.subr.bf16.mxu0 0
      %723 = vmatpush1.bf16.xpose.msra.mxu0 0
      %724 = vmatprep.mubr.bf16.mxu0 0
      %725 = vmatmul.mubr.bf16.gmra.mrb[0].mxu0 %v687
      %v726 = vpop.f32.mrb[0].mxu0
      %v727 = vadd.f32 0.0, %v726
      %v728 = vpop.f32.mrb[0].mxu0
      %v729 = vpop.f32.mrb[0].mxu0
      %v730 = vpop.f32.mrb[0].mxu0
      %731 = vdwg.mxu0
      %v732 = vsel %vm559, %v727, -1e+09
      %v733 = vsel %vm621, %v732, -inf
      %734 = vmax.xlane.f32.xlu0 %v733
      %v735 = vpop.xlane.xlu0 %734
      %v736 = vsub.f32 %v732, %v735
      %v737 = vmul.f32 %v736, 1.442695
      %v738 = vpow.pop %v737
      %v739 = vsel %vm621, %v738, 0.0
      %740 = vadd.xlane.f32.xlu0 %v739
      %v741 = vpop.xlane.xlu0 %740
      %v742 = vrcp.pop %v741
      %v743 = vmul.f32 %v738, %v742
      %v744 = vpack.c.bf16 %v743, %v743
      %746 = vrot.lane.b32.xlu0 %v569, 112
      %v747 = vpop.permute.xlu0 %746
      %v749 = vsel %vm621, %v744, 0
      %v752 = vsel %vm637, %v747, 0
      %754 = vmatprep.subr.bf16.mxu0 0
      %755 = vmatpush1.bf16.msra.mxu0 %v752
      %756 = vmatprep.subr.bf16.mxu0 0
      %757 = vmatpush1.bf16.msra.mxu0 0
      %758 = vmatprep.subr.bf16.mxu0 0
      %759 = vmatpush1.bf16.msra.mxu0 0
      %760 = vmatprep.subr.bf16.mxu0 0
      %761 = vmatpush1.bf16.msra.mxu0 0
      %762 = vmatprep.subr.bf16.mxu0 0
      %763 = vmatpush1.bf16.msra.mxu0 0
      %764 = vmatprep.subr.bf16.mxu0 0
      %765 = vmatpush1.bf16.msra.mxu0 0
      %766 = vmatprep.subr.bf16.mxu0 0
      %767 = vmatpush1.bf16.msra.mxu0 0
      %768 = vmatprep.subr.bf16.mxu0 0
      %769 = vmatpush1.bf16.msra.mxu0 0
      %770 = vmatprep.subr.bf16.mxu0 0
      %771 = vmatpush1.bf16.msra.mxu0 0
      %772 = vmatprep.subr.bf16.mxu0 0
      %773 = vmatpush1.bf16.msra.mxu0 0
      %774 = vmatprep.subr.bf16.mxu0 0
      %775 = vmatpush1.bf16.msra.mxu0 0
      %776 = vmatprep.subr.bf16.mxu0 0
      %777 = vmatpush1.bf16.msra.mxu0 0
      %778 = vmatprep.subr.bf16.mxu0 0
      %779 = vmatpush1.bf16.msra.mxu0 0
      %780 = vmatprep.subr.bf16.mxu0 0
      %781 = vmatpush1.bf16.msra.mxu0 0
      %782 = vmatprep.subr.bf16.mxu0 0
      %783 = vmatpush1.bf16.msra.mxu0 0
      %784 = vmatprep.subr.bf16.mxu0 0
      %785 = vmatpush1.bf16.msra.mxu0 0
      %786 = vmatprep.mubr.bf16.mxu0 0
      %787 = vmatmul.mubr.bf16.gmra.mrb[0].mxu0 %v749
      %v788 = vpop.f32.mrb[0].mxu0
      %v789 = vadd.f32 0.0, %v788
      %v790 = vpop.f32.mrb[0].mxu0
      %v791 = vpop.f32.mrb[0].mxu0
      %v792 = vpop.f32.mrb[0].mxu0
      %793 = vdwg.mxu0
      %v794 = vpack.c.bf16 %v789, %v789
      %v797 = vunpack.c.l.b16 %v562
      %v798 = vunpack.c.l.b16 %v563
      %v799 = vpack.c.b16 %v798, %v797
      %v802 = vsel %vm573, %v794, 0
      %804 = vmatprep.subr.bf16.mxu0 0
      %805 = vmatpush1.bf16.msra.mxu0 %v799
      %806 = vmatprep.subr.bf16.mxu0 0
      %807 = vmatpush1.bf16.msra.mxu0 0
      %808 = vmatprep.subr.bf16.mxu0 0
      %809 = vmatpush1.bf16.msra.mxu0 0
      %810 = vmatprep.subr.bf16.mxu0 0
      %811 = vmatpush1.bf16.msra.mxu0 0
      %812 = vmatprep.subr.bf16.mxu0 0
      %813 = vmatpush1.bf16.msra.mxu0 0
      %814 = vmatprep.subr.bf16.mxu0 0
      %815 = vmatpush1.bf16.msra.mxu0 0
      %816 = vmatprep.subr.bf16.mxu0 0
      %817 = vmatpush1.bf16.msra.mxu0 0
      %818 = vmatprep.subr.bf16.mxu0 0
      %819 = vmatpush1.bf16.msra.mxu0 0
      %820 = vmatprep.subr.bf16.mxu0 0
      %821 = vmatpush1.bf16.msra.mxu0 0
      %822 = vmatprep.subr.bf16.mxu0 0
      %823 = vmatpush1.bf16.msra.mxu0 0
      %824 = vmatprep.subr.bf16.mxu0 0
      %825 = vmatpush1.bf16.msra.mxu0 0
      %826 = vmatprep.subr.bf16.mxu0 0
      %827 = vmatpush1.bf16.msra.mxu0 0
      %828 = vmatprep.subr.bf16.mxu0 0
      %829 = vmatpush1.bf16.msra.mxu0 0
      %830 = vmatprep.subr.bf16.mxu0 0
      %831 = vmatpush1.bf16.msra.mxu0 0
      %832 = vmatprep.subr.bf16.mxu0 0
      %833 = vmatpush1.bf16.msra.mxu0 0
      %834 = vmatprep.subr.bf16.mxu0 0
      %835 = vmatpush1.bf16.msra.mxu0 0
      %836 = vmatprep.mubr.bf16.mxu0 0
      %837 = vmatmul.mubr.bf16.gmra.mrb[0].mxu0 %v802
      %v838 = vpop.f32.mrb[0].mxu0
      %v839 = vadd.f32 0.0, %v838
      %v840 = vpop.f32.mrb[0].mxu0
      %v841 = vpop.f32.mrb[0].mxu0
      %v842 = vpop.f32.mrb[0].mxu0
      %843 = vdwg.mxu0
      %v846 = vunpack.c.l.b16 %v560
      %v847 = vunpack.c.l.b16 %v561
      %v848 = vpack.c.b16 %v847, %v846
      %v851 = vsel %vm573, %v681, 0
      %853 = vmatprep.subr.bf16.mxu0 0
      %854 = vmatpush1.bf16.msra.mxu0 %v848
      %855 = vmatprep.subr.bf16.mxu0 0
      %856 = vmatpush1.bf16.msra.mxu0 0
      %857 = vmatprep.subr.bf16.mxu0 0
      %858 = vmatpush1.bf16.msra.mxu0 0
      %859 = vmatprep.subr.bf16.mxu0 0
      %860 = vmatpush1.bf16.msra.mxu0 0
      %861 = vmatprep.subr.bf16.mxu0 0
      %862 = vmatpush1.bf16.msra.mxu0 0
      %863 = vmatprep.subr.bf16.mxu0 0
      %864 = vmatpush1.bf16.msra.mxu0 0
      %865 = vmatprep.subr.bf16.mxu0 0
      %866 = vmatpush1.bf16.msra.mxu0 0
      %867 = vmatprep.subr.bf16.mxu0 0
      %868 = vmatpush1.bf16.msra.mxu0 0
      %869 = vmatprep.subr.bf16.mxu0 0
      %870 = vmatpush1.bf16.msra.mxu0 0
      %871 = vmatprep.subr.bf16.mxu0 0
      %872 = vmatpush1.bf16.msra.mxu0 0
      %873 = vmatprep.subr.bf16.mxu0 0
      %874 = vmatpush1.bf16.msra.mxu0 0
      %875 = vmatprep.subr.bf16.mxu0 0
      %876 = vmatpush1.bf16.msra.mxu0 0
      %877 = vmatprep.subr.bf16.mxu0 0
      %878 = vmatpush1.bf16.msra.mxu0 0
      %879 = vmatprep.subr.bf16.mxu0 0
      %880 = vmatpush1.bf16.msra.mxu0 0
      %881 = vmatprep.subr.bf16.mxu0 0
      %882 = vmatpush1.bf16.msra.mxu0 0
      %883 = vmatprep.subr.bf16.mxu0 0
      %884 = vmatpush1.bf16.msra.mxu0 0
      %885 = vmatprep.mubr.bf16.mxu0 0
      %886 = vmatmul.mubr.bf16.gmra.mrb[0].mxu0 %v851
      %v887 = vpop.f32.mrb[0].mxu0
      %v888 = vadd.f32 %v839, %v887
      %v889 = vpop.f32.mrb[0].mxu0
      %v890 = vpop.f32.mrb[0].mxu0
      %v891 = vpop.f32.mrb[0].mxu0
      %892 = vdwg.mxu0
      %893 = vrot.lane.b32.xlu0 %v568, 96
      %v894 = vpop.permute.xlu0 %893
      %895 = vrot.lane.b32.xlu0 %v568, 32
      %v896 = vpop.permute.xlu0 %895
      %v898 = vsel %vm573, %v894, 0
      %v901 = vsel %vm573, %v896, 0
      %903 = vmatprep.subr.bf16.mxu0 0
      %904 = vmatpush1.bf16.xpose.msra.mxu0 %v901
      %905 = vmatprep.subr.bf16.mxu0 0
      %906 = vmatpush1.bf16.xpose.msra.mxu0 0
      %907 = vmatprep.subr.bf16.mxu0 0
      %908 = vmatpush1.bf16.xpose.msra.mxu0 0
      %909 = vmatprep.subr.bf16.mxu0 0
      %910 = vmatpush1.bf16.xpose.msra.mxu0 0
      %911 = vmatprep.subr.bf16.mxu0 0
      %912 = vmatpush1.bf16.xpose.msra.mxu0 0
      %913 = vmatprep.subr.bf16.mxu0 0
      %914 = vmatpush1.bf16.xpose.msra.mxu0 0
      %915 = vmatprep.subr.bf16.mxu0 0
      %916 = vmatpush1.bf16.xpose.msra.mxu0 0
      %917 = vmatprep.subr.bf16.mxu0 0
      %918 = vmatpush1.bf16.xpose.msra.mxu0 0
      %919 = vmatprep.subr.bf16.mxu0 0
      %920 = vmatpush1.bf16.xpose.msra.mxu0 0
      %921 = vmatprep.subr.bf16.mxu0 0
      %922 = vmatpush1.bf16.xpose.msra.mxu0 0
      %923 = vmatprep.subr.bf16.mxu0 0
      %924 = vmatpush1.bf16.xpose.msra.mxu0 0
      %925 = vmatprep.subr.bf16.mxu0 0
      %926 = vmatpush1.bf16.xpose.msra.mxu0 0
      %927 = vmatprep.subr.bf16.mxu0 0
      %928 = vmatpush1.bf16.xpose.msra.mxu0 0
      %929 = vmatprep.subr.bf16.mxu0 0
      %930 = vmatpush1.bf16.xpose.msra.mxu0 0
      %931 = vmatprep.subr.bf16.mxu0 0
      %932 = vmatpush1.bf16.xpose.msra.mxu0 0
      %933 = vmatprep.subr.bf16.mxu0 0
      %934 = vmatpush1.bf16.xpose.msra.mxu0 0
      %935 = vmatprep.mubr.bf16.mxu0 0
      %936 = vmatmul.mubr.bf16.gmra.mrb[0].mxu0 %v898
      %v937 = vpop.f32.mrb[0].mxu0
      %v938 = vadd.f32 0.0, %v937
      %v939 = vpop.f32.mrb[0].mxu0
      %v940 = vpop.f32.mrb[0].mxu0
      %v941 = vpop.f32.mrb[0].mxu0
      %942 = vdwg.mxu0
      %v943 = vsel %vm559, %v938, -1e+09
      %v944 = vsel %vm621, %v943, -inf
      %945 = vmax.xlane.f32.xlu0 %v944
      %v946 = vpop.xlane.xlu0 %945
      %v947 = vsub.f32 %v943, %v946
      %v948 = vmul.f32 %v947, 1.442695
      %v949 = vpow.pop %v948
      %v950 = vsel %vm621, %v949, 0.0
      %951 = vadd.xlane.f32.xlu0 %v950
      %v952 = vpop.xlane.xlu0 %951
      %v953 = vrcp.pop %v952
      %v954 = vmul.f32 %v949, %v953
      %v955 = vpack.c.bf16 %v954, %v954
      %956 = vrot.lane.b32.xlu0 %v569, 96
      %v957 = vpop.permute.xlu0 %956
      %v959 = vsel %vm621, %v955, 0
      %v962 = vsel %vm637, %v957, 0
      %964 = vmatprep.subr.bf16.mxu0 0
      %965 = vmatpush1.bf16.msra.mxu0 %v962
      %966 = vmatprep.subr.bf16.mxu0 0
      %967 = vmatpush1.bf16.msra.mxu0 0
      %968 = vmatprep.subr.bf16.mxu0 0
      %969 = vmatpush1.bf16.msra.mxu0 0
      %970 = vmatprep.subr.bf16.mxu0 0
      %971 = vmatpush1.bf16.msra.mxu0 0
      %972 = vmatprep.subr.bf16.mxu0 0
      %973 = vmatpush1.bf16.msra.mxu0 0
      %974 = vmatprep.subr.bf16.mxu0 0
      %975 = vmatpush1.bf16.msra.mxu0 0
      %976 = vmatprep.subr.bf16.mxu0 0
      %977 = vmatpush1.bf16.msra.mxu0 0
      %978 = vmatprep.subr.bf16.mxu0 0
      %979 = vmatpush1.bf16.msra.mxu0 0
      %980 = vmatprep.subr.bf16.mxu0 0
      %981 = vmatpush1.bf16.msra.mxu0 0
      %982 = vmatprep.subr.bf16.mxu0 0
      %983 = vmatpush1.bf16.msra.mxu0 0
      %984 = vmatprep.subr.bf16.mxu0 0
      %985 = vmatpush1.bf16.msra.mxu0 0
      %986 = vmatprep.subr.bf16.mxu0 0
      %987 = vmatpush1.bf16.msra.mxu0 0
      %988 = vmatprep.subr.bf16.mxu0 0
      %989 = vmatpush1.bf16.msra.mxu0 0
      %990 = vmatprep.subr.bf16.mxu0 0
      %991 = vmatpush1.bf16.msra.mxu0 0
      %992 = vmatprep.subr.bf16.mxu0 0
      %993 = vmatpush1.bf16.msra.mxu0 0
      %994 = vmatprep.subr.bf16.mxu0 0
      %995 = vmatpush1.bf16.msra.mxu0 0
      %996 = vmatprep.mubr.bf16.mxu0 0
      %997 = vmatmul.mubr.bf16.gmra.mrb[0].mxu0 %v959
      %v998 = vpop.f32.mrb[0].mxu0
      %v999 = vadd.f32 0.0, %v998
      %v1000 = vpop.f32.mrb[0].mxu0
      %v1001 = vpop.f32.mrb[0].mxu0
      %v1002 = vpop.f32.mrb[0].mxu0
      %1003 = vdwg.mxu0
      %v1004 = vpack.c.bf16 %v999, %v999
      %v1007 = vunpack.c.l.b16 %v564
      %v1008 = vunpack.c.l.b16 %v565
      %v1009 = vpack.c.b16 %v1008, %v1007
      %v1012 = vsel %vm573, %v1004, 0
      %1014 = vmatprep.subr.bf16.mxu0 0
      %1015 = vmatpush1.bf16.msra.mxu0 %v1009
      %1016 = vmatprep.subr.bf16.mxu0 0
      %1017 = vmatpush1.bf16.msra.mxu0 0
      %1018 = vmatprep.subr.bf16.mxu0 0
      %1019 = vmatpush1.bf16.msra.mxu0 0
      %1020 = vmatprep.subr.bf16.mxu0 0
      %1021 = vmatpush1.bf16.msra.mxu0 0
      %1022 = vmatprep.subr.bf16.mxu0 0
      %1023 = vmatpush1.bf16.msra.mxu0 0
      %1024 = vmatprep.subr.bf16.mxu0 0
      %1025 = vmatpush1.bf16.msra.mxu0 0
      %1026 = vmatprep.subr.bf16.mxu0 0
      %1027 = vmatpush1.bf16.msra.mxu0 0
      %1028 = vmatprep.subr.bf16.mxu0 0
      %1029 = vmatpush1.bf16.msra.mxu0 0
      %1030 = vmatprep.subr.bf16.mxu0 0
      %1031 = vmatpush1.bf16.msra.mxu0 0
      %1032 = vmatprep.subr.bf16.mxu0 0
      %1033 = vmatpush1.bf16.msra.mxu0 0
      %1034 = vmatprep.subr.bf16.mxu0 0
      %1035 = vmatpush1.bf16.msra.mxu0 0
      %1036 = vmatprep.subr.bf16.mxu0 0
      %1037 = vmatpush1.bf16.msra.mxu0 0
      %1038 = vmatprep.subr.bf16.mxu0 0
      %1039 = vmatpush1.bf16.msra.mxu0 0
      %1040 = vmatprep.subr.bf16.mxu0 0
      %1041 = vmatpush1.bf16.msra.mxu0 0
      %1042 = vmatprep.subr.bf16.mxu0 0
      %1043 = vmatpush1.bf16.msra.mxu0 0
      %1044 = vmatprep.subr.bf16.mxu0 0
      %1045 = vmatpush1.bf16.msra.mxu0 0
      %1046 = vmatprep.mubr.bf16.mxu0 0
      %1047 = vmatmul.mubr.bf16.gmra.mrb[0].mxu0 %v1012
      %v1048 = vpop.f32.mrb[0].mxu0
      %v1049 = vadd.f32 0.0, %v1048
      %v1050 = vpop.f32.mrb[0].mxu0
      %v1051 = vpop.f32.mrb[0].mxu0
      %v1052 = vpop.f32.mrb[0].mxu0
      %1053 = vdwg.mxu0
      %v1054 = vadd.f32 %v888, %v1049
      %1055 = vrot.lane.b32.xlu0 %v568, 80
      %v1056 = vpop.permute.xlu0 %1055
      %1057 = vrot.lane.b32.xlu0 %v568, 16
      %v1058 = vpop.permute.xlu0 %1057
      %v1060 = vsel %vm573, %v1056, 0
      %v1063 = vsel %vm573, %v1058, 0
      %1065 = vmatprep.subr.bf16.mxu0 0
      %1066 = vmatpush1.bf16.xpose.msra.mxu0 %v1063
      %1067 = vmatprep.subr.bf16.mxu0 0
      %1068 = vmatpush1.bf16.xpose.msra.mxu0 0
      %1069 = vmatprep.subr.bf16.mxu0 0
      %1070 = vmatpush1.bf16.xpose.msra.mxu0 0
      %1071 = vmatprep.subr.bf16.mxu0 0
      %1072 = vmatpush1.bf16.xpose.msra.mxu0 0
      %1073 = vmatprep.subr.bf16.mxu0 0
      %1074 = vmatpush1.bf16.xpose.msra.mxu0 0
      %1075 = vmatprep.subr.bf16.mxu0 0
      %1076 = vmatpush1.bf16.xpose.msra.mxu0 0
      %1077 = vmatprep.subr.bf16.mxu0 0
      %1078 = vmatpush1.bf16.xpose.msra.mxu0 0
      %1079 = vmatprep.subr.bf16.mxu0 0
      %1080 = vmatpush1.bf16.xpose.msra.mxu0 0
      %1081 = vmatprep.subr.bf16.mxu0 0
      %1082 = vmatpush1.bf16.xpose.msra.mxu0 0
      %1083 = vmatprep.subr.bf16.mxu0 0
      %1084 = vmatpush1.bf16.xpose.msra.mxu0 0
      %1085 = vmatprep.subr.bf16.mxu0 0
      %1086 = vmatpush1.bf16.xpose.msra.mxu0 0
      %1087 = vmatprep.subr.bf16.mxu0 0
      %1088 = vmatpush1.bf16.xpose.msra.mxu0 0
      %1089 = vmatprep.subr.bf16.mxu0 0
      %1090 = vmatpush1.bf16.xpose.msra.mxu0 0
      %1091 = vmatprep.subr.bf16.mxu0 0
      %1092 = vmatpush1.bf16.xpose.msra.mxu0 0
      %1093 = vmatprep.subr.bf16.mxu0 0
      %1094 = vmatpush1.bf16.xpose.msra.mxu0 0
      %1095 = vmatprep.subr.bf16.mxu0 0
      %1096 = vmatpush1.bf16.xpose.msra.mxu0 0
      %1097 = vmatprep.mubr.bf16.mxu0 0
      %1098 = vmatmul.mubr.bf16.gmra.mrb[0].mxu0 %v1060
      %v1099 = vpop.f32.mrb[0].mxu0
      %v1100 = vadd.f32 0.0, %v1099
      %v1101 = vpop.f32.mrb[0].mxu0
      %v1102 = vpop.f32.mrb[0].mxu0
      %v1103 = vpop.f32.mrb[0].mxu0
      %1104 = vdwg.mxu0
      %v1105 = vsel %vm559, %v1100, -1e+09
      %v1106 = vsel %vm621, %v1105, -inf
      %1107 = vmax.xlane.f32.xlu0 %v1106
      %v1108 = vpop.xlane.xlu0 %1107
      %v1109 = vsub.f32 %v1105, %v1108
      %v1110 = vmul.f32 %v1109, 1.442695
      %v1111 = vpow.pop %v1110
      %v1112 = vsel %vm621, %v1111, 0.0
      %1113 = vadd.xlane.f32.xlu0 %v1112
      %v1114 = vpop.xlane.xlu0 %1113
      %v1115 = vrcp.pop %v1114
      %v1116 = vmul.f32 %v1111, %v1115
      %v1117 = vpack.c.bf16 %v1116, %v1116
      %1118 = vrot.lane.b32.xlu0 %v569, 80
      %v1119 = vpop.permute.xlu0 %1118
      %v1121 = vsel %vm621, %v1117, 0
      %v1124 = vsel %vm637, %v1119, 0
      %1126 = vmatprep.subr.bf16.mxu0 0
      %1127 = vmatpush1.bf16.msra.mxu0 %v1124
      %1128 = vmatprep.subr.bf16.mxu0 0
      %1129 = vmatpush1.bf16.msra.mxu0 0
      %1130 = vmatprep.subr.bf16.mxu0 0
      %1131 = vmatpush1.bf16.msra.mxu0 0
      %1132 = vmatprep.subr.bf16.mxu0 0
      %1133 = vmatpush1.bf16.msra.mxu0 0
      %1134 = vmatprep.subr.bf16.mxu0 0
      %1135 = vmatpush1.bf16.msra.mxu0 0
      %1136 = vmatprep.subr.bf16.mxu0 0
      %1137 = vmatpush1.bf16.msra.mxu0 0
      %1138 = vmatprep.subr.bf16.mxu0 0
      %1139 = vmatpush1.bf16.msra.mxu0 0
      %1140 = vmatprep.subr.bf16.mxu0 0
      %1141 = vmatpush1.bf16.msra.mxu0 0
      %1142 = vmatprep.subr.bf16.mxu0 0
      %1143 = vmatpush1.bf16.msra.mxu0 0
      %1144 = vmatprep.subr.bf16.mxu0 0
      %1145 = vmatpush1.bf16.msra.mxu0 0
      %1146 = vmatprep.subr.bf16.mxu0 0
      %1147 = vmatpush1.bf16.msra.mxu0 0
      %1148 = vmatprep.subr.bf16.mxu0 0
      %1149 = vmatpush1.bf16.msra.mxu0 0
      %1150 = vmatprep.subr.bf16.mxu0 0
      %1151 = vmatpush1.bf16.msra.mxu0 0
      %1152 = vmatprep.subr.bf16.mxu0 0
      %1153 = vmatpush1.bf16.msra.mxu0 0
      %1154 = vmatprep.subr.bf16.mxu0 0
      %1155 = vmatpush1.bf16.msra.mxu0 0
      %1156 = vmatprep.subr.bf16.mxu0 0
      %1157 = vmatpush1.bf16.msra.mxu0 0
      %1158 = vmatprep.mubr.bf16.mxu0 0
      %1159 = vmatmul.mubr.bf16.gmra.mrb[0].mxu0 %v1121
      %v1160 = vpop.f32.mrb[0].mxu0
      %v1161 = vadd.f32 0.0, %v1160
      %v1162 = vpop.f32.mrb[0].mxu0
      %v1163 = vpop.f32.mrb[0].mxu0
      %v1164 = vpop.f32.mrb[0].mxu0
      %1165 = vdwg.mxu0
      %v1166 = vpack.c.bf16 %v1161, %v1161
      %v1169 = vunpack.c.l.b16 %v566
      %v1170 = vunpack.c.l.b16 %v567
      %v1171 = vpack.c.b16 %v1170, %v1169
      %v1174 = vsel %vm573, %v1166, 0
      %1176 = vmatprep.subr.bf16.mxu0 0
      %1177 = vmatpush1.bf16.msra.mxu0 %v1171
      %1178 = vmatprep.subr.bf16.mxu0 0
      %1179 = vmatpush1.bf16.msra.mxu0 0
      %1180 = vmatprep.subr.bf16.mxu0 0
      %1181 = vmatpush1.bf16.msra.mxu0 0
      %1182 = vmatprep.subr.bf16.mxu0 0
      %1183 = vmatpush1.bf16.msra.mxu0 0
      %1184 = vmatprep.subr.bf16.mxu0 0
      %1185 = vmatpush1.bf16.msra.mxu0 0
      %1186 = vmatprep.subr.bf16.mxu0 0
      %1187 = vmatpush1.bf16.msra.mxu0 0
      %1188 = vmatprep.subr.bf16.mxu0 0
      %1189 = vmatpush1.bf16.msra.mxu0 0
      %1190 = vmatprep.subr.bf16.mxu0 0
      %1191 = vmatpush1.bf16.msra.mxu0 0
      %1192 = vmatprep.subr.bf16.mxu0 0
      %1193 = vmatpush1.bf16.msra.mxu0 0
      %1194 = vmatprep.subr.bf16.mxu0 0
      %1195 = vmatpush1.bf16.msra.mxu0 0
      %1196 = vmatprep.subr.bf16.mxu0 0
      %1197 = vmatpush1.bf16.msra.mxu0 0
      %1198 = vmatprep.subr.bf16.mxu0 0
      %1199 = vmatpush1.bf16.msra.mxu0 0
      %1200 = vmatprep.subr.bf16.mxu0 0
      %1201 = vmatpush1.bf16.msra.mxu0 0
      %1202 = vmatprep.subr.bf16.mxu0 0
      %1203 = vmatpush1.bf16.msra.mxu0 0
      %1204 = vmatprep.subr.bf16.mxu0 0
      %1205 = vmatpush1.bf16.msra.mxu0 0
      %1206 = vmatprep.subr.bf16.mxu0 0
      %1207 = vmatpush1.bf16.msra.mxu0 0
      %1208 = vmatprep.mubr.bf16.mxu0 0
      %1209 = vmatmul.mubr.bf16.gmra.mrb[0].mxu0 %v1174
      %v1210 = vpop.f32.mrb[0].mxu0
      %v1211 = vadd.f32 0.0, %v1210
      %v1212 = vpop.f32.mrb[0].mxu0
      %v1213 = vpop.f32.mrb[0].mxu0
      %v1214 = vpop.f32.mrb[0].mxu0
      %1215 = vdwg.mxu0
      %v1216 = vadd.f32 %v1054, %v1211
      %v1217 = vadd.f32 %v451, %v1216
      %v1218 = vld [vmem:[%s4] sm:$0x1]
      %v1220 = vlaneseq
      %v1221 = vshrl.u32 %v1220, 7
      %v1222 = vsub.s32 0, %v1221
      %v1223 = vrot.slane %v1218, %v1222
      %v1225 = vadd.f32 %v1217, %v1223
      %v1226 = vld [vmem:[%s5] sm:$0x1]
      %v1227 = vld [vmem:[%s6] sm:$0x1]
      %v1228 = vsel %vm501, %v1225, 0.0
      %1229 = vadd.xlane.f32.xlu0 %v1228
      %v1230 = vpop.xlane.xlu0 %1229
      %v1231 = vrcp.pop 64.0
      %v1232 = vmul.f32 %v1230, %v1231
      %v1233 = vsub.f32 %v1225, %v1232
      %v1234 = vmul.f32 %v1233, %v1233
      %v1235 = vsel %vm501, %v1234, 0.0
      %1236 = vadd.xlane.f32.xlu0 %v1235
      %v1237 = vpop.xlane.xlu0 %1236
      %v1238 = vmul.f32 %v1237, %v1231
      %v1239 = vadd.f32 %v1238, 1e-05
      %v1240 = vrsqrt.pop %v1239
      %v1241 = vmul.f32 %v1233, %v1240
      %v1243 = vlaneseq
      %v1244 = vshrl.u32 %v1243, 7
      %v1245 = vsub.s32 0, %v1244
      %v1246 = vrot.slane %v1226, %v1245
      %v1248 = vmul.f32 %v1241, %v1246
      %v1250 = vlaneseq
      %v1251 = vshrl.u32 %v1250, 7
      %v1252 = vsub.s32 0, %v1251
      %v1253 = vrot.slane %v1227, %v1252
      %v1255 = vadd.f32 %v1248, %v1253
      %v1256 = vpack.c.bf16 %v1255, %v1255
      %v1257 = vld [vmem:[%s7] sm:$0xf]
      %v1258 = vld [vmem:[%s7 + $0x4] sm:$0xf]
      %v1259 = vld [vmem:[%s7 + $0x8] sm:$0xf]
      %v1260 = vld [vmem:[%s7 + $0xc] sm:$0xf]
      %v1261 = vld [vmem:[%s7 + $0x10] sm:$0xf]
      %v1262 = vld [vmem:[%s7 + $0x14] sm:$0xf]
      %v1263 = vld [vmem:[%s7 + $0x18] sm:$0xf]
      %v1264 = vld [vmem:[%s7 + $0x1c] sm:$0xf]
      %v1265 = vld [vmem:[%s8] sm:$0x1]
      %v1267 = vlaneseq
      %v1268 = vshrl.u32 %v1267, 7
      %v1269 = vsub.s32 0, %v1268
      %v1270 = vrot.slane %v1265, %v1269
      %v1280 = vunpack.c.l.b16 %v1257
      %v1281 = vunpack.c.l.b16 %v1258
      %v1282 = vunpack.c.l.b16 %v1259
      %v1283 = vunpack.c.l.b16 %v1260
      %v1284 = vunpack.c.l.b16 %v1261
      %v1285 = vunpack.c.l.b16 %v1262
      %v1286 = vunpack.c.l.b16 %v1263
      %v1287 = vunpack.c.l.b16 %v1264
      %v1288 = vpack.c.b16 %v1281, %v1280
      %v1289 = vpack.c.b16 %v1283, %v1282
      %v1290 = vpack.c.b16 %v1285, %v1284
      %v1291 = vpack.c.b16 %v1287, %v1286
      %v1297 = vsel %vm501, %v1256, 0
      %1299 = vmatprep.subr.bf16.mxu0 0
      %1300 = vmatpush1.bf16.msra.mxu0 %v1288
      %1301 = vmatprep.subr.bf16.mxu0 0
      %1302 = vmatpush1.bf16.msra.mxu0 %v1289
      %1303 = vmatprep.subr.bf16.mxu0 0
      %1304 = vmatpush1.bf16.msra.mxu0 %v1290
      %1305 = vmatprep.subr.bf16.mxu0 0
      %1306 = vmatpush1.bf16.msra.mxu0 %v1291
      %1307 = vmatprep.subr.bf16.mxu0 0
      %1308 = vmatpush1.bf16.msra.mxu0 0
      %1309 = vmatprep.subr.bf16.mxu0 0
      %1310 = vmatpush1.bf16.msra.mxu0 0
      %1311 = vmatprep.subr.bf16.mxu0 0
      %1312 = vmatpush1.bf16.msra.mxu0 0
      %1313 = vmatprep.subr.bf16.mxu0 0
      %1314 = vmatpush1.bf16.msra.mxu0 0
      %1315 = vmatprep.subr.bf16.mxu0 0
      %1316 = vmatpush1.bf16.msra.mxu0 0
      %1317 = vmatprep.subr.bf16.mxu0 0
      %1318 = vmatpush1.bf16.msra.mxu0 0
      %1319 = vmatprep.subr.bf16.mxu0 0
      %1320 = vmatpush1.bf16.msra.mxu0 0
      %1321 = vmatprep.subr.bf16.mxu0 0
      %1322 = vmatpush1.bf16.msra.mxu0 0
      %1323 = vmatprep.subr.bf16.mxu0 0
      %1324 = vmatpush1.bf16.msra.mxu0 0
      %1325 = vmatprep.subr.bf16.mxu0 0
      %1326 = vmatpush1.bf16.msra.mxu0 0
      %1327 = vmatprep.subr.bf16.mxu0 0
      %1328 = vmatpush1.bf16.msra.mxu0 0
      %1329 = vmatprep.subr.bf16.mxu0 0
      %1330 = vmatpush1.bf16.msra.mxu0 0
      %1331 = vmatprep.mubr.bf16.mxu0 0
      %1332 = vmatmul.mubr.bf16.gmra.mrb[0].mxu0 %v1297
      %v1333 = vpop.f32.mrb[0].mxu0
      %v1334 = vadd.f32 %v1270, %v1333
      %v1335 = vpop.f32.mrb[0].mxu0
      %v1336 = vpop.f32.mrb[0].mxu0
      %v1337 = vpop.f32.mrb[0].mxu0
      %1338 = vdwg.mxu0
      %v1339 = vmul.f32 %v1334, 0.5
      %v1340 = vmul.f32 %v1334, 0.044715
      %v1341 = vmul.f32 %v1340, %v1334
      %v1342 = vmul.f32 %v1341, %v1334
      %v1343 = vadd.f32 %v1334, %v1342
      %v1344 = vmul.f32 %v1343, 0.7978846
      %v1345 = vtanh.pop %v1344
      %v1346 = vadd.f32 %v1345, 1.0
      %v1347 = vmul.f32 %v1339, %v1346
      %v1348 = vpack.c.bf16 %v1347, %v1347
      %v1349 = vld [vmem:[%s9] sm:$0xf]
      %v1350 = vld [vmem:[%s9 + $0x4] sm:$0xf]
      %v1351 = vld [vmem:[%s9 + $0x8] sm:$0xf]
      %v1352 = vld [vmem:[%s9 + $0xc] sm:$0xf]
      %v1353 = vld [vmem:[%s9 + $0x10] sm:$0xf]
      %v1354 = vld [vmem:[%s9 + $0x14] sm:$0xf]
      %v1355 = vld [vmem:[%s9 + $0x18] sm:$0xf]
      %v1356 = vld [vmem:[%s9 + $0x1c] sm:$0xf]
      %v1357 = vld [vmem:[%s9 + $0x20] sm:$0xf]
      %v1358 = vld [vmem:[%s9 + $0x24] sm:$0xf]
      %v1359 = vld [vmem:[%s9 + $0x28] sm:$0xf]
      %v1360 = vld [vmem:[%s9 + $0x2c] sm:$0xf]
      %v1361 = vld [vmem:[%s9 + $0x30] sm:$0xf]
      %v1362 = vld [vmem:[%s9 + $0x34] sm:$0xf]
      %v1363 = vld [vmem:[%s9 + $0x38] sm:$0xf]
      %v1364 = vld [vmem:[%s9 + $0x3c] sm:$0xf]
      %v1365 = vld [vmem:[%s10] sm:$0x1]
      %v1367 = vlaneseq
      %v1368 = vshrl.u32 %v1367, 7
      %v1369 = vsub.s32 0, %v1368
      %v1370 = vrot.slane %v1365, %v1369
      %v1388 = vunpack.c.l.b16 %v1349
      %v1389 = vunpack.c.l.b16 %v1350
      %v1390 = vunpack.c.l.b16 %v1351
      %v1391 = vunpack.c.l.b16 %v1352
      %v1392 = vunpack.c.l.b16 %v1353
      %v1393 = vunpack.c.l.b16 %v1354
      %v1394 = vunpack.c.l.b16 %v1355
      %v1395 = vunpack.c.l.b16 %v1356
      %v1396 = vunpack.c.l.b16 %v1357
      %v1397 = vunpack.c.l.b16 %v1358
      %v1398 = vunpack.c.l.b16 %v1359
      %v1399 = vunpack.c.l.b16 %v1360
      %v1400 = vunpack.c.l.b16 %v1361
      %v1401 = vunpack.c.l.b16 %v1362
      %v1402 = vunpack.c.l.b16 %v1363
      %v1403 = vunpack.c.l.b16 %v1364
      %v1404 = vpack.c.b16 %v1389, %v1388
      %v1405 = vpack.c.b16 %v1391, %v1390
      %v1406 = vpack.c.b16 %v1393, %v1392
      %v1407 = vpack.c.b16 %v1395, %v1394
      %v1408 = vpack.c.b16 %v1397, %v1396
      %v1409 = vpack.c.b16 %v1399, %v1398
      %v1410 = vpack.c.b16 %v1401, %v1400
      %v1411 = vpack.c.b16 %v1403, %v1402
      %1420 = vmatprep.subr.bf16.mxu0 0
      %1421 = vmatpush1.bf16.msra.mxu0 %v1404
      %1422 = vmatprep.subr.bf16.mxu0 0
      %1423 = vmatpush1.bf16.msra.mxu0 %v1405
      %1424 = vmatprep.subr.bf16.mxu0 0
      %1425 = vmatpush1.bf16.msra.mxu0 %v1406
      %1426 = vmatprep.subr.bf16.mxu0 0
      %1427 = vmatpush1.bf16.msra.mxu0 %v1407
      %1428 = vmatprep.subr.bf16.mxu0 0
      %1429 = vmatpush1.bf16.msra.mxu0 %v1408
      %1430 = vmatprep.subr.bf16.mxu0 0
      %1431 = vmatpush1.bf16.msra.mxu0 %v1409
      %1432 = vmatprep.subr.bf16.mxu0 0
      %1433 = vmatpush1.bf16.msra.mxu0 %v1410
      %1434 = vmatprep.subr.bf16.mxu0 0
      %1435 = vmatpush1.bf16.msra.mxu0 %v1411
      %1436 = vmatprep.subr.bf16.mxu0 0
      %1437 = vmatpush1.bf16.msra.mxu0 0
      %1438 = vmatprep.subr.bf16.mxu0 0
      %1439 = vmatpush1.bf16.msra.mxu0 0
      %1440 = vmatprep.subr.bf16.mxu0 0
      %1441 = vmatpush1.bf16.msra.mxu0 0
      %1442 = vmatprep.subr.bf16.mxu0 0
      %1443 = vmatpush1.bf16.msra.mxu0 0
      %1444 = vmatprep.subr.bf16.mxu0 0
      %1445 = vmatpush1.bf16.msra.mxu0 0
      %1446 = vmatprep.subr.bf16.mxu0 0
      %1447 = vmatpush1.bf16.msra.mxu0 0
      %1448 = vmatprep.subr.bf16.mxu0 0
      %1449 = vmatpush1.bf16.msra.mxu0 0
      %1450 = vmatprep.subr.bf16.mxu0 0
      %1451 = vmatpush1.bf16.msra.mxu0 0
      %1452 = vmatprep.mubr.bf16.mxu0 0
      %1453 = vmatmul.mubr.bf16.gmra.mrb[0].mxu0 %v1348
      %v1454 = vpop.f32.mrb[0].mxu0
      %v1455 = vadd.f32 %v1370, %v1454
      %v1456 = vpop.f32.mrb[0].mxu0
      %v1457 = vpop.f32.mrb[0].mxu0
      %v1458 = vpop.f32.mrb[0].mxu0
      %1459 = vdwg.mxu0
      %v1460 = vadd.f32 %v1255, %v1455
      %v1461 = vld [vmem:[%s11] sm:$0x1]
      %v1462 = vld [vmem:[%s12] sm:$0x1]
      %v1463 = vsel %vm501, %v1460, 0.0
      %1464 = vadd.xlane.f32.xlu0 %v1463
      %v1465 = vpop.xlane.xlu0 %1464
      %v1466 = vmul.f32 %v1465, %v1231
      %v1467 = vsub.f32 %v1460, %v1466
      %v1468 = vmul.f32 %v1467, %v1467
      %v1469 = vsel %vm501, %v1468, 0.0
      %1470 = vadd.xlane.f32.xlu0 %v1469
      %v1471 = vpop.xlane.xlu0 %1470
      %v1472 = vmul.f32 %v1471, %v1231
      %v1473 = vadd.f32 %v1472, 1e-05
      %v1474 = vrsqrt.pop %v1473
      %v1475 = vmul.f32 %v1467, %v1474
      %v1477 = vlaneseq
      %v1478 = vshrl.u32 %v1477, 7
      %v1479 = vsub.s32 0, %v1478
      %v1480 = vrot.slane %v1461, %v1479
      %v1482 = vmul.f32 %v1475, %v1480
      %v1484 = vlaneseq
      %v1485 = vshrl.u32 %v1484, 7
      %v1486 = vsub.s32 0, %v1485
      %v1487 = vrot.slane %v1462, %v1486
      %v1489 = vadd.f32 %v1482, %v1487
      %1490 = vst.msk [vmem:[%s449] sm:$0xff] %vm501, %v1489
      %p1491 = scmp.lt.s32.totalorder %s24, 1
      %s1492 = scalar_select %p1491, %s24, 1
      %s1493 = smul.addr %s1492, 8
      %s1494 = scalar_lea.vmem %s13, %s1493
      // Predicated region
      $region73: #{enhanced_sasrec_forward.6} parent=71 // pred_check
        %p1495 = pneg %p325
      $region74: #{enhanced_sasrec_forward.6} parent=71 // pred_check_branch
        %1497 = sbr.rel (%p1495) target = $region76
      $region75: #{enhanced_sasrec_forward.6} parent=71 // pred_region
        _
      $region76: #{enhanced_sasrec_forward.6} parent=71 // pred_fallthru
        _
    $region72: #{enhanced_sasrec_forward.6} parent=5 // pred_fallthru
      _
    %p1498 = scmp.le.s32.totalorder 2, %s19
    // Predicated region
    $region77: #{enhanced_sasrec_forward.6} parent=5 // pred_check
      %p1499 = pneg %p1498
    $region78: #{enhanced_sasrec_forward.6} parent=5 // pred_check_branch
      %1501 = sbr.rel (%p1499) target = $region80
    $region79: #{enhanced_sasrec_forward.6} parent=5 // pred_region
      %s1502 = ssub.s32 %s19, 2
      // Predicated region
      $region81: #{enhanced_sasrec_forward.6} parent=79 // pred_check
        %p1503 = pneg %p331
      $region82: #{enhanced_sasrec_forward.6} parent=79 // pred_check_branch
        %1505 = sbr.rel (%p1503) target = $region84
      $region83: #{enhanced_sasrec_forward.6} parent=79 // pred_region
        %p1506 = scmp.lt.s32.totalorder %s25, 1
        %s1507 = scalar_select %p1506, %s25, 1
        %s1508 = smul.addr %s1507, 8
        %s1509 = scalar_lea.vmem %s13, %s1508
      $region84: #{enhanced_sasrec_forward.6} parent=79 // pred_fallthru
        _
    $region80: #{enhanced_sasrec_forward.6} parent=5 // pred_fallthru
      _
  $region6: #{enhanced_sasrec_forward.6} parent=0 // loop_footer
    %s23 = sadd.s32 1, %s19
  $region7: #{enhanced_sasrec_forward.6} parent=0 // loop_footer_branch
    %18 = sbr.rel target = $region3
  $region8: #{enhanced_sasrec_forward.6} parent=0 // loop_exit
    _

</llo_original>
